<compile_context>
chip_gen: v7x
topology: tpu7x:2x2x1
jax: 0.10.0
libtpu: 0.0.40
codegen_flags: <defaults>
</compile_context>

<pallas_src>
import functools
import math

import jax
import jax.numpy as jnp
from jax import lax
from jax.experimental import pallas as pl
from jax.experimental.pallas import tpu as pltpu

_BASE = 256                      # node-dim padding granularity
_VMEM_LIMIT = 32 * 1024 * 1024   # explicit scoped-VMEM limit (safe on all gens)


def _round_up(n, m):
    return ((n + m - 1) // m) * m


def _pick_tile(n, candidates):
    """Largest candidate that divides n (n is always a multiple of _BASE)."""
    for t in candidates:
        if t <= n and n % t == 0:
            return t
    return n


# ---------------------------------------------------------------------------
# Kernels
# ---------------------------------------------------------------------------
def _xw1_kernel(x_ref, w1_ref, o_ref):
    # First-layer feature transform, computed exactly once per row tile
    # (f32 inputs, bf16 output for the downstream adj-streaming kernels).
    o_ref[...] = jnp.dot(x_ref[...], w1_ref[...],
                         preferred_element_type=jnp.float32).astype(o_ref.dtype)


def _t_kernel(adj_ref, xw1_ref, wcat_ref, t_ref, acc_ref):
    # T = relu(adj @ xw1) @ [W2 | W3 | W_semi], reduced over the k axis of adj
    # with an f32 VMEM accumulator.  xw1 is fully resident (constant index
    # map); the k-slice is taken in-kernel.  h1 never touches HBM.
    k = pl.program_id(1)
    tk = adj_ref.shape[1]

    @pl.when(k == 0)
    def _():
        acc_ref[...] = jnp.zeros_like(acc_ref)

    xw1_blk = xw1_ref[pl.ds(pl.multiple_of(k * tk, tk), tk), :]
    acc_ref[...] += jnp.dot(adj_ref[...], xw1_blk,
                            preferred_element_type=jnp.float32)

    @pl.when(k == pl.num_programs(1) - 1)
    def _():
        h1 = jnp.maximum(acc_ref[...], 0.0).astype(wcat_ref.dtype)
        t_ref[...] = jnp.dot(h1, wcat_ref[...],
                             preferred_element_type=jnp.float32).astype(t_ref.dtype)


def _heads_kernel(adj_ref, t_ref, y_ref, logsm_ref, sm_ref, *, h2):
    # Y = adj @ T = [mu | logvar | semi] (single wide matmul for all 3 heads),
    # accumulated directly into the resident f32 output block.  T is fully
    # resident in VMEM; the k-slice is taken in-kernel.  Epilogue computes the
    # softmax tail with exact math (sm = exp(log_softmax)).
    k = pl.program_id(1)
    tk = adj_ref.shape[1]

    @pl.when(k == 0)
    def _():
        y_ref[...] = jnp.zeros_like(y_ref)

    t_blk = t_ref[pl.ds(pl.multiple_of(k * tk, tk), tk), :]
    y_ref[...] += jnp.dot(adj_ref[...], t_blk,
                          preferred_element_type=jnp.float32)

    @pl.when(k == pl.num_programs(1) - 1)
    def _():
        semi = y_ref[:, 2 * h2:]                      # [tm, C]
        m = jnp.max(semi, axis=1, keepdims=True)
        s = semi - m
        lse = jnp.log(jnp.sum(jnp.exp(s), axis=1, keepdims=True))
        logsm = s - lse
        logsm_ref[...] = logsm
        sm_ref[...] = jnp.exp(logsm)                  # exact, one EUP exp


def _adjrec_kernel(zi_ref, zall_ref, o_ref):
    # adj_rec[i, j] = z_i @ z_j^T.  z_j comes from a fully resident copy of z
    # (no per-i re-fetch); minor dims are contracted directly so no transposed
    # copy of z is ever materialized.  Store-bound on the N x N f32 output.
    j = pl.program_id(1)
    tr = o_ref.shape[1]
    zj = zall_ref[pl.ds(pl.multiple_of(j * tr, tr), tr), :]
    o_ref[...] = lax.dot_general(zi_ref[...], zj, (((1,), (1,)), ((), ())),
                                 preferred_element_type=jnp.float32)


# ---------------------------------------------------------------------------
# Wrapper
# ---------------------------------------------------------------------------
@jax.jit
def cdrs_forward(x, adj, w1, w2, w3, wsemi):
    n, f_in = x.shape
    h1 = w1.shape[1]
    h2 = w2.shape[1]
    c = wsemi.shape[1]
    wc = 2 * h2 + c                                   # mu | logvar | semi

    # Pad node dim with zeros to a multiple of 256: keeps all blocks
    # (8,128)-aligned and avoids full-extent fallback tiles at awkward N.
    # Zero rows/cols of adj contribute nothing, padded output rows are zero
    # and are sliced away below.
    n_pad = _round_up(n, _BASE)
    if n_pad != n:
        x = jnp.pad(x, ((0, n_pad - n), (0, 0)))
        adj = jnp.pad(adj, ((0, n_pad - n), (0, n_pad - n)))

    # bf16 operands for the HBM-bound adj stream; all accumulation is f32.
    cdt = jnp.bfloat16
    adj_c = adj.astype(cdt)
    # One wide second-layer weight: a single pass of adj serves all 3 heads.
    wcat = jnp.concatenate([w2, w3, wsemi], axis=1).astype(cdt)   # [h1, wc]

    tm = min(256, n_pad)                              # output-row tile
    tk = _pick_tile(n_pad, (2048, 1024, 512, 256))    # adj reduction tile
    tr = _pick_tile(n_pad, (512, 256))                # adj_rec output tile

    # ---- 1) xw1 = x @ W1 (computed once, stored bf16) -----------------------
    xw1 = pl.pallas_call(
        _xw1_kernel,
        out_shape=jax.ShapeDtypeStruct((n_pad, h1), cdt),
        grid=(n_pad // tm,),
        in_specs=[pl.BlockSpec((tm, f_in), lambda i: (i, 0)),
                  pl.BlockSpec((f_in, h1), lambda i: (0, 0))],
        out_specs=pl.BlockSpec((tm, h1), lambda i: (i, 0)),
        compiler_params=pltpu.CompilerParams(
            dimension_semantics=("parallel",)),
    )(x, w1)

    # ---- 2) T = relu(adj @ xw1) @ [W2|W3|Wsemi] ------------------------------
    t = pl.pallas_call(
        _t_kernel,
        out_shape=jax.ShapeDtypeStruct((n_pad, wc), cdt),
        grid=(n_pad // tm, n_pad // tk),
        in_specs=[pl.BlockSpec((tm, tk), lambda i, k: (i, k)),
                  pl.BlockSpec((n_pad, h1), lambda i, k: (0, 0)),   # resident
                  pl.BlockSpec((h1, wc), lambda i, k: (0, 0))],     # resident
        out_specs=pl.BlockSpec((tm, wc), lambda i, k: (i, 0)),
        scratch_shapes=[pltpu.VMEM((tm, h1), jnp.float32)],
        compiler_params=pltpu.CompilerParams(
            dimension_semantics=("parallel", "arbitrary"),
            vmem_limit_bytes=_VMEM_LIMIT),
    )(adj_c, xw1, wcat)

    # ---- 3) Y = adj @ T -> [mu|logvar|semi] slab + softmax heads -------------
    y, logsm_p, sm_p = pl.pallas_call(
        functools.partial(_heads_kernel, h2=h2),
        out_shape=(jax.ShapeDtypeStruct((n_pad, wc), jnp.float32),
                   jax.ShapeDtypeStruct((n_pad, c), jnp.float32),
                   jax.ShapeDtypeStruct((n_pad, c), jnp.float32)),
        grid=(n_pad // tm, n_pad // tk),
        in_specs=[pl.BlockSpec((tm, tk), lambda i, k: (i, k)),
                  pl.BlockSpec((n_pad, wc), lambda i, k: (0, 0))],  # resident
        out_specs=(pl.BlockSpec((tm, wc), lambda i, k: (i, 0)),
                   pl.BlockSpec((tm, c), lambda i, k: (i, 0)),
                   pl.BlockSpec((tm, c), lambda i, k: (i, 0))),
        compiler_params=pltpu.CompilerParams(
            dimension_semantics=("parallel", "arbitrary"),
            vmem_limit_bytes=_VMEM_LIMIT),
    )(adj_c, t)

    # ---- 4) adj_rec = z @ z.T  (z = mu in eval mode) -------------------------
    z_full = y[:, :h2]            # only the h2 mu columns are streamed in
    adj_rec_full = pl.pallas_call(
        _adjrec_kernel,
        out_shape=jax.ShapeDtypeStruct((n_pad, n_pad), jnp.float32),
        grid=(n_pad // tr, n_pad // tr),
        in_specs=[pl.BlockSpec((tr, h2), lambda i, j: (i, 0)),
                  pl.BlockSpec((n_pad, h2), lambda i, j: (0, 0))],  # resident
        out_specs=pl.BlockSpec((tr, tr), lambda i, j: (i, j)),
        compiler_params=pltpu.CompilerParams(
            dimension_semantics=("parallel", "parallel"),
            vmem_limit_bytes=_VMEM_LIMIT),
    )(z_full, z_full)

    mu = y[:n, :h2]
    logvar = y[:n, h2:2 * h2]
    semi = y[:n, 2 * h2:]
    logsm = logsm_p[:n]
    sm = sm_p[:n]
    adj_rec = adj_rec_full[:n, :n]
    z = mu                        # eval-mode reparameterize (z == mu)
    return adj_rec, mu, logvar, z, logsm, sm, semi


def glorot(key, shape):
    limit = math.sqrt(6.0 / (shape[0] + shape[1]))
    return jax.random.uniform(key, shape, jnp.float32, -limit, limit)


if __name__ == "__main__":
    # N deliberately not a multiple of 256 so the padding path, multi-row-tile,
    # multi-k-accumulation, and multi-tile adj_rec paths are all exercised,
    # while staying small (adj is ~2 MB).
    N, F_IN, H1, H2, CLUSTERS = 700, 64, 32, 16, 8

    key = jax.random.PRNGKey(0)
    kx, kadj, k1, k2, k3, ks = jax.random.split(key, 6)

    x = jax.random.normal(kx, (N, F_IN), jnp.float32)

    # symmetric, row-normalized dense adjacency with self loops
    a = (jax.random.uniform(kadj, (N, N)) > 0.9).astype(jnp.float32)
    a = jnp.maximum(a, a.T) + jnp.eye(N, dtype=jnp.float32)
    adj = a / jnp.sum(a, axis=1, keepdims=True)

    w1 = glorot(k1, (F_IN, H1))
    w2 = glorot(k2, (H1, H2))
    w3 = glorot(k3, (H1, H2))
    wsemi = glorot(ks, (H1, CLUSTERS))

    outs = cdrs_forward(x, adj, w1, w2, w3, wsemi)
    outs = jax.block_until_ready(outs)

    # correctness check against pure-JAX f32 reference (eval-mode semantics).
    # The kernel streams adj / intermediates in bf16 with f32 accumulation, so
    # tolerances are set for bf16-operand numerics (errors measured well below
    # these thresholds; the checks still catch any structural/tiling bug).
    h1_ref = jnp.maximum(adj @ (x @ w1), 0.0)
    mu_ref = adj @ (h1_ref @ w2)
    logvar_ref = adj @ (h1_ref @ w3)
    semi_ref = adj @ (h1_ref @ wsemi)
    adj_rec_ref = mu_ref @ mu_ref.T
    logsm_ref = jax.nn.log_softmax(semi_ref, axis=1)
    sm_ref = jax.nn.softmax(semi_ref, axis=1)
    refs = (adj_rec_ref, mu_ref, logvar_ref, mu_ref, logsm_ref, sm_ref, semi_ref)
    names = ("adj_rec", "mu", "logvar", "z", "logsm", "sm", "semi")
    for name, o, r in zip(names, outs, refs):
        assert o.shape == r.shape, f"{name} shape {o.shape} != {r.shape}"
        assert jnp.allclose(o, r, atol=5e-3, rtol=2e-2), (
            f"{name} mismatch: max abs err {float(jnp.max(jnp.abs(o - r)))}")

    print("KERNEL_OK")
</pallas_src>

<mosaic_0001>
module attributes {stable_mosaic.version = 11 : i64} {
  func.func @_xw1_kernel(%arg0: i32, %arg1: memref<256x64xf32, #tpu.memory_space<vmem>>, %arg2: memref<64x32xf32, #tpu.memory_space<vmem>>, %arg3: memref<256x32xbf16, #tpu.memory_space<vmem>>) attributes {dimension_semantics = [#tpu.dimension_semantics<parallel>], iteration_bounds = array<i64: 3>, scalar_prefetch = 0 : i64, scratch_operands = 0 : i64, tpu.core_type = #tpu.core_type<tc>, window_params = [{transform_indices = @transform_0, window_bounds = array<i64: 256, 64>}, {pipeline_mode = #tpu.pipeline_mode<synchronous>, transform_indices = @transform_1, window_bounds = array<i64: 64, 32>}, {transform_indices = @transform_2, window_bounds = array<i64: 256, 32>}]} {
    %c0 = arith.constant 0 : index
    %c0_0 = arith.constant 0 : index
    %0 = vector.load %arg1[%c0, %c0_0] : memref<256x64xf32, #tpu.memory_space<vmem>>, vector<256x64xf32>
    %c0_1 = arith.constant 0 : index
    %c0_2 = arith.constant 0 : index
    %1 = vector.load %arg2[%c0_1, %c0_2] : memref<64x32xf32, #tpu.memory_space<vmem>>, vector<64x32xf32>
    %cst = arith.constant dense<0.000000e+00> : vector<256x32xf32>
    %2 = tpu.matmul %0, %1, %cst {dimension_numbers = #tpu.dot_dimension_numbers<[1], [0], [0], [1], [0, 0, 1, 1], [], []>} : vector<256x64xf32>, vector<64x32xf32>, vector<256x32xf32> -> vector<256x32xf32>
    %3 = arith.truncf %2 : vector<256x32xf32> to vector<256x32xbf16>
    %c0_3 = arith.constant 0 : index
    %c0_4 = arith.constant 0 : index
    %4 = vector.load %arg3[%c0_3, %c0_4] : memref<256x32xbf16, #tpu.memory_space<vmem>>, vector<256x32xbf16>
    tpu.vector_store %arg3[%c0_3, %c0_4], %3 {strides = array<i32>} : memref<256x32xbf16, #tpu.memory_space<vmem>>, vector<256x32xbf16>,
    return
  }
  func.func @transform_0(%arg0: i32) -> (i32, i32) {
    %c0_i32 = arith.constant 0 : i32
    %c0_i32_0 = arith.constant 0 : i32
    return %arg0, %c0_i32 : i32, i32
  }
  func.func @transform_1(%arg0: i32) -> (i32, i32) {
    %c0_i32 = arith.constant 0 : i32
    %c0_i32_0 = arith.constant 0 : i32
    %c0_i32_1 = arith.constant 0 : i32
    return %c0_i32, %c0_i32_0 : i32, i32
  }
  func.func @transform_2(%arg0: i32) -> (i32, i32) {
    %c0_i32 = arith.constant 0 : i32
    %c0_i32_0 = arith.constant 0 : i32
    return %arg0, %c0_i32 : i32, i32
  }
}

module attributes {stable_mosaic.version = 11 : i64} {
  func.func @_t_kernel(%arg0: i32, %arg1: i32, %arg2: memref<256x256xbf16, #tpu.memory_space<vmem>>, %arg3: memref<768x32xbf16, #tpu.memory_space<vmem>>, %arg4: memref<32x40xbf16, #tpu.memory_space<vmem>>, %arg5: memref<256x40xbf16, #tpu.memory_space<vmem>>, %arg6: memref<256x32xf32, #tpu.memory_space<vmem>>) attributes {dimension_semantics = [#tpu.dimension_semantics<parallel>, #tpu.dimension_semantics<arbitrary>], iteration_bounds = array<i64: 3, 3>, scalar_prefetch = 0 : i64, scratch_operands = 1 : i64, tpu.core_type = #tpu.core_type<tc>, window_params = [{transform_indices = @transform_0, window_bounds = array<i64: 256, 256>}, {pipeline_mode = #tpu.pipeline_mode<synchronous>, transform_indices = @transform_1, window_bounds = array<i64: 768, 32>}, {pipeline_mode = #tpu.pipeline_mode<synchronous>, transform_indices = @transform_2, window_bounds = array<i64: 32, 40>}, {transform_indices = @transform_3, window_bounds = array<i64: 256, 40>}]} {
    %c0_i32 = arith.constant 0 : i32
    %0 = arith.cmpi eq, %arg1, %c0_i32 : i32
    %1 = arith.extui %0 : i1 to i32
    %c0_i32_0 = arith.constant 0 : i32
    %2 = arith.cmpi ne, %1, %c0_i32_0 : i32
    scf.if %2 {
      %cst_8 = arith.constant 0.000000e+00 : f32
      %15 = vector.broadcast %cst_8 : f32 to vector<256x32xf32>
      %c0_9 = arith.constant 0 : index
      %c0_10 = arith.constant 0 : index
      %16 = vector.load %arg6[%c0_9, %c0_10] : memref<256x32xf32, #tpu.memory_space<vmem>>, vector<256x32xf32>
      tpu.vector_store %arg6[%c0_9, %c0_10], %15 {strides = array<i32>} : memref<256x32xf32, #tpu.memory_space<vmem>>, vector<256x32xf32>,
    } else {
    }
    %c256_i32 = arith.constant 256 : i32
    %3 = arith.muli %arg1, %c256_i32 : i32
    %4 = tpu.assume_multiple %3, 256 : i32
    %5 = arith.index_cast %4 : i32 to index
    %c0 = arith.constant 0 : index
    %6 = vector.load %arg3[%5, %c0] : memref<768x32xbf16, #tpu.memory_space<vmem>>, vector<256x32xbf16>
    %c0_1 = arith.constant 0 : index
    %c0_2 = arith.constant 0 : index
    %7 = vector.load %arg6[%c0_1, %c0_2] : memref<256x32xf32, #tpu.memory_space<vmem>>, vector<256x32xf32>
    %c0_3 = arith.constant 0 : index
    %c0_4 = arith.constant 0 : index
    %8 = vector.load %arg2[%c0_3, %c0_4] : memref<256x256xbf16, #tpu.memory_space<vmem>>, vector<256x256xbf16>
    %cst = arith.constant dense<0.000000e+00> : vector<256x32xf32>
    %9 = tpu.matmul %8, %6, %cst {dimension_numbers = #tpu.dot_dimension_numbers<[1], [0], [0], [1], [0, 0, 1, 1], [], []>} : vector<256x256xbf16>, vector<256x32xbf16>, vector<256x32xf32> -> vector<256x32xf32>
    %10 = arith.addf %7, %9 : vector<256x32xf32>
    %c0_5 = arith.constant 0 : index
    %c0_6 = arith.constant 0 : index
    %11 = vector.load %arg6[%c0_5, %c0_6] : memref<256x32xf32, #tpu.memory_space<vmem>>, vector<256x32xf32>
    tpu.vector_store %arg6[%c0_5, %c0_6], %10 {strides = array<i32>} : memref<256x32xf32, #tpu.memory_space<vmem>>, vector<256x32xf32>,
    %c2_i32 = arith.constant 2 : i32
    %12 = arith.cmpi eq, %arg1, %c2_i32 : i32
    %13 = arith.extui %12 : i1 to i32
    %c0_i32_7 = arith.constant 0 : i32
    %14 = arith.cmpi ne, %13, %c0_i32_7 : i32
    scf.if %14 {
      %c0_8 = arith.constant 0 : index
      %c0_9 = arith.constant 0 : index
      %15 = vector.load %arg6[%c0_8, %c0_9] : memref<256x32xf32, #tpu.memory_space<vmem>>, vector<256x32xf32>
      %cst_10 = arith.constant 0.000000e+00 : f32
      %16 = vector.broadcast %cst_10 : f32 to vector<256x32xf32>
      %17 = arith.maximumf %15, %16 : vector<256x32xf32>
      %18 = arith.truncf %17 : vector<256x32xf32> to vector<256x32xbf16>
      %c0_11 = arith.constant 0 : index
      %c0_12 = arith.constant 0 : index
      %19 = vector.load %arg4[%c0_11, %c0_12] : memref<32x40xbf16, #tpu.memory_space<vmem>>, vector<32x40xbf16>
      %cst_13 = arith.constant dense<0.000000e+00> : vector<256x40xf32>
      %20 = tpu.matmul %18, %19, %cst_13 {dimension_numbers = #tpu.dot_dimension_numbers<[1], [0], [0], [1], [0, 0, 1, 1], [], []>} : vector<256x32xbf16>, vector<32x40xbf16>, vector<256x40xf32> -> vector<256x40xf32>
      %21 = arith.truncf %20 : vector<256x40xf32> to vector<256x40xbf16>
      %c0_14 = arith.constant 0 : index
      %c0_15 = arith.constant 0 : index
      %22 = vector.load %arg5[%c0_14, %c0_15] : memref<256x40xbf16, #tpu.memory_space<vmem>>, vector<256x40xbf16>
      tpu.vector_store %arg5[%c0_14, %c0_15], %21 {strides = array<i32>} : memref<256x40xbf16, #tpu.memory_space<vmem>>, vector<256x40xbf16>,
    } else {
    }
    return
  }
  func.func @transform_0(%arg0: i32, %arg1: i32) -> (i32, i32) {
    %c0_i32 = arith.constant 0 : i32
    return %arg0, %arg1 : i32, i32
  }
  func.func @transform_1(%arg0: i32, %arg1: i32) -> (i32, i32) {
    %c0_i32 = arith.constant 0 : i32
    %c0_i32_0 = arith.constant 0 : i32
    %c0_i32_1 = arith.constant 0 : i32
    return %c0_i32, %c0_i32_0 : i32, i32
  }
  func.func @transform_2(%arg0: i32, %arg1: i32) -> (i32, i32) {
    %c0_i32 = arith.constant 0 : i32
    %c0_i32_0 = arith.constant 0 : i32
    %c0_i32_1 = arith.constant 0 : i32
    return %c0_i32, %c0_i32_0 : i32, i32
  }
  func.func @transform_3(%arg0: i32, %arg1: i32) -> (i32, i32) {
    %c0_i32 = arith.constant 0 : i32
    %c0_i32_0 = arith.constant 0 : i32
    return %arg0, %c0_i32 : i32, i32
  }
}

module attributes {stable_mosaic.version = 11 : i64} {
  func.func @_heads_kernel(%arg0: i32, %arg1: i32, %arg2: memref<256x256xbf16, #tpu.memory_space<vmem>>, %arg3: memref<768x40xbf16, #tpu.memory_space<vmem>>, %arg4: memref<256x40xf32, #tpu.memory_space<vmem>>, %arg5: memref<256x8xf32, #tpu.memory_space<vmem>>, %arg6: memref<256x8xf32, #tpu.memory_space<vmem>>) attributes {dimension_semantics = [#tpu.dimension_semantics<parallel>, #tpu.dimension_semantics<arbitrary>], iteration_bounds = array<i64: 3, 3>, scalar_prefetch = 0 : i64, scratch_operands = 0 : i64, tpu.core_type = #tpu.core_type<tc>, window_params = [{transform_indices = @transform_0, window_bounds = array<i64: 256, 256>}, {pipeline_mode = #tpu.pipeline_mode<synchronous>, transform_indices = @transform_1, window_bounds = array<i64: 768, 40>}, {transform_indices = @transform_2, window_bounds = array<i64: 256, 40>}, {transform_indices = @transform_3, window_bounds = array<i64: 256, 8>}, {transform_indices = @transform_4, window_bounds = array<i64: 256, 8>}]} {
    %c0_i32 = arith.constant 0 : i32
    %0 = arith.cmpi eq, %arg1, %c0_i32 : i32
    %1 = arith.extui %0 : i1 to i32
    %c0_i32_0 = arith.constant 0 : i32
    %2 = arith.cmpi ne, %1, %c0_i32_0 : i32
    scf.if %2 {
      %cst_8 = arith.constant 0.000000e+00 : f32
      %15 = vector.broadcast %cst_8 : f32 to vector<256x40xf32>
      %c0_9 = arith.constant 0 : index
      %c0_10 = arith.constant 0 : index
      %16 = vector.load %arg4[%c0_9, %c0_10] : memref<256x40xf32, #tpu.memory_space<vmem>>, vector<256x40xf32>
      tpu.vector_store %arg4[%c0_9, %c0_10], %15 {strides = array<i32>} : memref<256x40xf32, #tpu.memory_space<vmem>>, vector<256x40xf32>,
    } else {
    }
    %c256_i32 = arith.constant 256 : i32
    %3 = arith.muli %arg1, %c256_i32 : i32
    %4 = tpu.assume_multiple %3, 256 : i32
    %5 = arith.index_cast %4 : i32 to index
    %c0 = arith.constant 0 : index
    %6 = vector.load %arg3[%5, %c0] : memref<768x40xbf16, #tpu.memory_space<vmem>>, vector<256x40xbf16>
    %c0_1 = arith.constant 0 : index
    %c0_2 = arith.constant 0 : index
    %7 = vector.load %arg4[%c0_1, %c0_2] : memref<256x40xf32, #tpu.memory_space<vmem>>, vector<256x40xf32>
    %c0_3 = arith.constant 0 : index
    %c0_4 = arith.constant 0 : index
    %8 = vector.load %arg2[%c0_3, %c0_4] : memref<256x256xbf16, #tpu.memory_space<vmem>>, vector<256x256xbf16>
    %cst = arith.constant dense<0.000000e+00> : vector<256x40xf32>
    %9 = tpu.matmul %8, %6, %cst {dimension_numbers = #tpu.dot_dimension_numbers<[1], [0], [0], [1], [0, 0, 1, 1], [], []>} : vector<256x256xbf16>, vector<256x40xbf16>, vector<256x40xf32> -> vector<256x40xf32>
    %10 = arith.addf %7, %9 : vector<256x40xf32>
    %c0_5 = arith.constant 0 : index
    %c0_6 = arith.constant 0 : index
    %11 = vector.load %arg4[%c0_5, %c0_6] : memref<256x40xf32, #tpu.memory_space<vmem>>, vector<256x40xf32>
    tpu.vector_store %arg4[%c0_5, %c0_6], %10 {strides = array<i32>} : memref<256x40xf32, #tpu.memory_space<vmem>>, vector<256x40xf32>,
    %c2_i32 = arith.constant 2 : i32
    %12 = arith.cmpi eq, %arg1, %c2_i32 : i32
    %13 = arith.extui %12 : i1 to i32
    %c0_i32_7 = arith.constant 0 : i32
    %14 = arith.cmpi ne, %13, %c0_i32_7 : i32
    scf.if %14 {
      %c0_8 = arith.constant 0 : index
      %c32 = arith.constant 32 : index
      %15 = vector.load %arg4[%c0_8, %c32] : memref<256x40xf32, #tpu.memory_space<vmem>>, vector<256x8xf32>
      %cst_9 = arith.constant dense<0xFF800000> : vector<256xf32>
      %16 = vector.multi_reduction <maximumf>, %15, %cst_9 [1] : vector<256x8xf32> to vector<256xf32>
      %17 = vector.shape_cast %16 : vector<256xf32> to vector<256x1xf32>
      %18 = vector.broadcast %17 : vector<256x1xf32> to vector<256x8xf32>
      %19 = arith.subf %15, %18 : vector<256x8xf32>
      %20 = math.exp %19 : vector<256x8xf32>
      %cst_10 = arith.constant dense<0.000000e+00> : vector<256xf32>
      %21 = vector.multi_reduction <add>, %20, %cst_10 [1] : vector<256x8xf32> to vector<256xf32>
      %22 = vector.shape_cast %21 : vector<256xf32> to vector<256x1xf32>
      %23 = math.log %22 : vector<256x1xf32>
      %24 = vector.broadcast %23 : vector<256x1xf32> to vector<256x8xf32>
      %25 = arith.subf %19, %24 : vector<256x8xf32>
      %c0_11 = arith.constant 0 : index
      %c0_12 = arith.constant 0 : index
      %26 = vector.load %arg5[%c0_11, %c0_12] : memref<256x8xf32, #tpu.memory_space<vmem>>, vector<256x8xf32>
      tpu.vector_store %arg5[%c0_11, %c0_12], %25 {strides = array<i32>} : memref<256x8xf32, #tpu.memory_space<vmem>>, vector<256x8xf32>,
      %27 = math.exp %25 : vector<256x8xf32>
      %c0_13 = arith.constant 0 : index
      %c0_14 = arith.constant 0 : index
      %28 = vector.load %arg6[%c0_13, %c0_14] : memref<256x8xf32, #tpu.memory_space<vmem>>, vector<256x8xf32>
      tpu.vector_store %arg6[%c0_13, %c0_14], %27 {strides = array<i32>} : memref<256x8xf32, #tpu.memory_space<vmem>>, vector<256x8xf32>,
    } else {
    }
    return
  }
  func.func @transform_0(%arg0: i32, %arg1: i32) -> (i32, i32) {
    %c0_i32 = arith.constant 0 : i32
    return %arg0, %arg1 : i32, i32
  }
  func.func @transform_1(%arg0: i32, %arg1: i32) -> (i32, i32) {
    %c0_i32 = arith.constant 0 : i32
    %c0_i32_0 = arith.constant 0 : i32
    %c0_i32_1 = arith.constant 0 : i32
    return %c0_i32, %c0_i32_0 : i32, i32
  }
  func.func @transform_2(%arg0: i32, %arg1: i32) -> (i32, i32) {
    %c0_i32 = arith.constant 0 : i32
    %c0_i32_0 = arith.constant 0 : i32
    return %arg0, %c0_i32 : i32, i32
  }
  func.func @transform_3(%arg0: i32, %arg1: i32) -> (i32, i32) {
    %c0_i32 = arith.constant 0 : i32
    %c0_i32_0 = arith.constant 0 : i32
    return %arg0, %c0_i32 : i32, i32
  }
  func.func @transform_4(%arg0: i32, %arg1: i32) -> (i32, i32) {
    %c0_i32 = arith.constant 0 : i32
    %c0_i32_0 = arith.constant 0 : i32
    return %arg0, %c0_i32 : i32, i32
  }
}

module attributes {stable_mosaic.version = 11 : i64} {
  func.func @_adjrec_kernel(%arg0: i32, %arg1: i32, %arg2: memref<256x16xf32, #tpu.memory_space<vmem>>, %arg3: memref<768x16xf32, #tpu.memory_space<vmem>>, %arg4: memref<256x256xf32, #tpu.memory_space<vmem>>) attributes {dimension_semantics = [#tpu.dimension_semantics<parallel>, #tpu.dimension_semantics<parallel>], iteration_bounds = array<i64: 3, 3>, scalar_prefetch = 0 : i64, scratch_operands = 0 : i64, tpu.core_type = #tpu.core_type<tc>, window_params = [{transform_indices = @transform_0, window_bounds = array<i64: 256, 16>}, {pipeline_mode = #tpu.pipeline_mode<synchronous>, transform_indices = @transform_1, window_bounds = array<i64: 768, 16>}, {transform_indices = @transform_2, window_bounds = array<i64: 256, 256>}]} {
    %c256_i32 = arith.constant 256 : i32
    %0 = arith.muli %arg1, %c256_i32 : i32
    %1 = tpu.assume_multiple %0, 256 : i32
    %2 = arith.index_cast %1 : i32 to index
    %c0 = arith.constant 0 : index
    %3 = vector.load %arg3[%2, %c0] : memref<768x16xf32, #tpu.memory_space<vmem>>, vector<256x16xf32>
    %c0_0 = arith.constant 0 : index
    %c0_1 = arith.constant 0 : index
    %4 = vector.load %arg2[%c0_0, %c0_1] : memref<256x16xf32, #tpu.memory_space<vmem>>, vector<256x16xf32>
    %cst = arith.constant dense<0.000000e+00> : vector<256x256xf32>
    %5 = tpu.matmul %4, %3, %cst {dimension_numbers = #tpu.dot_dimension_numbers<[1], [1], [0], [0], [0, 0, 1, 0], [], []>} : vector<256x16xf32>, vector<256x16xf32>, vector<256x256xf32> -> vector<256x256xf32>
    %c0_2 = arith.constant 0 : index
    %c0_3 = arith.constant 0 : index
    %6 = vector.load %arg4[%c0_2, %c0_3] : memref<256x256xf32, #tpu.memory_space<vmem>>, vector<256x256xf32>
    tpu.vector_store %arg4[%c0_2, %c0_3], %5 {strides = array<i32>} : memref<256x256xf32, #tpu.memory_space<vmem>>, vector<256x256xf32>,
    return
  }
  func.func @transform_0(%arg0: i32, %arg1: i32) -> (i32, i32) {
    %c0_i32 = arith.constant 0 : i32
    %c0_i32_0 = arith.constant 0 : i32
    return %arg0, %c0_i32 : i32, i32
  }
  func.func @transform_1(%arg0: i32, %arg1: i32) -> (i32, i32) {
    %c0_i32 = arith.constant 0 : i32
    %c0_i32_0 = arith.constant 0 : i32
    %c0_i32_1 = arith.constant 0 : i32
    return %c0_i32, %c0_i32_0 : i32, i32
  }
  func.func @transform_2(%arg0: i32, %arg1: i32) -> (i32, i32) {
    %c0_i32 = arith.constant 0 : i32
    return %arg0, %arg1 : i32, i32
  }
}

</mosaic_0001>

<llo_original>
// kernel: cdrs_forward.4
$region0: #{cdrs_forward.4}
  #allocation0 [shape = 'u32[]', space=smem, size = 0x4, offset = 0x4, fixed_abs, tag = 'smem constant byte address 0x4 - core index']
  #allocation1 [shape = 'u32[144,128]{1,0:T(1,128)}', space=vmem, size = 0x12000, scoped, tag = 'internal scratch']
  %s0 = inlined_call_operand.vmem [shape: f32[768,64], index: 0, kind: input, shape index: {}]
  %s1 = inlined_call_operand.vmem [shape: f32[64,32], index: 1, kind: input, shape index: {}]
  %s2 = inlined_call_operand.vmem [shape: bf16[768,32], index: 2, kind: output, shape index: {}]
  %s3 = sld [smem:[#allocation0]]
  $region41: #{cdrs_forward.4} parent=0
    _
  %s5 = ssub.s32 1, %s3
  %s6 = scalar_select 0, %s5, %s3
  loop: start=0, step=1, limit=5
  $region2: #{cdrs_forward.4} parent=0 // loop_pre_header
    _
  $region3: #{cdrs_forward.4} parent=0 // loop_header
    %s8 = sphi 0, %s12
    %p9 = scmp.ge.s32.totalorder %s8, 5
    %s18 = sphi 0, %s20
    %s21 = sphi 0, %s18
    %s22 = sphi 0, %s21
    %s38 = sphi 0, %s22
    %s42 = sphi 0, %s42
    %s44 = sphi 0, %s42
    %s45 = sphi 0, %s44
    %s59 = sphi 0, %s45
    %s65 = sphi 0, %s67
    %s68 = sphi 0, %s65
    %s69 = sphi 0, %s68
    %s85 = sphi 0, %s69
  $region4: #{cdrs_forward.4} parent=0 // loop_header_branch
    %11 = sbr.rel (%p9) target = $region8
  $region5: #{cdrs_forward.4} parent=0 // loop_body
    %s13 = ssub.s32 %s8, 1
    %s14 = ssub.s32 %s8, 2
    %s15 = sadd.s32 %s8, 1
    %s16 = ssub.s32 %s8, %s15
    %p17 = scmp.eq.s32.totalorder %s16, 0
    %s19 = sadd.s32 %s18, 1
    %s20 = scalar_select %p17, %s18, %s19
    %p23 = pneg %p17
    %p24 = scmp.eq.s32.totalorder %s8, 2
    %p25 = por %p23, %p24
    %p26 = scmp.ne.s32.totalorder %s18, %s21
    %p27 = scmp.eq.s32.totalorder %s8, 0
    %p28 = por %p26, %p27
    %p29 = scmp.ne.s32.totalorder %s18, %s21
    %p30 = scmp.eq.s32.totalorder %s13, 2
    %p31 = por %p29, %p30
    %p32 = scmp.ne.s32.totalorder %s21, %s22
    %p33 = scmp.eq.s32.totalorder %s13, 0
    %p34 = por %p32, %p33
    %p35 = scmp.ne.s32.totalorder %s21, %s22
    %p36 = scmp.eq.s32.totalorder %s14, 2
    %p37 = por %p35, %p36
    %p39 = scmp.ne.s32.totalorder %s22, %s38
    %p40 = scmp.eq.s32.totalorder %s14, 0
    %p41 = por %p39, %p40
    %s43 = sadd.s32 %s42, 1
    %p46 = scmp.eq.s32.totalorder %s8, 2
    %p47 = scmp.ne.s32.totalorder %s42, %s44
    %p48 = scmp.eq.s32.totalorder %s8, 0
    %p49 = por %p47, %p48
    %p50 = scmp.ne.s32.totalorder %s42, %s44
    %p51 = scmp.eq.s32.totalorder %s13, 2
    %p52 = por %p50, %p51
    %p53 = scmp.ne.s32.totalorder %s44, %s45
    %p54 = scmp.eq.s32.totalorder %s13, 0
    %p55 = por %p53, %p54
    %p56 = scmp.ne.s32.totalorder %s44, %s45
    %p57 = scmp.eq.s32.totalorder %s14, 2
    %p58 = por %p56, %p57
    %p60 = scmp.ne.s32.totalorder %s45, %s59
    %p61 = scmp.eq.s32.totalorder %s14, 0
    %p62 = por %p60, %p61
    %s63 = ssub.s32 %s8, %s15
    %p64 = scmp.eq.s32.totalorder %s63, 0
    %s66 = sadd.s32 %s65, 1
    %s67 = scalar_select %p64, %s65, %s66
    %p70 = pneg %p64
    %p71 = scmp.eq.s32.totalorder %s8, 2
    %p72 = por %p70, %p71
    %p73 = scmp.ne.s32.totalorder %s65, %s68
    %p74 = scmp.eq.s32.totalorder %s8, 0
    %p75 = por %p73, %p74
    %p76 = scmp.ne.s32.totalorder %s65, %s68
    %p77 = scmp.eq.s32.totalorder %s13, 2
    %p78 = por %p76, %p77
    %p79 = scmp.ne.s32.totalorder %s68, %s69
    %p80 = scmp.eq.s32.totalorder %s13, 0
    %p81 = por %p79, %p80
    %p82 = scmp.ne.s32.totalorder %s68, %s69
    %p83 = scmp.eq.s32.totalorder %s14, 2
    %p84 = por %p82, %p83
    %p86 = scmp.ne.s32.totalorder %s69, %s85
    %p87 = scmp.eq.s32.totalorder %s14, 0
    %p88 = por %p86, %p87
    %p89 = scmp.le.s32.totalorder 1, %s8
    %p90 = scmp.lt.s32.totalorder %s8, 4
    %p91 = pnand %p89, %p90
    %p92 = pneg %p91
    // Predicated region
    $region9: #{cdrs_forward.4} parent=5 // pred_check
      _
    $region10: #{cdrs_forward.4} parent=5 // pred_check_branch
      %94 = sbr.rel (%p91) target = $region12
    $region11: #{cdrs_forward.4} parent=5 // pred_region
      %s95 = ssub.s32 %s8, 1
      // Predicated region
      $region13: #{cdrs_forward.4} parent=11 // pred_check
        %p96 = pneg %p55
      $region14: #{cdrs_forward.4} parent=11 // pred_check_branch
        %98 = sbr.rel (%p96) target = $region16
      $region15: #{cdrs_forward.4} parent=11 // pred_region
        _
      $region16: #{cdrs_forward.4} parent=11 // pred_fallthru
        _
    $region12: #{cdrs_forward.4} parent=5 // pred_fallthru
      _
    %p99 = scmp.lt.s32.totalorder %s8, 3
    // Predicated region
    $region17: #{cdrs_forward.4} parent=5 // pred_check
      %p100 = pneg %p99
    $region18: #{cdrs_forward.4} parent=5 // pred_check_branch
      %102 = sbr.rel (%p100) target = $region20
    $region19: #{cdrs_forward.4} parent=5 // pred_region
      // Predicated region
      $region21: #{cdrs_forward.4} parent=19 // pred_check
        %p103 = pneg %p28
      $region22: #{cdrs_forward.4} parent=19 // pred_check_branch
        %105 = sbr.rel (%p103) target = $region24
      $region23: #{cdrs_forward.4} parent=19 // pred_region
        %s106 = smul.u32 32, %s8
        %p107 = scmp.lt.s32.totalorder %s106, 95
        %s108 = scalar_select %p107, %s106, 95
        %s109 = smul.addr %s108, 8
        %s110 = scalar_lea.vmem %s0, %s109
        %s111 = smul.u32 32, %s8
      $region24: #{cdrs_forward.4} parent=19 // pred_fallthru
        _
    $region20: #{cdrs_forward.4} parent=5 // pred_fallthru
      _
    %p112 = scmp.le.s32.totalorder 1, %s8
    %p113 = scmp.lt.s32.totalorder %s8, 4
    %p114 = pnand %p112, %p113
    %p115 = pneg %p114
    // Predicated region
    $region25: #{cdrs_forward.4} parent=5 // pred_check
      _
    $region26: #{cdrs_forward.4} parent=5 // pred_check_branch
      %117 = sbr.rel (%p114) target = $region28
    $region27: #{cdrs_forward.4} parent=5 // pred_region
      %s118 = ssub.s32 %s8, 1
      %s119 = smul.u32 32, %s13
      %p120 = scmp.lt.s32.totalorder %s119, 95
      %s121 = scalar_select %p120, %s119, 95
      %s122 = smul.addr %s121, 8
      %s123 = scalar_lea.vmem %s0, %s122
      %p124 = pneg %p34
      %p125 = pneg %p31
      %p126 = pneg %p55
      %p127 = pneg %p52
      %p128 = pneg %p81
      %p129 = pneg %p78
      %s130 = smul.u32 32, %s13
      %p131 = scmp.lt.s32.totalorder %s130, 95
      %s132 = scalar_select %p131, %s130, 95
      %s133 = smul.addr %s132, 4
      %s134 = scalar_lea.vmem %s2, %s133
      %s135 = smul.u32 32, %s13
      %p136 = scmp.lt.s32.totalorder %s135, 95
      %s137 = scalar_select %p136, %s135, 95
      %s138 = smul.addr %s137, 8
      %s139 = scalar_lea.vmem %s0, %s138
      %s140 = smul.u32 32, %s13
      %s141 = smul.u32 32, %s13
      %p142 = scmp.lt.s32.totalorder %s141, 95
      %s143 = scalar_select %p142, %s141, 95
      %s144 = smul.addr %s143, 4
      %s145 = scalar_lea.vmem %s2, %s144
      %s146 = smul.u32 32, %s13
      %v147 = vld [vmem:[%s139] sm:$0xff]
      %v148 = vld [vmem:[%s139 + $0x8] sm:$0xff]
      %v149 = vld [vmem:[%s139 + $0x10] sm:$0xff]
      %v150 = vld [vmem:[%s139 + $0x18] sm:$0xff]
      %v151 = vld [vmem:[%s139 + $0x20] sm:$0xff]
      %v152 = vld [vmem:[%s139 + $0x28] sm:$0xff]
      %v153 = vld [vmem:[%s139 + $0x30] sm:$0xff]
      %v154 = vld [vmem:[%s139 + $0x38] sm:$0xff]
      %v155 = vld [vmem:[%s139 + $0x40] sm:$0xff]
      %v156 = vld [vmem:[%s139 + $0x48] sm:$0xff]
      %v157 = vld [vmem:[%s139 + $0x50] sm:$0xff]
      %v158 = vld [vmem:[%s139 + $0x58] sm:$0xff]
      %v159 = vld [vmem:[%s139 + $0x60] sm:$0xff]
      %v160 = vld [vmem:[%s139 + $0x68] sm:$0xff]
      %v161 = vld [vmem:[%s139 + $0x70] sm:$0xff]
      %v162 = vld [vmem:[%s139 + $0x78] sm:$0xff]
      %v163 = vld [vmem:[%s139 + $0x80] sm:$0xff]
      %v164 = vld [vmem:[%s139 + $0x88] sm:$0xff]
      %v165 = vld [vmem:[%s139 + $0x90] sm:$0xff]
      %v166 = vld [vmem:[%s139 + $0x98] sm:$0xff]
      %v167 = vld [vmem:[%s139 + $0xa0] sm:$0xff]
      %v168 = vld [vmem:[%s139 + $0xa8] sm:$0xff]
      %v169 = vld [vmem:[%s139 + $0xb0] sm:$0xff]
      %v170 = vld [vmem:[%s139 + $0xb8] sm:$0xff]
      %v171 = vld [vmem:[%s139 + $0xc0] sm:$0xff]
      %v172 = vld [vmem:[%s139 + $0xc8] sm:$0xff]
      %v173 = vld [vmem:[%s139 + $0xd0] sm:$0xff]
      %v174 = vld [vmem:[%s139 + $0xd8] sm:$0xff]
      %v175 = vld [vmem:[%s139 + $0xe0] sm:$0xff]
      %v176 = vld [vmem:[%s139 + $0xe8] sm:$0xff]
      %v177 = vld [vmem:[%s139 + $0xf0] sm:$0xff]
      %v178 = vld [vmem:[%s139 + $0xf8] sm:$0xff]
      %v179 = vld [vmem:[%s1] sm:$0xff]
      %v180 = vld [vmem:[%s1 + $0x8] sm:$0xff]
      %v181 = vld [vmem:[%s1 + $0x10] sm:$0xff]
      %v182 = vld [vmem:[%s1 + $0x18] sm:$0xff]
      %v183 = vld [vmem:[%s1 + $0x20] sm:$0xff]
      %v184 = vld [vmem:[%s1 + $0x28] sm:$0xff]
      %v185 = vld [vmem:[%s1 + $0x30] sm:$0xff]
      %v186 = vld [vmem:[%s1 + $0x38] sm:$0xff]
      %vm187 = vcmask 523264
      %v189 = vsel %vm187, %v147, 0
      %v192 = vsel %vm187, %v148, 0
      %v195 = vsel %vm187, %v149, 0
      %v198 = vsel %vm187, %v150, 0
      %v201 = vsel %vm187, %v151, 0
      %v204 = vsel %vm187, %v152, 0
      %v207 = vsel %vm187, %v153, 0
      %v210 = vsel %vm187, %v154, 0
      %v213 = vsel %vm187, %v155, 0
      %v216 = vsel %vm187, %v156, 0
      %v219 = vsel %vm187, %v157, 0
      %v222 = vsel %vm187, %v158, 0
      %v225 = vsel %vm187, %v159, 0
      %v228 = vsel %vm187, %v160, 0
      %v231 = vsel %vm187, %v161, 0
      %v234 = vsel %vm187, %v162, 0
      %v237 = vsel %vm187, %v163, 0
      %v240 = vsel %vm187, %v164, 0
      %v243 = vsel %vm187, %v165, 0
      %v246 = vsel %vm187, %v166, 0
      %v249 = vsel %vm187, %v167, 0
      %v252 = vsel %vm187, %v168, 0
      %v255 = vsel %vm187, %v169, 0
      %v258 = vsel %vm187, %v170, 0
      %v261 = vsel %vm187, %v171, 0
      %v264 = vsel %vm187, %v172, 0
      %v267 = vsel %vm187, %v173, 0
      %v270 = vsel %vm187, %v174, 0
      %v273 = vsel %vm187, %v175, 0
      %v276 = vsel %vm187, %v176, 0
      %v279 = vsel %vm187, %v177, 0
      %v282 = vsel %vm187, %v178, 0
      %284 = vmatprep.subr.mxu0 0.0
      %285 = vmatpush1.msra.mxu0 %v179
      %286 = vmatprep.subr.mxu0 0.0
      %287 = vmatpush1.msra.mxu0 %v180
      %288 = vmatprep.subr.mxu0 0.0
      %289 = vmatpush1.msra.mxu0 %v181
      %290 = vmatprep.subr.mxu0 0.0
      %291 = vmatpush1.msra.mxu0 %v182
      %292 = vmatprep.subr.mxu0 0.0
      %293 = vmatpush1.msra.mxu0 %v183
      %294 = vmatprep.subr.mxu0 0.0
      %295 = vmatpush1.msra.mxu0 %v184
      %296 = vmatprep.subr.mxu0 0.0
      %297 = vmatpush1.msra.mxu0 %v185
      %298 = vmatprep.subr.mxu0 0.0
      %299 = vmatpush1.msra.mxu0 %v186
      %300 = vmatprep.subr.mxu0 0.0
      %301 = vmatpush1.msra.mxu0 0.0
      %302 = vmatprep.subr.mxu0 0.0
      %303 = vmatpush1.msra.mxu0 0.0
      %304 = vmatprep.subr.mxu0 0.0
      %305 = vmatpush1.msra.mxu0 0.0
      %306 = vmatprep.subr.mxu0 0.0
      %307 = vmatpush1.msra.mxu0 0.0
      %308 = vmatprep.subr.mxu0 0.0
      %309 = vmatpush1.msra.mxu0 0.0
      %310 = vmatprep.subr.mxu0 0.0
      %311 = vmatpush1.msra.mxu0 0.0
      %312 = vmatprep.subr.mxu0 0.0
      %313 = vmatpush1.msra.mxu0 0.0
      %314 = vmatprep.subr.mxu0 0.0
      %315 = vmatpush1.msra.mxu0 0.0
      %316 = vmatprep.subr.mxu0 0.0
      %317 = vmatpush1.msra.mxu0 0.0
      %318 = vmatprep.subr.mxu0 0.0
      %319 = vmatpush1.msra.mxu0 0.0
      %320 = vmatprep.subr.mxu0 0.0
      %321 = vmatpush1.msra.mxu0 0.0
      %322 = vmatprep.subr.mxu0 0.0
      %323 = vmatpush1.msra.mxu0 0.0
      %324 = vmatprep.subr.mxu0 0.0
      %325 = vmatpush1.msra.mxu0 0.0
      %326 = vmatprep.subr.mxu0 0.0
      %327 = vmatpush1.msra.mxu0 0.0
      %328 = vmatprep.subr.mxu0 0.0
      %329 = vmatpush1.msra.mxu0 0.0
      %330 = vmatprep.subr.mxu0 0.0
      %331 = vmatpush1.msra.mxu0 0.0
      %332 = vmatprep.subr.mxu0 0.0
      %333 = vmatpush1.msra.mxu0 0.0
      %334 = vmatprep.subr.mxu0 0.0
      %335 = vmatpush1.msra.mxu0 0.0
      %336 = vmatprep.subr.mxu0 0.0
      %337 = vmatpush1.msra.mxu0 0.0
      %338 = vmatprep.subr.mxu0 0.0
      %339 = vmatpush1.msra.mxu0 0.0
      %340 = vmatprep.subr.mxu0 0.0
      %341 = vmatpush1.msra.mxu0 0.0
      %342 = vmatprep.subr.mxu0 0.0
      %343 = vmatpush1.msra.mxu0 0.0
      %344 = vmatprep.subr.mxu0 0.0
      %345 = vmatpush1.msra.mxu0 0.0
      %346 = vmatprep.subr.mxu0 0.0
      %347 = vmatpush1.msra.mxu0 0.0
      %348 = vmatprep.mubr.f32.mxu0 0.0
      %349 = vmatmul.mubr.f32.gmra.mrb[0].mxu0 %v189
      %v350 = vpop.f32.mrb[0].mxu0
      %v351 = vadd.f32 0.0, %v350
      %v352 = vpop.f32.mrb[0].mxu0
      %353 = vmatprep.mubr.f32.mxu0 0.0
      %354 = vmatmul.mubr.f32.gmra.mrb[0].mxu0 %v192
      %v355 = vpop.f32.mrb[0].mxu0
      %v356 = vadd.f32 0.0, %v355
      %v357 = vpop.f32.mrb[0].mxu0
      %358 = vmatprep.mubr.f32.mxu0 0.0
      %359 = vmatmul.mubr.f32.gmra.mrb[0].mxu0 %v195
      %v360 = vpop.f32.mrb[0].mxu0
      %v361 = vadd.f32 0.0, %v360
      %v362 = vpop.f32.mrb[0].mxu0
      %363 = vmatprep.mubr.f32.mxu0 0.0
      %364 = vmatmul.mubr.f32.gmra.mrb[0].mxu0 %v198
      %v365 = vpop.f32.mrb[0].mxu0
      %v366 = vadd.f32 0.0, %v365
      %v367 = vpop.f32.mrb[0].mxu0
      %368 = vmatprep.mubr.f32.mxu0 0.0
      %369 = vmatmul.mubr.f32.gmra.mrb[0].mxu0 %v201
      %v370 = vpop.f32.mrb[0].mxu0
      %v371 = vadd.f32 0.0, %v370
      %v372 = vpop.f32.mrb[0].mxu0
      %373 = vmatprep.mubr.f32.mxu0 0.0
      %374 = vmatmul.mubr.f32.gmra.mrb[0].mxu0 %v204
      %v375 = vpop.f32.mrb[0].mxu0
      %v376 = vadd.f32 0.0, %v375
      %v377 = vpop.f32.mrb[0].mxu0
      %378 = vmatprep.mubr.f32.mxu0 0.0
      %379 = vmatmul.mubr.f32.gmra.mrb[0].mxu0 %v207
      %v380 = vpop.f32.mrb[0].mxu0
      %v381 = vadd.f32 0.0, %v380
      %v382 = vpop.f32.mrb[0].mxu0
      %383 = vmatprep.mubr.f32.mxu0 0.0
      %384 = vmatmul.mubr.f32.gmra.mrb[0].mxu0 %v210
      %v385 = vpop.f32.mrb[0].mxu0
      %v386 = vadd.f32 0.0, %v385
      %v387 = vpop.f32.mrb[0].mxu0
      %388 = vmatprep.mubr.f32.mxu0 0.0
      %389 = vmatmul.mubr.f32.gmra.mrb[0].mxu0 %v213
      %v390 = vpop.f32.mrb[0].mxu0
      %v391 = vadd.f32 0.0, %v390
      %v392 = vpop.f32.mrb[0].mxu0
      %393 = vmatprep.mubr.f32.mxu0 0.0
      %394 = vmatmul.mubr.f32.gmra.mrb[0].mxu0 %v216
      %v395 = vpop.f32.mrb[0].mxu0
      %v396 = vadd.f32 0.0, %v395
      %v397 = vpop.f32.mrb[0].mxu0
      %398 = vmatprep.mubr.f32.mxu0 0.0
      %399 = vmatmul.mubr.f32.gmra.mrb[0].mxu0 %v219
      %v400 = vpop.f32.mrb[0].mxu0
      %v401 = vadd.f32 0.0, %v400
      %v402 = vpop.f32.mrb[0].mxu0
      %403 = vmatprep.mubr.f32.mxu0 0.0
      %404 = vmatmul.mubr.f32.gmra.mrb[0].mxu0 %v222
      %v405 = vpop.f32.mrb[0].mxu0
      %v406 = vadd.f32 0.0, %v405
      %v407 = vpop.f32.mrb[0].mxu0
      %408 = vmatprep.mubr.f32.mxu0 0.0
      %409 = vmatmul.mubr.f32.gmra.mrb[0].mxu0 %v225
      %v410 = vpop.f32.mrb[0].mxu0
      %v411 = vadd.f32 0.0, %v410
      %v412 = vpop.f32.mrb[0].mxu0
      %413 = vmatprep.mubr.f32.mxu0 0.0
      %414 = vmatmul.mubr.f32.gmra.mrb[0].mxu0 %v228
      %v415 = vpop.f32.mrb[0].mxu0
      %v416 = vadd.f32 0.0, %v415
      %v417 = vpop.f32.mrb[0].mxu0
      %418 = vmatprep.mubr.f32.mxu0 0.0
      %419 = vmatmul.mubr.f32.gmra.mrb[0].mxu0 %v231
      %v420 = vpop.f32.mrb[0].mxu0
      %v421 = vadd.f32 0.0, %v420
      %v422 = vpop.f32.mrb[0].mxu0
      %423 = vmatprep.mubr.f32.mxu0 0.0
      %424 = vmatmul.mubr.f32.gmra.mrb[0].mxu0 %v234
      %v425 = vpop.f32.mrb[0].mxu0
      %v426 = vadd.f32 0.0, %v425
      %v427 = vpop.f32.mrb[0].mxu0
      %428 = vmatprep.mubr.f32.mxu0 0.0
      %429 = vmatmul.mubr.f32.gmra.mrb[0].mxu0 %v237
      %v430 = vpop.f32.mrb[0].mxu0
      %v431 = vadd.f32 0.0, %v430
      %v432 = vpop.f32.mrb[0].mxu0
      %433 = vmatprep.mubr.f32.mxu0 0.0
      %434 = vmatmul.mubr.f32.gmra.mrb[0].mxu0 %v240
      %v435 = vpop.f32.mrb[0].mxu0
      %v436 = vadd.f32 0.0, %v435
      %v437 = vpop.f32.mrb[0].mxu0
      %438 = vmatprep.mubr.f32.mxu0 0.0
      %439 = vmatmul.mubr.f32.gmra.mrb[0].mxu0 %v243
      %v440 = vpop.f32.mrb[0].mxu0
      %v441 = vadd.f32 0.0, %v440
      %v442 = vpop.f32.mrb[0].mxu0
      %443 = vmatprep.mubr.f32.mxu0 0.0
      %444 = vmatmul.mubr.f32.gmra.mrb[0].mxu0 %v246
      %v445 = vpop.f32.mrb[0].mxu0
      %v446 = vadd.f32 0.0, %v445
      %v447 = vpop.f32.mrb[0].mxu0
      %448 = vmatprep.mubr.f32.mxu0 0.0
      %449 = vmatmul.mubr.f32.gmra.mrb[0].mxu0 %v249
      %v450 = vpop.f32.mrb[0].mxu0
      %v451 = vadd.f32 0.0, %v450
      %v452 = vpop.f32.mrb[0].mxu0
      %453 = vmatprep.mubr.f32.mxu0 0.0
      %454 = vmatmul.mubr.f32.gmra.mrb[0].mxu0 %v252
      %v455 = vpop.f32.mrb[0].mxu0
      %v456 = vadd.f32 0.0, %v455
      %v457 = vpop.f32.mrb[0].mxu0
      %458 = vmatprep.mubr.f32.mxu0 0.0
      %459 = vmatmul.mubr.f32.gmra.mrb[0].mxu0 %v255
      %v460 = vpop.f32.mrb[0].mxu0
      %v461 = vadd.f32 0.0, %v460
      %v462 = vpop.f32.mrb[0].mxu0
      %463 = vmatprep.mubr.f32.mxu0 0.0
      %464 = vmatmul.mubr.f32.gmra.mrb[0].mxu0 %v258
      %v465 = vpop.f32.mrb[0].mxu0
      %v466 = vadd.f32 0.0, %v465
      %v467 = vpop.f32.mrb[0].mxu0
      %468 = vmatprep.mubr.f32.mxu0 0.0
      %469 = vmatmul.mubr.f32.gmra.mrb[0].mxu0 %v261
      %v470 = vpop.f32.mrb[0].mxu0
      %v471 = vadd.f32 0.0, %v470
      %v472 = vpop.f32.mrb[0].mxu0
      %473 = vmatprep.mubr.f32.mxu0 0.0
      %474 = vmatmul.mubr.f32.gmra.mrb[0].mxu0 %v264
      %v475 = vpop.f32.mrb[0].mxu0
      %v476 = vadd.f32 0.0, %v475
      %v477 = vpop.f32.mrb[0].mxu0
      %478 = vmatprep.mubr.f32.mxu0 0.0
      %479 = vmatmul.mubr.f32.gmra.mrb[0].mxu0 %v267
      %v480 = vpop.f32.mrb[0].mxu0
      %v481 = vadd.f32 0.0, %v480
      %v482 = vpop.f32.mrb[0].mxu0
      %483 = vmatprep.mubr.f32.mxu0 0.0
      %484 = vmatmul.mubr.f32.gmra.mrb[0].mxu0 %v270
      %v485 = vpop.f32.mrb[0].mxu0
      %v486 = vadd.f32 0.0, %v485
      %v487 = vpop.f32.mrb[0].mxu0
      %488 = vmatprep.mubr.f32.mxu0 0.0
      %489 = vmatmul.mubr.f32.gmra.mrb[0].mxu0 %v273
      %v490 = vpop.f32.mrb[0].mxu0
      %v491 = vadd.f32 0.0, %v490
      %v492 = vpop.f32.mrb[0].mxu0
      %493 = vmatprep.mubr.f32.mxu0 0.0
      %494 = vmatmul.mubr.f32.gmra.mrb[0].mxu0 %v276
      %v495 = vpop.f32.mrb[0].mxu0
      %v496 = vadd.f32 0.0, %v495
      %v497 = vpop.f32.mrb[0].mxu0
      %498 = vmatprep.mubr.f32.mxu0 0.0
      %499 = vmatmul.mubr.f32.gmra.mrb[0].mxu0 %v279
      %v500 = vpop.f32.mrb[0].mxu0
      %v501 = vadd.f32 0.0, %v500
      %v502 = vpop.f32.mrb[0].mxu0
      %503 = vmatprep.mubr.f32.mxu0 0.0
      %504 = vmatmul.mubr.f32.gmra.mrb[0].mxu0 %v282
      %v505 = vpop.f32.mrb[0].mxu0
      %v506 = vadd.f32 0.0, %v505
      %v507 = vpop.f32.mrb[0].mxu0
      %508 = vdwg.mxu0
      %v509 = vpack.c.bf16 %v356, %v351
      %v510 = vpack.c.bf16 %v366, %v361
      %v511 = vpack.c.bf16 %v376, %v371
      %v512 = vpack.c.bf16 %v386, %v381
      %v513 = vpack.c.bf16 %v396, %v391
      %v514 = vpack.c.bf16 %v406, %v401
      %v515 = vpack.c.bf16 %v416, %v411
      %v516 = vpack.c.bf16 %v426, %v421
      %v517 = vpack.c.bf16 %v436, %v431
      %v518 = vpack.c.bf16 %v446, %v441
      %v519 = vpack.c.bf16 %v456, %v451
      %v520 = vpack.c.bf16 %v466, %v461
      %v521 = vpack.c.bf16 %v476, %v471
      %v522 = vpack.c.bf16 %v486, %v481
      %v523 = vpack.c.bf16 %v496, %v491
      %v524 = vpack.c.bf16 %v506, %v501
      %v541 = vunpack.c.l.b16 %v509
      %v542 = vunpack.c.h.b16 %v509
      %v543 = vunpack.c.l.b16 %v510
      %v544 = vunpack.c.h.b16 %v510
      %v545 = vunpack.c.l.b16 %v511
      %v546 = vunpack.c.h.b16 %v511
      %v547 = vunpack.c.l.b16 %v512
      %v548 = vunpack.c.h.b16 %v512
      %v549 = vunpack.c.l.b16 %v513
      %v550 = vunpack.c.h.b16 %v513
      %v551 = vunpack.c.l.b16 %v514
      %v552 = vunpack.c.h.b16 %v514
      %v553 = vunpack.c.l.b16 %v515
      %v554 = vunpack.c.h.b16 %v515
      %v555 = vunpack.c.l.b16 %v516
      %v556 = vunpack.c.h.b16 %v516
      %v557 = vunpack.c.l.b16 %v517
      %v558 = vunpack.c.h.b16 %v517
      %v559 = vunpack.c.l.b16 %v518
      %v560 = vunpack.c.h.b16 %v518
      %v561 = vunpack.c.l.b16 %v519
      %v562 = vunpack.c.h.b16 %v519
      %v563 = vunpack.c.l.b16 %v520
      %v564 = vunpack.c.h.b16 %v520
      %v565 = vunpack.c.l.b16 %v521
      %v566 = vunpack.c.h.b16 %v521
      %v567 = vunpack.c.l.b16 %v522
      %v568 = vunpack.c.h.b16 %v522
      %v569 = vunpack.c.l.b16 %v523
      %v570 = vunpack.c.h.b16 %v523
      %v571 = vunpack.c.l.b16 %v524
      %v572 = vunpack.c.h.b16 %v524
      %v573 = vpack.c.b16 %v541, %v541
      %v574 = vpack.c.b16 %v542, %v542
      %v575 = vpack.c.b16 %v543, %v543
      %v576 = vpack.c.b16 %v544, %v544
      %v577 = vpack.c.b16 %v545, %v545
      %v578 = vpack.c.b16 %v546, %v546
      %v579 = vpack.c.b16 %v547, %v547
      %v580 = vpack.c.b16 %v548, %v548
      %v581 = vpack.c.b16 %v549, %v549
      %v582 = vpack.c.b16 %v550, %v550
      %v583 = vpack.c.b16 %v551, %v551
      %v584 = vpack.c.b16 %v552, %v552
      %v585 = vpack.c.b16 %v553, %v553
      %v586 = vpack.c.b16 %v554, %v554
      %v587 = vpack.c.b16 %v555, %v555
      %v588 = vpack.c.b16 %v556, %v556
      %v589 = vpack.c.b16 %v557, %v557
      %v590 = vpack.c.b16 %v558, %v558
      %v591 = vpack.c.b16 %v559, %v559
      %v592 = vpack.c.b16 %v560, %v560
      %v593 = vpack.c.b16 %v561, %v561
      %v594 = vpack.c.b16 %v562, %v562
      %v595 = vpack.c.b16 %v563, %v563
      %v596 = vpack.c.b16 %v564, %v564
      %v597 = vpack.c.b16 %v565, %v565
      %v598 = vpack.c.b16 %v566, %v566
      %v599 = vpack.c.b16 %v567, %v567
      %v600 = vpack.c.b16 %v568, %v568
      %v601 = vpack.c.b16 %v569, %v569
      %v602 = vpack.c.b16 %v570, %v570
      %v603 = vpack.c.b16 %v571, %v571
      %v604 = vpack.c.b16 %v572, %v572
      %vm637 = vcmask 257024
      %638 = vst.msk [vmem:[%s145] sm:$0xf] %vm637, %v573
      %639 = vst.msk [vmem:[%s145 + $0x4] sm:$0xf] %vm637, %v574
      %640 = vst.msk [vmem:[%s145 + $0x8] sm:$0xf] %vm637, %v575
      %641 = vst.msk [vmem:[%s145 + $0xc] sm:$0xf] %vm637, %v576
      %642 = vst.msk [vmem:[%s145 + $0x10] sm:$0xf] %vm637, %v577
      %643 = vst.msk [vmem:[%s145 + $0x14] sm:$0xf] %vm637, %v578
      %644 = vst.msk [vmem:[%s145 + $0x18] sm:$0xf] %vm637, %v579
      %645 = vst.msk [vmem:[%s145 + $0x1c] sm:$0xf] %vm637, %v580
      %646 = vst.msk [vmem:[%s145 + $0x20] sm:$0xf] %vm637, %v581
      %647 = vst.msk [vmem:[%s145 + $0x24] sm:$0xf] %vm637, %v582
      %648 = vst.msk [vmem:[%s145 + $0x28] sm:$0xf] %vm637, %v583
      %649 = vst.msk [vmem:[%s145 + $0x2c] sm:$0xf] %vm637, %v584
      %650 = vst.msk [vmem:[%s145 + $0x30] sm:$0xf] %vm637, %v585
      %651 = vst.msk [vmem:[%s145 + $0x34] sm:$0xf] %vm637, %v586
      %652 = vst.msk [vmem:[%s145 + $0x38] sm:$0xf] %vm637, %v587
      %653 = vst.msk [vmem:[%s145 + $0x3c] sm:$0xf] %vm637, %v588
      %654 = vst.msk [vmem:[%s145 + $0x40] sm:$0xf] %vm637, %v589
      %655 = vst.msk [vmem:[%s145 + $0x44] sm:$0xf] %vm637, %v590
      %656 = vst.msk [vmem:[%s145 + $0x48] sm:$0xf] %vm637, %v591
      %657 = vst.msk [vmem:[%s145 + $0x4c] sm:$0xf] %vm637, %v592
      %658 = vst.msk [vmem:[%s145 + $0x50] sm:$0xf] %vm637, %v593
      %659 = vst.msk [vmem:[%s145 + $0x54] sm:$0xf] %vm637, %v594
      %660 = vst.msk [vmem:[%s145 + $0x58] sm:$0xf] %vm637, %v595
      %661 = vst.msk [vmem:[%s145 + $0x5c] sm:$0xf] %vm637, %v596
      %662 = vst.msk [vmem:[%s145 + $0x60] sm:$0xf] %vm637, %v597
      %663 = vst.msk [vmem:[%s145 + $0x64] sm:$0xf] %vm637, %v598
      %664 = vst.msk [vmem:[%s145 + $0x68] sm:$0xf] %vm637, %v599
      %665 = vst.msk [vmem:[%s145 + $0x6c] sm:$0xf] %vm637, %v600
      %666 = vst.msk [vmem:[%s145 + $0x70] sm:$0xf] %vm637, %v601
      %667 = vst.msk [vmem:[%s145 + $0x74] sm:$0xf] %vm637, %v602
      %668 = vst.msk [vmem:[%s145 + $0x78] sm:$0xf] %vm637, %v603
      %669 = vst.msk [vmem:[%s145 + $0x7c] sm:$0xf] %vm637, %v604
      %s670 = smul.u32 32, %s13
      %p671 = scmp.lt.s32.totalorder %s670, 95
      %s672 = scalar_select %p671, %s670, 95
      %s673 = smul.addr %s672, 4
      %s674 = scalar_lea.vmem %s2, %s673
      // Predicated region
      $region29: #{cdrs_forward.4} parent=27 // pred_check
        %p675 = pneg %p78
      $region30: #{cdrs_forward.4} parent=27 // pred_check_branch
        %677 = sbr.rel (%p675) target = $region32
      $region31: #{cdrs_forward.4} parent=27 // pred_region
        %s678 = smul.u32 32, %s13
      $region32: #{cdrs_forward.4} parent=27 // pred_fallthru
        _
    $region28: #{cdrs_forward.4} parent=5 // pred_fallthru
      _
    %p679 = scmp.le.s32.totalorder 2, %s8
    // Predicated region
    $region33: #{cdrs_forward.4} parent=5 // pred_check
      %p680 = pneg %p679
    $region34: #{cdrs_forward.4} parent=5 // pred_check_branch
      %682 = sbr.rel (%p680) target = $region36
    $region35: #{cdrs_forward.4} parent=5 // pred_region
      %s683 = ssub.s32 %s8, 2
      // Predicated region
      $region37: #{cdrs_forward.4} parent=35 // pred_check
        %p684 = pneg %p84
      $region38: #{cdrs_forward.4} parent=35 // pred_check_branch
        %686 = sbr.rel (%p684) target = $region40
      $region39: #{cdrs_forward.4} parent=35 // pred_region
        %s687 = smul.u32 32, %s14
        %p688 = scmp.lt.s32.totalorder %s687, 95
        %s689 = scalar_select %p688, %s687, 95
        %s690 = smul.addr %s689, 4
        %s691 = scalar_lea.vmem %s2, %s690
      $region40: #{cdrs_forward.4} parent=35 // pred_fallthru
        _
    $region36: #{cdrs_forward.4} parent=5 // pred_fallthru
      _
  $region6: #{cdrs_forward.4} parent=0 // loop_footer
    %s12 = sadd.s32 1, %s8
  $region7: #{cdrs_forward.4} parent=0 // loop_footer_branch
    %7 = sbr.rel target = $region3
  $region8: #{cdrs_forward.4} parent=0 // loop_exit
    _

// kernel: cdrs_forward.5
$region0: #{cdrs_forward.5}
  #allocation0 [shape = 'u32[]', space=smem, size = 0x4, offset = 0x4, fixed_abs, tag = 'smem constant byte address 0x4 - core index']
  #allocation1 [shape = 'u32[144,128]{1,0:T(1,128)}', space=vmem, size = 0x12000, scoped, tag = 'internal scratch']
  #allocation2 [shape = 'f32[256,32]{1,0:T(8,128)}', space=vmem, size = 0x20000, scoped, tag = 'scratch operand']
  %s0 = inlined_call_operand.vmem [shape: bf16[768,768], index: 0, kind: input, shape index: {}]
  %s1 = inlined_call_operand.vmem [shape: bf16[768,32], index: 1, kind: input, shape index: {}]
  %s2 = inlined_call_operand.vmem [shape: bf16[32,40], index: 2, kind: input, shape index: {}]
  %s3 = inlined_call_operand.vmem [shape: bf16[768,40], index: 3, kind: output, shape index: {}]
  %s4 = sld [smem:[#allocation0]]
  $region91: #{cdrs_forward.5} parent=0
    _
  %s6 = ssub.s32 1, %s4
  %s7 = scalar_select 0, %s6, %s4
  $region1: #{cdrs_forward.5} parent=0
    #allocation3 [shape = 'u8[262144]{0}', space=vmem, size = 0x40000, scoped, tag = 'input window, operand 0']
    loop: start=0, step=1, limit=11
    $region2: #{cdrs_forward.5} parent=1 // loop_pre_header
      _
    $region3: #{cdrs_forward.5} parent=1 // loop_header
      %s9 = sphi 0, %s13
      %p10 = scmp.ge.s32.totalorder %s9, 11
      %s16 = sphi 0, %s28
      %s17 = sphi 0, %s24
      %s18 = sphi 0, %s16
      %s19 = sphi 0, %s17
      %s20 = sphi 0, %s18
      %s21 = sphi 0, %s19
      %s33 = sphi 0, %s35
      %s36 = sphi 0, %s33
      %s37 = sphi 0, %s36
      %s53 = sphi 0, %s37
      %s57 = sphi 0, %s57
      %s59 = sphi 0, %s57
      %s60 = sphi 0, %s59
      %s74 = sphi 0, %s60
      %s78 = sphi 0, %s78
      %s80 = sphi 0, %s78
      %s81 = sphi 0, %s80
      %s95 = sphi 0, %s81
      %s101 = sphi 0, %s103
      %s104 = sphi 0, %s101
      %s105 = sphi 0, %s104
      %s121 = sphi 0, %s105
    $region4: #{cdrs_forward.5} parent=1 // loop_header_branch
      %12 = sbr.rel (%p10) target = $region8
    $region5: #{cdrs_forward.5} parent=1 // loop_body
      %s14 = ssub.s32 %s9, 1
      %s15 = ssub.s32 %s9, 2
      %s22 = sadd.s32 1, %s17
      %p23 = scmp.ge.s32.totalorder %s22, 3
      %s24 = scalar_select %p23, 0, %s22
      %s25 = sadd.s32 1, %s16
      %s26 = scalar_select %p23, %s25, %s16
      %p27 = scmp.ge.s32.totalorder %s26, 3
      %s28 = scalar_select %p27, 0, %s26
      %s29 = ssub.s32 %s16, %s28
      %s30 = ssub.s32 %s17, %s24
      %s31 = sor.u32 %s29, %s30
      %p32 = scmp.eq.s32.totalorder %s31, 0
      %s34 = sadd.s32 %s33, 1
      %s35 = scalar_select %p32, %s33, %s34
      %p38 = pneg %p32
      %p39 = scmp.eq.s32.totalorder %s9, 8
      %p40 = por %p38, %p39
      %p41 = scmp.ne.s32.totalorder %s33, %s36
      %p42 = scmp.eq.s32.totalorder %s9, 0
      %p43 = por %p41, %p42
      %p44 = scmp.ne.s32.totalorder %s33, %s36
      %p45 = scmp.eq.s32.totalorder %s14, 8
      %p46 = por %p44, %p45
      %p47 = scmp.ne.s32.totalorder %s36, %s37
      %p48 = scmp.eq.s32.totalorder %s14, 0
      %p49 = por %p47, %p48
      %p50 = scmp.ne.s32.totalorder %s36, %s37
      %p51 = scmp.eq.s32.totalorder %s15, 8
      %p52 = por %p50, %p51
      %p54 = scmp.ne.s32.totalorder %s37, %s53
      %p55 = scmp.eq.s32.totalorder %s15, 0
      %p56 = por %p54, %p55
      %s58 = sadd.s32 %s57, 1
      %p61 = scmp.eq.s32.totalorder %s9, 8
      %p62 = scmp.ne.s32.totalorder %s57, %s59
      %p63 = scmp.eq.s32.totalorder %s9, 0
      %p64 = por %p62, %p63
      %p65 = scmp.ne.s32.totalorder %s57, %s59
      %p66 = scmp.eq.s32.totalorder %s14, 8
      %p67 = por %p65, %p66
      %p68 = scmp.ne.s32.totalorder %s59, %s60
      %p69 = scmp.eq.s32.totalorder %s14, 0
      %p70 = por %p68, %p69
      %p71 = scmp.ne.s32.totalorder %s59, %s60
      %p72 = scmp.eq.s32.totalorder %s15, 8
      %p73 = por %p71, %p72
      %p75 = scmp.ne.s32.totalorder %s60, %s74
      %p76 = scmp.eq.s32.totalorder %s15, 0
      %p77 = por %p75, %p76
      %s79 = sadd.s32 %s78, 1
      %p82 = scmp.eq.s32.totalorder %s9, 8
      %p83 = scmp.ne.s32.totalorder %s78, %s80
      %p84 = scmp.eq.s32.totalorder %s9, 0
      %p85 = por %p83, %p84
      %p86 = scmp.ne.s32.totalorder %s78, %s80
      %p87 = scmp.eq.s32.totalorder %s14, 8
      %p88 = por %p86, %p87
      %p89 = scmp.ne.s32.totalorder %s80, %s81
      %p90 = scmp.eq.s32.totalorder %s14, 0
      %p91 = por %p89, %p90
      %p92 = scmp.ne.s32.totalorder %s80, %s81
      %p93 = scmp.eq.s32.totalorder %s15, 8
      %p94 = por %p92, %p93
      %p96 = scmp.ne.s32.totalorder %s81, %s95
      %p97 = scmp.eq.s32.totalorder %s15, 0
      %p98 = por %p96, %p97
      %s99 = ssub.s32 %s16, %s28
      %p100 = scmp.eq.s32.totalorder %s99, 0
      %s102 = sadd.s32 %s101, 1
      %s103 = scalar_select %p100, %s101, %s102
      %p106 = pneg %p100
      %p107 = scmp.eq.s32.totalorder %s9, 8
      %p108 = por %p106, %p107
      %p109 = scmp.ne.s32.totalorder %s101, %s104
      %p110 = scmp.eq.s32.totalorder %s9, 0
      %p111 = por %p109, %p110
      %p112 = scmp.ne.s32.totalorder %s101, %s104
      %p113 = scmp.eq.s32.totalorder %s14, 8
      %p114 = por %p112, %p113
      %p115 = scmp.ne.s32.totalorder %s104, %s105
      %p116 = scmp.eq.s32.totalorder %s14, 0
      %p117 = por %p115, %p116
      %p118 = scmp.ne.s32.totalorder %s104, %s105
      %p119 = scmp.eq.s32.totalorder %s15, 8
      %p120 = por %p118, %p119
      %p122 = scmp.ne.s32.totalorder %s105, %s121
      %p123 = scmp.eq.s32.totalorder %s15, 0
      %p124 = por %p122, %p123
      %p125 = scmp.le.s32.totalorder 1, %s9
      %p126 = scmp.lt.s32.totalorder %s9, 10
      %p127 = pnand %p125, %p126
      %p128 = pneg %p127
      // Predicated region
      $region9: #{cdrs_forward.5} parent=5 // pred_check
        _
      $region10: #{cdrs_forward.5} parent=5 // pred_check_branch
        %130 = sbr.rel (%p127) target = $region12
      $region11: #{cdrs_forward.5} parent=5 // pred_region
        %s131 = ssub.s32 %s9, 1
        // Predicated region
        $region13: #{cdrs_forward.5} parent=11 // pred_check
          %p132 = pneg %p70
        $region14: #{cdrs_forward.5} parent=11 // pred_check_branch
          %134 = sbr.rel (%p132) target = $region16
        $region15: #{cdrs_forward.5} parent=11 // pred_region
          _
        $region16: #{cdrs_forward.5} parent=11 // pred_fallthru
          _
        // Predicated region
        $region17: #{cdrs_forward.5} parent=11 // pred_check
          %p135 = pneg %p91
        $region18: #{cdrs_forward.5} parent=11 // pred_check_branch
          %137 = sbr.rel (%p135) target = $region20
        $region19: #{cdrs_forward.5} parent=11 // pred_region
          _
        $region20: #{cdrs_forward.5} parent=11 // pred_fallthru
          _
      $region12: #{cdrs_forward.5} parent=5 // pred_fallthru
        _
      %p138 = scmp.lt.s32.totalorder %s9, 9
      // Predicated region
      $region21: #{cdrs_forward.5} parent=5 // pred_check
        %p139 = pneg %p138
      $region22: #{cdrs_forward.5} parent=5 // pred_check_branch
        %141 = sbr.rel (%p139) target = $region24
      $region23: #{cdrs_forward.5} parent=5 // pred_region
        // Predicated region
        $region25: #{cdrs_forward.5} parent=23 // pred_check
          %p142 = pneg %p43
        $region26: #{cdrs_forward.5} parent=23 // pred_check_branch
          %144 = sbr.rel (%p142) target = $region28
        $region27: #{cdrs_forward.5} parent=23 // pred_region
          %s145 = sand.u32 %s33, 1
          %s146 = sand.u32 %s33, 1
          %s147 = smul.addr %s146, 256
          %s148 = scalar_lea.vmem [#allocation3], %s147
          %s149 = smul.u32 32, %s16
          %s150 = smul.u32 2, %s17
          %s151 = smul.addr %s149, 6
          %s152 = sadd.s32 %s150, %s151
          %s153 = smul.addr %s152, 4
          %s154 = scalar_lea.vmem %s0, %s153
          // Predicated region
          $region29: #{cdrs_forward.5} parent=27 // pred_check
            _
          $region30: #{cdrs_forward.5} parent=27 // pred_check_branch
            %156 = sbr.rel (0) target = $region32
          $region31: #{cdrs_forward.5} parent=27 // pred_region
            // Predicated region
            $region33: #{cdrs_forward.5} parent=31 // pred_check
              _
            $region34: #{cdrs_forward.5} parent=31 // pred_check_branch
              %158 = sbr.rel (0) target = $region36
            $region35: #{cdrs_forward.5} parent=31 // pred_region
              // Predicated region
              $region48: #{cdrs_forward.5} parent=35 // pred_check
                _
              $region49: #{cdrs_forward.5} parent=35 // pred_check_branch
                %235 = sbr.rel (0) target = $region51
              $region50: #{cdrs_forward.5} parent=35 // pred_region
                loop: start=0, step=1, limit=1
                $region52: #{cdrs_forward.5} parent=50 // loop_pre_header
                  _
                $region53: #{cdrs_forward.5} parent=50 // loop_header
                  %s237 = sphi 0, %s241
                  %p238 = scmp.ge.s32.totalorder %s237, 1
                  %s242 = sphi %s154, %s154
                  %s243 = sphi %s148, %s148
                $region54: #{cdrs_forward.5} parent=50 // loop_header_branch
                  %240 = sbr.rel (%p238) target = $region58
                $region55: #{cdrs_forward.5} parent=50 // loop_body
                  %v244 = vld [vmem:[%s242] sm:$0xff]
                  %245 = vst [vmem:[%s243] sm:$0xff] %v244
                  %v246 = vld [vmem:[%s242 + $0x18] sm:$0xff]
                  %247 = vst [vmem:[%s243 + $0x8] sm:$0xff] %v246
                  %v248 = vld [vmem:[%s242 + $0x30] sm:$0xff]
                  %249 = vst [vmem:[%s243 + $0x10] sm:$0xff] %v248
                  %v250 = vld [vmem:[%s242 + $0x48] sm:$0xff]
                  %251 = vst [vmem:[%s243 + $0x18] sm:$0xff] %v250
                  %v252 = vld [vmem:[%s242 + $0x60] sm:$0xff]
                  %253 = vst [vmem:[%s243 + $0x20] sm:$0xff] %v252
                  %v254 = vld [vmem:[%s242 + $0x78] sm:$0xff]
                  %255 = vst [vmem:[%s243 + $0x28] sm:$0xff] %v254
                  %v256 = vld [vmem:[%s242 + $0x90] sm:$0xff]
                  %257 = vst [vmem:[%s243 + $0x30] sm:$0xff] %v256
                  %v258 = vld [vmem:[%s242 + $0xa8] sm:$0xff]
                  %259 = vst [vmem:[%s243 + $0x38] sm:$0xff] %v258
                  %v260 = vld [vmem:[%s242 + $0xc0] sm:$0xff]
                  %261 = vst [vmem:[%s243 + $0x40] sm:$0xff] %v260
                  %v262 = vld [vmem:[%s242 + $0xd8] sm:$0xff]
                  %263 = vst [vmem:[%s243 + $0x48] sm:$0xff] %v262
                  %v264 = vld [vmem:[%s242 + $0xf0] sm:$0xff]
                  %265 = vst [vmem:[%s243 + $0x50] sm:$0xff] %v264
                  %v266 = vld [vmem:[%s242 + $0x108] sm:$0xff]
                  %267 = vst [vmem:[%s243 + $0x58] sm:$0xff] %v266
                  %v268 = vld [vmem:[%s242 + $0x120] sm:$0xff]
                  %269 = vst [vmem:[%s243 + $0x60] sm:$0xff] %v268
                  %v270 = vld [vmem:[%s242 + $0x138] sm:$0xff]
                  %271 = vst [vmem:[%s243 + $0x68] sm:$0xff] %v270
                  %v272 = vld [vmem:[%s242 + $0x150] sm:$0xff]
                  %273 = vst [vmem:[%s243 + $0x70] sm:$0xff] %v272
                  %v274 = vld [vmem:[%s242 + $0x168] sm:$0xff]
                  %275 = vst [vmem:[%s243 + $0x78] sm:$0xff] %v274
                  %v276 = vld [vmem:[%s242 + $0x180] sm:$0xff]
                  %277 = vst [vmem:[%s243 + $0x80] sm:$0xff] %v276
                  %v278 = vld [vmem:[%s242 + $0x198] sm:$0xff]
                  %279 = vst [vmem:[%s243 + $0x88] sm:$0xff] %v278
                  %v280 = vld [vmem:[%s242 + $0x1b0] sm:$0xff]
                  %281 = vst [vmem:[%s243 + $0x90] sm:$0xff] %v280
                  %v282 = vld [vmem:[%s242 + $0x1c8] sm:$0xff]
                  %283 = vst [vmem:[%s243 + $0x98] sm:$0xff] %v282
                  %v284 = vld [vmem:[%s242 + $0x1e0] sm:$0xff]
                  %285 = vst [vmem:[%s243 + $0xa0] sm:$0xff] %v284
                  %v286 = vld [vmem:[%s242 + $0x1f8] sm:$0xff]
                  %287 = vst [vmem:[%s243 + $0xa8] sm:$0xff] %v286
                  %v288 = vld [vmem:[%s242 + $0x210] sm:$0xff]
                  %289 = vst [vmem:[%s243 + $0xb0] sm:$0xff] %v288
                  %v290 = vld [vmem:[%s242 + $0x228] sm:$0xff]
                  %291 = vst [vmem:[%s243 + $0xb8] sm:$0xff] %v290
                  %v292 = vld [vmem:[%s242 + $0x240] sm:$0xff]
                  %293 = vst [vmem:[%s243 + $0xc0] sm:$0xff] %v292
                  %v294 = vld [vmem:[%s242 + $0x258] sm:$0xff]
                  %295 = vst [vmem:[%s243 + $0xc8] sm:$0xff] %v294
                  %v296 = vld [vmem:[%s242 + $0x270] sm:$0xff]
                  %297 = vst [vmem:[%s243 + $0xd0] sm:$0xff] %v296
                  %v298 = vld [vmem:[%s242 + $0x288] sm:$0xff]
                  %299 = vst [vmem:[%s243 + $0xd8] sm:$0xff] %v298
                  %v300 = vld [vmem:[%s242 + $0x2a0] sm:$0xff]
                  %301 = vst [vmem:[%s243 + $0xe0] sm:$0xff] %v300
                  %v302 = vld [vmem:[%s242 + $0x2b8] sm:$0xff]
                  %303 = vst [vmem:[%s243 + $0xe8] sm:$0xff] %v302
                  %v304 = vld [vmem:[%s242 + $0x2d0] sm:$0xff]
                  %305 = vst [vmem:[%s243 + $0xf0] sm:$0xff] %v304
                  %v306 = vld [vmem:[%s242 + $0x2e8] sm:$0xff]
                  %307 = vst [vmem:[%s243 + $0xf8] sm:$0xff] %v306
                $region56: #{cdrs_forward.5} parent=50 // loop_footer
                  %s241 = sadd.s32 1, %s237
                $region57: #{cdrs_forward.5} parent=50 // loop_footer_branch
                  %236 = sbr.rel target = $region53
                $region58: #{cdrs_forward.5} parent=50 // loop_exit
                  _
              $region51: #{cdrs_forward.5} parent=35 // pred_fallthru
                _
              // Predicated region
              $region59: #{cdrs_forward.5} parent=35 // pred_check
                _
              $region60: #{cdrs_forward.5} parent=35 // pred_check_branch
                %309 = sbr.rel target = $region62
              $region61: #{cdrs_forward.5} parent=35 // pred_region
                _
              $region62: #{cdrs_forward.5} parent=35 // pred_fallthru
                _
            $region36: #{cdrs_forward.5} parent=31 // pred_fallthru
              _
            // Predicated region
            $region37: #{cdrs_forward.5} parent=31 // pred_check
              _
            $region38: #{cdrs_forward.5} parent=31 // pred_check_branch
              %160 = sbr.rel target = $region40
            $region39: #{cdrs_forward.5} parent=31 // pred_region
              loop: start=0, step=1, limit=1
              $region41: #{cdrs_forward.5} parent=39 // loop_pre_header
                _
              $region42: #{cdrs_forward.5} parent=39 // loop_header
                %s163 = sphi 0, %s167
                %p164 = scmp.ge.s32.totalorder %s163, 1
                %s168 = sphi %s154, %s154
                %s169 = sphi %s148, %s148
              $region43: #{cdrs_forward.5} parent=39 // loop_header_branch
                %166 = sbr.rel (%p164) target = $region47
              $region44: #{cdrs_forward.5} parent=39 // loop_body
                %v170 = vld [vmem:[%s168] sm:$0xff]
                %171 = vst [vmem:[%s169] sm:$0xff] %v170
                %v172 = vld [vmem:[%s168 + $0x18] sm:$0xff]
                %173 = vst [vmem:[%s169 + $0x8] sm:$0xff] %v172
                %v174 = vld [vmem:[%s168 + $0x30] sm:$0xff]
                %175 = vst [vmem:[%s169 + $0x10] sm:$0xff] %v174
                %v176 = vld [vmem:[%s168 + $0x48] sm:$0xff]
                %177 = vst [vmem:[%s169 + $0x18] sm:$0xff] %v176
                %v178 = vld [vmem:[%s168 + $0x60] sm:$0xff]
                %179 = vst [vmem:[%s169 + $0x20] sm:$0xff] %v178
                %v180 = vld [vmem:[%s168 + $0x78] sm:$0xff]
                %181 = vst [vmem:[%s169 + $0x28] sm:$0xff] %v180
                %v182 = vld [vmem:[%s168 + $0x90] sm:$0xff]
                %183 = vst [vmem:[%s169 + $0x30] sm:$0xff] %v182
                %v184 = vld [vmem:[%s168 + $0xa8] sm:$0xff]
                %185 = vst [vmem:[%s169 + $0x38] sm:$0xff] %v184
                %v186 = vld [vmem:[%s168 + $0xc0] sm:$0xff]
                %187 = vst [vmem:[%s169 + $0x40] sm:$0xff] %v186
                %v188 = vld [vmem:[%s168 + $0xd8] sm:$0xff]
                %189 = vst [vmem:[%s169 + $0x48] sm:$0xff] %v188
                %v190 = vld [vmem:[%s168 + $0xf0] sm:$0xff]
                %191 = vst [vmem:[%s169 + $0x50] sm:$0xff] %v190
                %v192 = vld [vmem:[%s168 + $0x108] sm:$0xff]
                %193 = vst [vmem:[%s169 + $0x58] sm:$0xff] %v192
                %v194 = vld [vmem:[%s168 + $0x120] sm:$0xff]
                %195 = vst [vmem:[%s169 + $0x60] sm:$0xff] %v194
                %v196 = vld [vmem:[%s168 + $0x138] sm:$0xff]
                %197 = vst [vmem:[%s169 + $0x68] sm:$0xff] %v196
                %v198 = vld [vmem:[%s168 + $0x150] sm:$0xff]
                %199 = vst [vmem:[%s169 + $0x70] sm:$0xff] %v198
                %v200 = vld [vmem:[%s168 + $0x168] sm:$0xff]
                %201 = vst [vmem:[%s169 + $0x78] sm:$0xff] %v200
                %v202 = vld [vmem:[%s168 + $0x180] sm:$0xff]
                %203 = vst [vmem:[%s169 + $0x80] sm:$0xff] %v202
                %v204 = vld [vmem:[%s168 + $0x198] sm:$0xff]
                %205 = vst [vmem:[%s169 + $0x88] sm:$0xff] %v204
                %v206 = vld [vmem:[%s168 + $0x1b0] sm:$0xff]
                %207 = vst [vmem:[%s169 + $0x90] sm:$0xff] %v206
                %v208 = vld [vmem:[%s168 + $0x1c8] sm:$0xff]
                %209 = vst [vmem:[%s169 + $0x98] sm:$0xff] %v208
                %v210 = vld [vmem:[%s168 + $0x1e0] sm:$0xff]
                %211 = vst [vmem:[%s169 + $0xa0] sm:$0xff] %v210
                %v212 = vld [vmem:[%s168 + $0x1f8] sm:$0xff]
                %213 = vst [vmem:[%s169 + $0xa8] sm:$0xff] %v212
                %v214 = vld [vmem:[%s168 + $0x210] sm:$0xff]
                %215 = vst [vmem:[%s169 + $0xb0] sm:$0xff] %v214
                %v216 = vld [vmem:[%s168 + $0x228] sm:$0xff]
                %217 = vst [vmem:[%s169 + $0xb8] sm:$0xff] %v216
                %v218 = vld [vmem:[%s168 + $0x240] sm:$0xff]
                %219 = vst [vmem:[%s169 + $0xc0] sm:$0xff] %v218
                %v220 = vld [vmem:[%s168 + $0x258] sm:$0xff]
                %221 = vst [vmem:[%s169 + $0xc8] sm:$0xff] %v220
                %v222 = vld [vmem:[%s168 + $0x270] sm:$0xff]
                %223 = vst [vmem:[%s169 + $0xd0] sm:$0xff] %v222
                %v224 = vld [vmem:[%s168 + $0x288] sm:$0xff]
                %225 = vst [vmem:[%s169 + $0xd8] sm:$0xff] %v224
                %v226 = vld [vmem:[%s168 + $0x2a0] sm:$0xff]
                %227 = vst [vmem:[%s169 + $0xe0] sm:$0xff] %v226
                %v228 = vld [vmem:[%s168 + $0x2b8] sm:$0xff]
                %229 = vst [vmem:[%s169 + $0xe8] sm:$0xff] %v228
                %v230 = vld [vmem:[%s168 + $0x2d0] sm:$0xff]
                %231 = vst [vmem:[%s169 + $0xf0] sm:$0xff] %v230
                %v232 = vld [vmem:[%s168 + $0x2e8] sm:$0xff]
                %233 = vst [vmem:[%s169 + $0xf8] sm:$0xff] %v232
              $region45: #{cdrs_forward.5} parent=39 // loop_footer
                %s167 = sadd.s32 1, %s163
              $region46: #{cdrs_forward.5} parent=39 // loop_footer_branch
                %162 = sbr.rel target = $region42
              $region47: #{cdrs_forward.5} parent=39 // loop_exit
                _
            $region40: #{cdrs_forward.5} parent=31 // pred_fallthru
              _
          $region32: #{cdrs_forward.5} parent=27 // pred_fallthru
            _
          %310 = vnop
        $region28: #{cdrs_forward.5} parent=23 // pred_fallthru
          _
      $region24: #{cdrs_forward.5} parent=5 // pred_fallthru
        _
      %p311 = scmp.le.s32.totalorder 1, %s9
      %p312 = scmp.lt.s32.totalorder %s9, 10
      %p313 = pnand %p311, %p312
      %p314 = pneg %p313
      // Predicated region
      $region63: #{cdrs_forward.5} parent=5 // pred_check
        _
      $region64: #{cdrs_forward.5} parent=5 // pred_check_branch
        %316 = sbr.rel (%p313) target = $region66
      $region65: #{cdrs_forward.5} parent=5 // pred_region
        %s317 = ssub.s32 %s9, 1
        %s318 = sand.u32 %s36, 1
        %s319 = sand.u32 %s36, 1
        %s320 = smul.addr %s319, 256
        %s321 = scalar_lea.vmem [#allocation3], %s320
        // Predicated region
        $region67: #{cdrs_forward.5} parent=65 // pred_check
          %p322 = pneg %p49
        $region68: #{cdrs_forward.5} parent=65 // pred_check_branch
          %324 = sbr.rel (%p322) target = $region70
        $region69: #{cdrs_forward.5} parent=65 // pred_region
          _
        $region70: #{cdrs_forward.5} parent=65 // pred_fallthru
          _
        %s325 = sand.u32 %s36, 1
        %s326 = sand.u32 %s36, 1
        %s327 = smul.addr %s326, 256
        %s328 = scalar_lea.vmem [#allocation3], %s327
        %p329 = pneg %p49
        %p330 = pneg %p46
        %p331 = pneg %p70
        %p332 = pneg %p67
        %p333 = pneg %p91
        %p334 = pneg %p88
        %p335 = pneg %p117
        %p336 = pneg %p114
        %s337 = smul.u32 32, %s18
        %p338 = scmp.lt.s32.totalorder %s337, 95
        %s339 = scalar_select %p338, %s337, 95
        %s340 = smul.addr %s339, 4
        %s341 = scalar_lea.vmem %s3, %s340
        %s342 = smul.u32 32, %s18
        %s343 = smul.u32 2, %s19
        %s344 = smul.u32 32, %s18
        %p345 = scmp.lt.s32.totalorder %s344, 95
        %s346 = scalar_select %p345, %s344, 95
        %s347 = smul.addr %s346, 4
        %s348 = scalar_lea.vmem %s3, %s347
        %s349 = smul.u32 32, %s18
        %p351 = scmp.eq.s32.totalorder %s19, 0
        // Predicated region
        $region71: #{cdrs_forward.5} parent=65 // pred_check
          %p352 = pneg %p351
        $region72: #{cdrs_forward.5} parent=65 // pred_check_branch
          %354 = sbr.rel (%p352) target = $region74
        $region73: #{cdrs_forward.5} parent=65 // pred_region
          %vm355 = vcmask 261120
          %356 = vst.msk [vmem:[#allocation2] sm:$0xff] %vm355, 0.0
          %357 = vst.msk [vmem:[#allocation2 + $0x8] sm:$0xff] %vm355, 0.0
          %358 = vst.msk [vmem:[#allocation2 + $0x10] sm:$0xff] %vm355, 0.0
          %359 = vst.msk [vmem:[#allocation2 + $0x18] sm:$0xff] %vm355, 0.0
          %360 = vst.msk [vmem:[#allocation2 + $0x20] sm:$0xff] %vm355, 0.0
          %361 = vst.msk [vmem:[#allocation2 + $0x28] sm:$0xff] %vm355, 0.0
          %362 = vst.msk [vmem:[#allocation2 + $0x30] sm:$0xff] %vm355, 0.0
          %363 = vst.msk [vmem:[#allocation2 + $0x38] sm:$0xff] %vm355, 0.0
          %364 = vst.msk [vmem:[#allocation2 + $0x40] sm:$0xff] %vm355, 0.0
          %365 = vst.msk [vmem:[#allocation2 + $0x48] sm:$0xff] %vm355, 0.0
          %366 = vst.msk [vmem:[#allocation2 + $0x50] sm:$0xff] %vm355, 0.0
          %367 = vst.msk [vmem:[#allocation2 + $0x58] sm:$0xff] %vm355, 0.0
          %368 = vst.msk [vmem:[#allocation2 + $0x60] sm:$0xff] %vm355, 0.0
          %369 = vst.msk [vmem:[#allocation2 + $0x68] sm:$0xff] %vm355, 0.0
          %370 = vst.msk [vmem:[#allocation2 + $0x70] sm:$0xff] %vm355, 0.0
          %371 = vst.msk [vmem:[#allocation2 + $0x78] sm:$0xff] %vm355, 0.0
          %372 = vst.msk [vmem:[#allocation2 + $0x80] sm:$0xff] %vm355, 0.0
          %373 = vst.msk [vmem:[#allocation2 + $0x88] sm:$0xff] %vm355, 0.0
          %374 = vst.msk [vmem:[#allocation2 + $0x90] sm:$0xff] %vm355, 0.0
          %375 = vst.msk [vmem:[#allocation2 + $0x98] sm:$0xff] %vm355, 0.0
          %376 = vst.msk [vmem:[#allocation2 + $0xa0] sm:$0xff] %vm355, 0.0
          %377 = vst.msk [vmem:[#allocation2 + $0xa8] sm:$0xff] %vm355, 0.0
          %378 = vst.msk [vmem:[#allocation2 + $0xb0] sm:$0xff] %vm355, 0.0
          %379 = vst.msk [vmem:[#allocation2 + $0xb8] sm:$0xff] %vm355, 0.0
          %380 = vst.msk [vmem:[#allocation2 + $0xc0] sm:$0xff] %vm355, 0.0
          %381 = vst.msk [vmem:[#allocation2 + $0xc8] sm:$0xff] %vm355, 0.0
          %382 = vst.msk [vmem:[#allocation2 + $0xd0] sm:$0xff] %vm355, 0.0
          %383 = vst.msk [vmem:[#allocation2 + $0xd8] sm:$0xff] %vm355, 0.0
          %384 = vst.msk [vmem:[#allocation2 + $0xe0] sm:$0xff] %vm355, 0.0
          %385 = vst.msk [vmem:[#allocation2 + $0xe8] sm:$0xff] %vm355, 0.0
          %386 = vst.msk [vmem:[#allocation2 + $0xf0] sm:$0xff] %vm355, 0.0
          %387 = vst.msk [vmem:[#allocation2 + $0xf8] sm:$0xff] %vm355, 0.0
        $region74: #{cdrs_forward.5} parent=65 // pred_fallthru
          _
        %s388 = smul.u32 %s19, 256
        %s389 = sshra.s32 %s388, 3
        %s390 = sand.u32 %s388, 7
        %s391 = smul.addr %s389, 4
        %s392 = scalar_lea.vmem %s1, %s391
        %v393 = vld [vmem:[%s392] sm:$0xf]
        %v394 = vld [vmem:[%s392 + $0x4] sm:$0xf]
        %v395 = vld [vmem:[%s392 + $0x8] sm:$0xf]
        %v396 = vld [vmem:[%s392 + $0xc] sm:$0xf]
        %v397 = vld [vmem:[%s392 + $0x10] sm:$0xf]
        %v398 = vld [vmem:[%s392 + $0x14] sm:$0xf]
        %v399 = vld [vmem:[%s392 + $0x18] sm:$0xf]
        %v400 = vld [vmem:[%s392 + $0x1c] sm:$0xf]
        %v401 = vld [vmem:[%s392 + $0x20] sm:$0xf]
        %v402 = vld [vmem:[%s392 + $0x24] sm:$0xf]
        %v403 = vld [vmem:[%s392 + $0x28] sm:$0xf]
        %v404 = vld [vmem:[%s392 + $0x2c] sm:$0xf]
        %v405 = vld [vmem:[%s392 + $0x30] sm:$0xf]
        %v406 = vld [vmem:[%s392 + $0x34] sm:$0xf]
        %v407 = vld [vmem:[%s392 + $0x38] sm:$0xf]
        %v408 = vld [vmem:[%s392 + $0x3c] sm:$0xf]
        %v409 = vld [vmem:[%s392 + $0x40] sm:$0xf]
        %v410 = vld [vmem:[%s392 + $0x44] sm:$0xf]
        %v411 = vld [vmem:[%s392 + $0x48] sm:$0xf]
        %v412 = vld [vmem:[%s392 + $0x4c] sm:$0xf]
        %v413 = vld [vmem:[%s392 + $0x50] sm:$0xf]
        %v414 = vld [vmem:[%s392 + $0x54] sm:$0xf]
        %v415 = vld [vmem:[%s392 + $0x58] sm:$0xf]
        %v416 = vld [vmem:[%s392 + $0x5c] sm:$0xf]
        %v417 = vld [vmem:[%s392 + $0x60] sm:$0xf]
        %v418 = vld [vmem:[%s392 + $0x64] sm:$0xf]
        %v419 = vld [vmem:[%s392 + $0x68] sm:$0xf]
        %v420 = vld [vmem:[%s392 + $0x6c] sm:$0xf]
        %v421 = vld [vmem:[%s392 + $0x70] sm:$0xf]
        %v422 = vld [vmem:[%s392 + $0x74] sm:$0xf]
        %v423 = vld [vmem:[%s392 + $0x78] sm:$0xf]
        %v424 = vld [vmem:[%s392 + $0x7c] sm:$0xf]
        %v425 = vld [vmem:[#allocation2] sm:$0xff]
        %v426 = vld [vmem:[#allocation2 + $0x8] sm:$0xff]
        %v427 = vld [vmem:[#allocation2 + $0x10] sm:$0xff]
        %v428 = vld [vmem:[#allocation2 + $0x18] sm:$0xff]
        %v429 = vld [vmem:[#allocation2 + $0x20] sm:$0xff]
        %v430 = vld [vmem:[#allocation2 + $0x28] sm:$0xff]
        %v431 = vld [vmem:[#allocation2 + $0x30] sm:$0xff]
        %v432 = vld [vmem:[#allocation2 + $0x38] sm:$0xff]
        %v433 = vld [vmem:[#allocation2 + $0x40] sm:$0xff]
        %v434 = vld [vmem:[#allocation2 + $0x48] sm:$0xff]
        %v435 = vld [vmem:[#allocation2 + $0x50] sm:$0xff]
        %v436 = vld [vmem:[#allocation2 + $0x58] sm:$0xff]
        %v437 = vld [vmem:[#allocation2 + $0x60] sm:$0xff]
        %v438 = vld [vmem:[#allocation2 + $0x68] sm:$0xff]
        %v439 = vld [vmem:[#allocation2 + $0x70] sm:$0xff]
        %v440 = vld [vmem:[#allocation2 + $0x78] sm:$0xff]
        %v441 = vld [vmem:[#allocation2 + $0x80] sm:$0xff]
        %v442 = vld [vmem:[#allocation2 + $0x88] sm:$0xff]
        %v443 = vld [vmem:[#allocation2 + $0x90] sm:$0xff]
        %v444 = vld [vmem:[#allocation2 + $0x98] sm:$0xff]
        %v445 = vld [vmem:[#allocation2 + $0xa0] sm:$0xff]
        %v446 = vld [vmem:[#allocation2 + $0xa8] sm:$0xff]
        %v447 = vld [vmem:[#allocation2 + $0xb0] sm:$0xff]
        %v448 = vld [vmem:[#allocation2 + $0xb8] sm:$0xff]
        %v449 = vld [vmem:[#allocation2 + $0xc0] sm:$0xff]
        %v450 = vld [vmem:[#allocation2 + $0xc8] sm:$0xff]
        %v451 = vld [vmem:[#allocation2 + $0xd0] sm:$0xff]
        %v452 = vld [vmem:[#allocation2 + $0xd8] sm:$0xff]
        %v453 = vld [vmem:[#allocation2 + $0xe0] sm:$0xff]
        %v454 = vld [vmem:[#allocation2 + $0xe8] sm:$0xff]
        %v455 = vld [vmem:[#allocation2 + $0xf0] sm:$0xff]
        %v456 = vld [vmem:[#allocation2 + $0xf8] sm:$0xff]
        %v457 = vld [vmem:[%s321] sm:$0xff]
        %v458 = vld [vmem:[%s321 + $0x8] sm:$0xff]
        %v459 = vld [vmem:[%s321 + $0x10] sm:$0xff]
        %v460 = vld [vmem:[%s321 + $0x18] sm:$0xff]
        %v461 = vld [vmem:[%s321 + $0x20] sm:$0xff]
        %v462 = vld [vmem:[%s321 + $0x28] sm:$0xff]
        %v463 = vld [vmem:[%s321 + $0x30] sm:$0xff]
        %v464 = vld [vmem:[%s321 + $0x38] sm:$0xff]
        %v465 = vld [vmem:[%s321 + $0x40] sm:$0xff]
        %v466 = vld [vmem:[%s321 + $0x48] sm:$0xff]
        %v467 = vld [vmem:[%s321 + $0x50] sm:$0xff]
        %v468 = vld [vmem:[%s321 + $0x58] sm:$0xff]
        %v469 = vld [vmem:[%s321 + $0x60] sm:$0xff]
        %v470 = vld [vmem:[%s321 + $0x68] sm:$0xff]
        %v471 = vld [vmem:[%s321 + $0x70] sm:$0xff]
        %v472 = vld [vmem:[%s321 + $0x78] sm:$0xff]
        %v473 = vld [vmem:[%s321 + $0x80] sm:$0xff]
        %v474 = vld [vmem:[%s321 + $0x88] sm:$0xff]
        %v475 = vld [vmem:[%s321 + $0x90] sm:$0xff]
        %v476 = vld [vmem:[%s321 + $0x98] sm:$0xff]
        %v477 = vld [vmem:[%s321 + $0xa0] sm:$0xff]
        %v478 = vld [vmem:[%s321 + $0xa8] sm:$0xff]
        %v479 = vld [vmem:[%s321 + $0xb0] sm:$0xff]
        %v480 = vld [vmem:[%s321 + $0xb8] sm:$0xff]
        %v481 = vld [vmem:[%s321 + $0xc0] sm:$0xff]
        %v482 = vld [vmem:[%s321 + $0xc8] sm:$0xff]
        %v483 = vld [vmem:[%s321 + $0xd0] sm:$0xff]
        %v484 = vld [vmem:[%s321 + $0xd8] sm:$0xff]
        %v485 = vld [vmem:[%s321 + $0xe0] sm:$0xff]
        %v486 = vld [vmem:[%s321 + $0xe8] sm:$0xff]
        %v487 = vld [vmem:[%s321 + $0xf0] sm:$0xff]
        %v488 = vld [vmem:[%s321 + $0xf8] sm:$0xff]
        %v521 = vunpack.c.l.b16 %v457
        %v522 = vunpack.c.h.b16 %v457
        %v523 = vunpack.c.l.b16 %v458
        %v524 = vunpack.c.h.b16 %v458
        %v525 = vunpack.c.l.b16 %v459
        %v526 = vunpack.c.h.b16 %v459
        %v527 = vunpack.c.l.b16 %v460
        %v528 = vunpack.c.h.b16 %v460
        %v529 = vunpack.c.l.b16 %v461
        %v530 = vunpack.c.h.b16 %v461
        %v531 = vunpack.c.l.b16 %v462
        %v532 = vunpack.c.h.b16 %v462
        %v533 = vunpack.c.l.b16 %v463
        %v534 = vunpack.c.h.b16 %v463
        %v535 = vunpack.c.l.b16 %v464
        %v536 = vunpack.c.h.b16 %v464
        %v537 = vunpack.c.l.b16 %v465
        %v538 = vunpack.c.h.b16 %v465
        %v539 = vunpack.c.l.b16 %v466
        %v540 = vunpack.c.h.b16 %v466
        %v541 = vunpack.c.l.b16 %v467
        %v542 = vunpack.c.h.b16 %v467
        %v543 = vunpack.c.l.b16 %v468
        %v544 = vunpack.c.h.b16 %v468
        %v545 = vunpack.c.l.b16 %v469
        %v546 = vunpack.c.h.b16 %v469
        %v547 = vunpack.c.l.b16 %v470
        %v548 = vunpack.c.h.b16 %v470
        %v549 = vunpack.c.l.b16 %v471
        %v550 = vunpack.c.h.b16 %v471
        %v551 = vunpack.c.l.b16 %v472
        %v552 = vunpack.c.h.b16 %v472
        %v553 = vunpack.c.l.b16 %v473
        %v554 = vunpack.c.h.b16 %v473
        %v555 = vunpack.c.l.b16 %v474
        %v556 = vunpack.c.h.b16 %v474
        %v557 = vunpack.c.l.b16 %v475
        %v558 = vunpack.c.h.b16 %v475
        %v559 = vunpack.c.l.b16 %v476
        %v560 = vunpack.c.h.b16 %v476
        %v561 = vunpack.c.l.b16 %v477
        %v562 = vunpack.c.h.b16 %v477
        %v563 = vunpack.c.l.b16 %v478
        %v564 = vunpack.c.h.b16 %v478
        %v565 = vunpack.c.l.b16 %v479
        %v566 = vunpack.c.h.b16 %v479
        %v567 = vunpack.c.l.b16 %v480
        %v568 = vunpack.c.h.b16 %v480
        %v569 = vunpack.c.l.b16 %v481
        %v570 = vunpack.c.h.b16 %v481
        %v571 = vunpack.c.l.b16 %v482
        %v572 = vunpack.c.h.b16 %v482
        %v573 = vunpack.c.l.b16 %v483
        %v574 = vunpack.c.h.b16 %v483
        %v575 = vunpack.c.l.b16 %v484
        %v576 = vunpack.c.h.b16 %v484
        %v577 = vunpack.c.l.b16 %v485
        %v578 = vunpack.c.h.b16 %v485
        %v579 = vunpack.c.l.b16 %v486
        %v580 = vunpack.c.h.b16 %v486
        %v581 = vunpack.c.l.b16 %v487
        %v582 = vunpack.c.h.b16 %v487
        %v583 = vunpack.c.l.b16 %v488
        %v584 = vunpack.c.h.b16 %v488
        %v585 = vpack.c.b16 %v523, %v521
        %v586 = vpack.c.b16 %v524, %v522
        %v587 = vpack.c.b16 %v527, %v525
        %v588 = vpack.c.b16 %v528, %v526
        %v589 = vpack.c.b16 %v531, %v529
        %v590 = vpack.c.b16 %v532, %v530
        %v591 = vpack.c.b16 %v535, %v533
        %v592 = vpack.c.b16 %v536, %v534
        %v593 = vpack.c.b16 %v539, %v537
        %v594 = vpack.c.b16 %v540, %v538
        %v595 = vpack.c.b16 %v543, %v541
        %v596 = vpack.c.b16 %v544, %v542
        %v597 = vpack.c.b16 %v547, %v545
        %v598 = vpack.c.b16 %v548, %v546
        %v599 = vpack.c.b16 %v551, %v549
        %v600 = vpack.c.b16 %v552, %v550
        %v601 = vpack.c.b16 %v555, %v553
        %v602 = vpack.c.b16 %v556, %v554
        %v603 = vpack.c.b16 %v559, %v557
        %v604 = vpack.c.b16 %v560, %v558
        %v605 = vpack.c.b16 %v563, %v561
        %v606 = vpack.c.b16 %v564, %v562
        %v607 = vpack.c.b16 %v567, %v565
        %v608 = vpack.c.b16 %v568, %v566
        %v609 = vpack.c.b16 %v571, %v569
        %v610 = vpack.c.b16 %v572, %v570
        %v611 = vpack.c.b16 %v575, %v573
        %v612 = vpack.c.b16 %v576, %v574
        %v613 = vpack.c.b16 %v579, %v577
        %v614 = vpack.c.b16 %v580, %v578
        %v615 = vpack.c.b16 %v583, %v581
        %v616 = vpack.c.b16 %v584, %v582
        %v681 = vunpack.c.l.b16 %v393
        %v682 = vunpack.c.l.b16 %v394
        %v683 = vunpack.c.l.b16 %v395
        %v684 = vunpack.c.l.b16 %v396
        %v685 = vunpack.c.l.b16 %v397
        %v686 = vunpack.c.l.b16 %v398
        %v687 = vunpack.c.l.b16 %v399
        %v688 = vunpack.c.l.b16 %v400
        %v689 = vunpack.c.l.b16 %v401
        %v690 = vunpack.c.l.b16 %v402
        %v691 = vunpack.c.l.b16 %v403
        %v692 = vunpack.c.l.b16 %v404
        %v693 = vunpack.c.l.b16 %v405
        %v694 = vunpack.c.l.b16 %v406
        %v695 = vunpack.c.l.b16 %v407
        %v696 = vunpack.c.l.b16 %v408
        %v697 = vunpack.c.l.b16 %v409
        %v698 = vunpack.c.l.b16 %v410
        %v699 = vunpack.c.l.b16 %v411
        %v700 = vunpack.c.l.b16 %v412
        %v701 = vunpack.c.l.b16 %v413
        %v702 = vunpack.c.l.b16 %v414
        %v703 = vunpack.c.l.b16 %v415
        %v704 = vunpack.c.l.b16 %v416
        %v705 = vunpack.c.l.b16 %v417
        %v706 = vunpack.c.l.b16 %v418
        %v707 = vunpack.c.l.b16 %v419
        %v708 = vunpack.c.l.b16 %v420
        %v709 = vunpack.c.l.b16 %v421
        %v710 = vunpack.c.l.b16 %v422
        %v711 = vunpack.c.l.b16 %v423
        %v712 = vunpack.c.l.b16 %v424
        %v713 = vpack.c.b16 %v682, %v681
        %v714 = vpack.c.b16 %v684, %v683
        %v715 = vpack.c.b16 %v686, %v685
        %v716 = vpack.c.b16 %v688, %v687
        %v717 = vpack.c.b16 %v690, %v689
        %v718 = vpack.c.b16 %v692, %v691
        %v719 = vpack.c.b16 %v694, %v693
        %v720 = vpack.c.b16 %v696, %v695
        %v721 = vpack.c.b16 %v698, %v697
        %v722 = vpack.c.b16 %v700, %v699
        %v723 = vpack.c.b16 %v702, %v701
        %v724 = vpack.c.b16 %v704, %v703
        %v725 = vpack.c.b16 %v706, %v705
        %v726 = vpack.c.b16 %v708, %v707
        %v727 = vpack.c.b16 %v710, %v709
        %v728 = vpack.c.b16 %v712, %v711
        %745 = vmatprep.subr.bf16.mxu0 0
        %746 = vmatpush1.bf16.msra.mxu0 %v713
        %747 = vmatprep.subr.bf16.mxu0 0
        %748 = vmatpush1.bf16.msra.mxu0 %v714
        %749 = vmatprep.subr.bf16.mxu0 0
        %750 = vmatpush1.bf16.msra.mxu0 %v715
        %751 = vmatprep.subr.bf16.mxu0 0
        %752 = vmatpush1.bf16.msra.mxu0 %v716
        %753 = vmatprep.subr.bf16.mxu0 0
        %754 = vmatpush1.bf16.msra.mxu0 %v717
        %755 = vmatprep.subr.bf16.mxu0 0
        %756 = vmatpush1.bf16.msra.mxu0 %v718
        %757 = vmatprep.subr.bf16.mxu0 0
        %758 = vmatpush1.bf16.msra.mxu0 %v719
        %759 = vmatprep.subr.bf16.mxu0 0
        %760 = vmatpush1.bf16.msra.mxu0 %v720
        %761 = vmatprep.subr.bf16.mxu0 0
        %762 = vmatpush1.bf16.msra.mxu0 %v721
        %763 = vmatprep.subr.bf16.mxu0 0
        %764 = vmatpush1.bf16.msra.mxu0 %v722
        %765 = vmatprep.subr.bf16.mxu0 0
        %766 = vmatpush1.bf16.msra.mxu0 %v723
        %767 = vmatprep.subr.bf16.mxu0 0
        %768 = vmatpush1.bf16.msra.mxu0 %v724
        %769 = vmatprep.subr.bf16.mxu0 0
        %770 = vmatpush1.bf16.msra.mxu0 %v725
        %771 = vmatprep.subr.bf16.mxu0 0
        %772 = vmatpush1.bf16.msra.mxu0 %v726
        %773 = vmatprep.subr.bf16.mxu0 0
        %774 = vmatpush1.bf16.msra.mxu0 %v727
        %775 = vmatprep.subr.bf16.mxu0 0
        %776 = vmatpush1.bf16.msra.mxu0 %v728
        %777 = vmatprep.mubr.bf16.mxu0 %v586
        %778 = vmatmul.mubr.bf16.gmra.mrb[0].mxu0 %v585
        %v779 = vpop.f32.mrb[0].mxu0
        %v780 = vadd.f32 0.0, %v779
        %v781 = vpop.f32.mrb[0].mxu0
        %v782 = vpop.f32.mrb[0].mxu0
        %v783 = vadd.f32 0.0, %v782
        %v784 = vpop.f32.mrb[0].mxu0
        %785 = vmatprep.mubr.bf16.mxu0 %v588
        %786 = vmatmul.mubr.bf16.gmra.mrb[0].mxu0 %v587
        %v787 = vpop.f32.mrb[0].mxu0
        %v788 = vadd.f32 0.0, %v787
        %v789 = vpop.f32.mrb[0].mxu0
        %v790 = vpop.f32.mrb[0].mxu0
        %v791 = vadd.f32 0.0, %v790
        %v792 = vpop.f32.mrb[0].mxu0
        %793 = vmatprep.mubr.bf16.mxu0 %v590
        %794 = vmatmul.mubr.bf16.gmra.mrb[0].mxu0 %v589
        %v795 = vpop.f32.mrb[0].mxu0
        %v796 = vadd.f32 0.0, %v795
        %v797 = vpop.f32.mrb[0].mxu0
        %v798 = vpop.f32.mrb[0].mxu0
        %v799 = vadd.f32 0.0, %v798
        %v800 = vpop.f32.mrb[0].mxu0
        %801 = vmatprep.mubr.bf16.mxu0 %v592
        %802 = vmatmul.mubr.bf16.gmra.mrb[0].mxu0 %v591
        %v803 = vpop.f32.mrb[0].mxu0
        %v804 = vadd.f32 0.0, %v803
        %v805 = vpop.f32.mrb[0].mxu0
        %v806 = vpop.f32.mrb[0].mxu0
        %v807 = vadd.f32 0.0, %v806
        %v808 = vpop.f32.mrb[0].mxu0
        %809 = vmatprep.mubr.bf16.mxu0 %v594
        %810 = vmatmul.mubr.bf16.gmra.mrb[0].mxu0 %v593
        %v811 = vpop.f32.mrb[0].mxu0
        %v812 = vadd.f32 0.0, %v811
        %v813 = vpop.f32.mrb[0].mxu0
        %v814 = vpop.f32.mrb[0].mxu0
        %v815 = vadd.f32 0.0, %v814
        %v816 = vpop.f32.mrb[0].mxu0
        %817 = vmatprep.mubr.bf16.mxu0 %v596
        %818 = vmatmul.mubr.bf16.gmra.mrb[0].mxu0 %v595
        %v819 = vpop.f32.mrb[0].mxu0
        %v820 = vadd.f32 0.0, %v819
        %v821 = vpop.f32.mrb[0].mxu0
        %v822 = vpop.f32.mrb[0].mxu0
        %v823 = vadd.f32 0.0, %v822
        %v824 = vpop.f32.mrb[0].mxu0
        %825 = vmatprep.mubr.bf16.mxu0 %v598
        %826 = vmatmul.mubr.bf16.gmra.mrb[0].mxu0 %v597
        %v827 = vpop.f32.mrb[0].mxu0
        %v828 = vadd.f32 0.0, %v827
        %v829 = vpop.f32.mrb[0].mxu0
        %v830 = vpop.f32.mrb[0].mxu0
        %v831 = vadd.f32 0.0, %v830
        %v832 = vpop.f32.mrb[0].mxu0
        %833 = vmatprep.mubr.bf16.mxu0 %v600
        %834 = vmatmul.mubr.bf16.gmra.mrb[0].mxu0 %v599
        %v835 = vpop.f32.mrb[0].mxu0
        %v836 = vadd.f32 0.0, %v835
        %v837 = vpop.f32.mrb[0].mxu0
        %v838 = vpop.f32.mrb[0].mxu0
        %v839 = vadd.f32 0.0, %v838
        %v840 = vpop.f32.mrb[0].mxu0
        %841 = vmatprep.mubr.bf16.mxu0 %v602
        %842 = vmatmul.mubr.bf16.gmra.mrb[0].mxu0 %v601
        %v843 = vpop.f32.mrb[0].mxu0
        %v844 = vadd.f32 0.0, %v843
        %v845 = vpop.f32.mrb[0].mxu0
        %v846 = vpop.f32.mrb[0].mxu0
        %v847 = vadd.f32 0.0, %v846
        %v848 = vpop.f32.mrb[0].mxu0
        %849 = vmatprep.mubr.bf16.mxu0 %v604
        %850 = vmatmul.mubr.bf16.gmra.mrb[0].mxu0 %v603
        %v851 = vpop.f32.mrb[0].mxu0
        %v852 = vadd.f32 0.0, %v851
        %v853 = vpop.f32.mrb[0].mxu0
        %v854 = vpop.f32.mrb[0].mxu0
        %v855 = vadd.f32 0.0, %v854
        %v856 = vpop.f32.mrb[0].mxu0
        %857 = vmatprep.mubr.bf16.mxu0 %v606
        %858 = vmatmul.mubr.bf16.gmra.mrb[0].mxu0 %v605
        %v859 = vpop.f32.mrb[0].mxu0
        %v860 = vadd.f32 0.0, %v859
        %v861 = vpop.f32.mrb[0].mxu0
        %v862 = vpop.f32.mrb[0].mxu0
        %v863 = vadd.f32 0.0, %v862
        %v864 = vpop.f32.mrb[0].mxu0
        %865 = vmatprep.mubr.bf16.mxu0 %v608
        %866 = vmatmul.mubr.bf16.gmra.mrb[0].mxu0 %v607
        %v867 = vpop.f32.mrb[0].mxu0
        %v868 = vadd.f32 0.0, %v867
        %v869 = vpop.f32.mrb[0].mxu0
        %v870 = vpop.f32.mrb[0].mxu0
        %v871 = vadd.f32 0.0, %v870
        %v872 = vpop.f32.mrb[0].mxu0
        %873 = vmatprep.mubr.bf16.mxu0 %v610
        %874 = vmatmul.mubr.bf16.gmra.mrb[0].mxu0 %v609
        %v875 = vpop.f32.mrb[0].mxu0
        %v876 = vadd.f32 0.0, %v875
        %v877 = vpop.f32.mrb[0].mxu0
        %v878 = vpop.f32.mrb[0].mxu0
        %v879 = vadd.f32 0.0, %v878
        %v880 = vpop.f32.mrb[0].mxu0
        %881 = vmatprep.mubr.bf16.mxu0 %v612
        %882 = vmatmul.mubr.bf16.gmra.mrb[0].mxu0 %v611
        %v883 = vpop.f32.mrb[0].mxu0
        %v884 = vadd.f32 0.0, %v883
        %v885 = vpop.f32.mrb[0].mxu0
        %v886 = vpop.f32.mrb[0].mxu0
        %v887 = vadd.f32 0.0, %v886
        %v888 = vpop.f32.mrb[0].mxu0
        %889 = vmatprep.mubr.bf16.mxu0 %v614
        %890 = vmatmul.mubr.bf16.gmra.mrb[0].mxu0 %v613
        %v891 = vpop.f32.mrb[0].mxu0
        %v892 = vadd.f32 0.0, %v891
        %v893 = vpop.f32.mrb[0].mxu0
        %v894 = vpop.f32.mrb[0].mxu0
        %v895 = vadd.f32 0.0, %v894
        %v896 = vpop.f32.mrb[0].mxu0
        %897 = vmatprep.mubr.bf16.mxu0 %v616
        %898 = vmatmul.mubr.bf16.gmra.mrb[0].mxu0 %v615
        %v899 = vpop.f32.mrb[0].mxu0
        %v900 = vadd.f32 0.0, %v899
        %v901 = vpop.f32.mrb[0].mxu0
        %v902 = vpop.f32.mrb[0].mxu0
        %v903 = vadd.f32 0.0, %v902
        %v904 = vpop.f32.mrb[0].mxu0
        %905 = vdwg.mxu0
        %v906 = vadd.f32 %v425, %v780
        %v907 = vadd.f32 %v426, %v783
        %v908 = vadd.f32 %v427, %v788
        %v909 = vadd.f32 %v428, %v791
        %v910 = vadd.f32 %v429, %v796
        %v911 = vadd.f32 %v430, %v799
        %v912 = vadd.f32 %v431, %v804
        %v913 = vadd.f32 %v432, %v807
        %v914 = vadd.f32 %v433, %v812
        %v915 = vadd.f32 %v434, %v815
        %v916 = vadd.f32 %v435, %v820
        %v917 = vadd.f32 %v436, %v823
        %v918 = vadd.f32 %v437, %v828
        %v919 = vadd.f32 %v438, %v831
        %v920 = vadd.f32 %v439, %v836
        %v921 = vadd.f32 %v440, %v839
        %v922 = vadd.f32 %v441, %v844
        %v923 = vadd.f32 %v442, %v847
        %v924 = vadd.f32 %v443, %v852
        %v925 = vadd.f32 %v444, %v855
        %v926 = vadd.f32 %v445, %v860
        %v927 = vadd.f32 %v446, %v863
        %v928 = vadd.f32 %v447, %v868
        %v929 = vadd.f32 %v448, %v871
        %v930 = vadd.f32 %v449, %v876
        %v931 = vadd.f32 %v450, %v879
        %v932 = vadd.f32 %v451, %v884
        %v933 = vadd.f32 %v452, %v887
        %v934 = vadd.f32 %v453, %v892
        %v935 = vadd.f32 %v454, %v895
        %v936 = vadd.f32 %v455, %v900
        %v937 = vadd.f32 %v456, %v903
        %vm938 = vcmask 261120
        %939 = vst.msk [vmem:[#allocation2] sm:$0xff] %vm938, %v906
        %940 = vst.msk [vmem:[#allocation2 + $0x8] sm:$0xff] %vm938, %v907
        %941 = vst.msk [vmem:[#allocation2 + $0x10] sm:$0xff] %vm938, %v908
        %942 = vst.msk [vmem:[#allocation2 + $0x18] sm:$0xff] %vm938, %v909
        %943 = vst.msk [vmem:[#allocation2 + $0x20] sm:$0xff] %vm938, %v910
        %944 = vst.msk [vmem:[#allocation2 + $0x28] sm:$0xff] %vm938, %v911
        %945 = vst.msk [vmem:[#allocation2 + $0x30] sm:$0xff] %vm938, %v912
        %946 = vst.msk [vmem:[#allocation2 + $0x38] sm:$0xff] %vm938, %v913
        %947 = vst.msk [vmem:[#allocation2 + $0x40] sm:$0xff] %vm938, %v914
        %948 = vst.msk [vmem:[#allocation2 + $0x48] sm:$0xff] %vm938, %v915
        %949 = vst.msk [vmem:[#allocation2 + $0x50] sm:$0xff] %vm938, %v916
        %950 = vst.msk [vmem:[#allocation2 + $0x58] sm:$0xff] %vm938, %v917
        %951 = vst.msk [vmem:[#allocation2 + $0x60] sm:$0xff] %vm938, %v918
        %952 = vst.msk [vmem:[#allocation2 + $0x68] sm:$0xff] %vm938, %v919
        %953 = vst.msk [vmem:[#allocation2 + $0x70] sm:$0xff] %vm938, %v920
        %954 = vst.msk [vmem:[#allocation2 + $0x78] sm:$0xff] %vm938, %v921
        %955 = vst.msk [vmem:[#allocation2 + $0x80] sm:$0xff] %vm938, %v922
        %956 = vst.msk [vmem:[#allocation2 + $0x88] sm:$0xff] %vm938, %v923
        %957 = vst.msk [vmem:[#allocation2 + $0x90] sm:$0xff] %vm938, %v924
        %958 = vst.msk [vmem:[#allocation2 + $0x98] sm:$0xff] %vm938, %v925
        %959 = vst.msk [vmem:[#allocation2 + $0xa0] sm:$0xff] %vm938, %v926
        %960 = vst.msk [vmem:[#allocation2 + $0xa8] sm:$0xff] %vm938, %v927
        %961 = vst.msk [vmem:[#allocation2 + $0xb0] sm:$0xff] %vm938, %v928
        %962 = vst.msk [vmem:[#allocation2 + $0xb8] sm:$0xff] %vm938, %v929
        %963 = vst.msk [vmem:[#allocation2 + $0xc0] sm:$0xff] %vm938, %v930
        %964 = vst.msk [vmem:[#allocation2 + $0xc8] sm:$0xff] %vm938, %v931
        %965 = vst.msk [vmem:[#allocation2 + $0xd0] sm:$0xff] %vm938, %v932
        %966 = vst.msk [vmem:[#allocation2 + $0xd8] sm:$0xff] %vm938, %v933
        %967 = vst.msk [vmem:[#allocation2 + $0xe0] sm:$0xff] %vm938, %v934
        %968 = vst.msk [vmem:[#allocation2 + $0xe8] sm:$0xff] %vm938, %v935
        %969 = vst.msk [vmem:[#allocation2 + $0xf0] sm:$0xff] %vm938, %v936
        %970 = vst.msk [vmem:[#allocation2 + $0xf8] sm:$0xff] %vm938, %v937
        %p971 = scmp.eq.s32.totalorder %s19, 2
        // Predicated region
        $region75: #{cdrs_forward.5} parent=65 // pred_check
          %p972 = pneg %p971
        $region76: #{cdrs_forward.5} parent=65 // pred_check_branch
          %974 = sbr.rel (%p972) target = $region78
        $region77: #{cdrs_forward.5} parent=65 // pred_region
          %v975 = vld [vmem:[#allocation2] sm:$0xff]
          %v976 = vld [vmem:[#allocation2 + $0x8] sm:$0xff]
          %v977 = vld [vmem:[#allocation2 + $0x10] sm:$0xff]
          %v978 = vld [vmem:[#allocation2 + $0x18] sm:$0xff]
          %v979 = vld [vmem:[#allocation2 + $0x20] sm:$0xff]
          %v980 = vld [vmem:[#allocation2 + $0x28] sm:$0xff]
          %v981 = vld [vmem:[#allocation2 + $0x30] sm:$0xff]
          %v982 = vld [vmem:[#allocation2 + $0x38] sm:$0xff]
          %v983 = vld [vmem:[#allocation2 + $0x40] sm:$0xff]
          %v984 = vld [vmem:[#allocation2 + $0x48] sm:$0xff]
          %v985 = vld [vmem:[#allocation2 + $0x50] sm:$0xff]
          %v986 = vld [vmem:[#allocation2 + $0x58] sm:$0xff]
          %v987 = vld [vmem:[#allocation2 + $0x60] sm:$0xff]
          %v988 = vld [vmem:[#allocation2 + $0x68] sm:$0xff]
          %v989 = vld [vmem:[#allocation2 + $0x70] sm:$0xff]
          %v990 = vld [vmem:[#allocation2 + $0x78] sm:$0xff]
          %v991 = vld [vmem:[#allocation2 + $0x80] sm:$0xff]
          %v992 = vld [vmem:[#allocation2 + $0x88] sm:$0xff]
          %v993 = vld [vmem:[#allocation2 + $0x90] sm:$0xff]
          %v994 = vld [vmem:[#allocation2 + $0x98] sm:$0xff]
          %v995 = vld [vmem:[#allocation2 + $0xa0] sm:$0xff]
          %v996 = vld [vmem:[#allocation2 + $0xa8] sm:$0xff]
          %v997 = vld [vmem:[#allocation2 + $0xb0] sm:$0xff]
          %v998 = vld [vmem:[#allocation2 + $0xb8] sm:$0xff]
          %v999 = vld [vmem:[#allocation2 + $0xc0] sm:$0xff]
          %v1000 = vld [vmem:[#allocation2 + $0xc8] sm:$0xff]
          %v1001 = vld [vmem:[#allocation2 + $0xd0] sm:$0xff]
          %v1002 = vld [vmem:[#allocation2 + $0xd8] sm:$0xff]
          %v1003 = vld [vmem:[#allocation2 + $0xe0] sm:$0xff]
          %v1004 = vld [vmem:[#allocation2 + $0xe8] sm:$0xff]
          %v1005 = vld [vmem:[#allocation2 + $0xf0] sm:$0xff]
          %v1006 = vld [vmem:[#allocation2 + $0xf8] sm:$0xff]
          %v1007 = vmax.f32 %v975, 0.0
          %v1008 = vmax.f32 %v976, 0.0
          %v1009 = vmax.f32 %v977, 0.0
          %v1010 = vmax.f32 %v978, 0.0
          %v1011 = vmax.f32 %v979, 0.0
          %v1012 = vmax.f32 %v980, 0.0
          %v1013 = vmax.f32 %v981, 0.0
          %v1014 = vmax.f32 %v982, 0.0
          %v1015 = vmax.f32 %v983, 0.0
          %v1016 = vmax.f32 %v984, 0.0
          %v1017 = vmax.f32 %v985, 0.0
          %v1018 = vmax.f32 %v986, 0.0
          %v1019 = vmax.f32 %v987, 0.0
          %v1020 = vmax.f32 %v988, 0.0
          %v1021 = vmax.f32 %v989, 0.0
          %v1022 = vmax.f32 %v990, 0.0
          %v1023 = vmax.f32 %v991, 0.0
          %v1024 = vmax.f32 %v992, 0.0
          %v1025 = vmax.f32 %v993, 0.0
          %v1026 = vmax.f32 %v994, 0.0
          %v1027 = vmax.f32 %v995, 0.0
          %v1028 = vmax.f32 %v996, 0.0
          %v1029 = vmax.f32 %v997, 0.0
          %v1030 = vmax.f32 %v998, 0.0
          %v1031 = vmax.f32 %v999, 0.0
          %v1032 = vmax.f32 %v1000, 0.0
          %v1033 = vmax.f32 %v1001, 0.0
          %v1034 = vmax.f32 %v1002, 0.0
          %v1035 = vmax.f32 %v1003, 0.0
          %v1036 = vmax.f32 %v1004, 0.0
          %v1037 = vmax.f32 %v1005, 0.0
          %v1038 = vmax.f32 %v1006, 0.0
          %v1039 = vpack.c.bf16 %v1008, %v1007
          %v1040 = vpack.c.bf16 %v1010, %v1009
          %v1041 = vpack.c.bf16 %v1012, %v1011
          %v1042 = vpack.c.bf16 %v1014, %v1013
          %v1043 = vpack.c.bf16 %v1016, %v1015
          %v1044 = vpack.c.bf16 %v1018, %v1017
          %v1045 = vpack.c.bf16 %v1020, %v1019
          %v1046 = vpack.c.bf16 %v1022, %v1021
          %v1047 = vpack.c.bf16 %v1024, %v1023
          %v1048 = vpack.c.bf16 %v1026, %v1025
          %v1049 = vpack.c.bf16 %v1028, %v1027
          %v1050 = vpack.c.bf16 %v1030, %v1029
          %v1051 = vpack.c.bf16 %v1032, %v1031
          %v1052 = vpack.c.bf16 %v1034, %v1033
          %v1053 = vpack.c.bf16 %v1036, %v1035
          %v1054 = vpack.c.bf16 %v1038, %v1037
          %v1055 = vld [vmem:[%s2] sm:$0xf]
          %v1056 = vld [vmem:[%s2 + $0x4] sm:$0xf]
          %v1057 = vld [vmem:[%s2 + $0x8] sm:$0xf]
          %v1058 = vld [vmem:[%s2 + $0xc] sm:$0xf]
          %v1063 = vunpack.c.l.b16 %v1055
          %v1064 = vunpack.c.l.b16 %v1056
          %v1065 = vunpack.c.l.b16 %v1057
          %v1066 = vunpack.c.l.b16 %v1058
          %v1067 = vpack.c.b16 %v1064, %v1063
          %v1068 = vpack.c.b16 %v1066, %v1065
          %v1072 = vsel %vm938, %v1039, 0
          %v1075 = vsel %vm938, %v1040, 0
          %v1078 = vsel %vm938, %v1041, 0
          %v1081 = vsel %vm938, %v1042, 0
          %v1084 = vsel %vm938, %v1043, 0
          %v1087 = vsel %vm938, %v1044, 0
          %v1090 = vsel %vm938, %v1045, 0
          %v1093 = vsel %vm938, %v1046, 0
          %v1096 = vsel %vm938, %v1047, 0
          %v1099 = vsel %vm938, %v1048, 0
          %v1102 = vsel %vm938, %v1049, 0
          %v1105 = vsel %vm938, %v1050, 0
          %v1108 = vsel %vm938, %v1051, 0
          %v1111 = vsel %vm938, %v1052, 0
          %v1114 = vsel %vm938, %v1053, 0
          %v1117 = vsel %vm938, %v1054, 0
          %1119 = vmatprep.subr.bf16.mxu0 0
          %1120 = vmatpush1.bf16.msra.mxu0 %v1067
          %1121 = vmatprep.subr.bf16.mxu0 0
          %1122 = vmatpush1.bf16.msra.mxu0 %v1068
          %1123 = vmatprep.subr.bf16.mxu0 0
          %1124 = vmatpush1.bf16.msra.mxu0 0
          %1125 = vmatprep.subr.bf16.mxu0 0
          %1126 = vmatpush1.bf16.msra.mxu0 0
          %1127 = vmatprep.subr.bf16.mxu0 0
          %1128 = vmatpush1.bf16.msra.mxu0 0
          %1129 = vmatprep.subr.bf16.mxu0 0
          %1130 = vmatpush1.bf16.msra.mxu0 0
          %1131 = vmatprep.subr.bf16.mxu0 0
          %1132 = vmatpush1.bf16.msra.mxu0 0
          %1133 = vmatprep.subr.bf16.mxu0 0
          %1134 = vmatpush1.bf16.msra.mxu0 0
          %1135 = vmatprep.subr.bf16.mxu0 0
          %1136 = vmatpush1.bf16.msra.mxu0 0
          %1137 = vmatprep.subr.bf16.mxu0 0
          %1138 = vmatpush1.bf16.msra.mxu0 0
          %1139 = vmatprep.subr.bf16.mxu0 0
          %1140 = vmatpush1.bf16.msra.mxu0 0
          %1141 = vmatprep.subr.bf16.mxu0 0
          %1142 = vmatpush1.bf16.msra.mxu0 0
          %1143 = vmatprep.subr.bf16.mxu0 0
          %1144 = vmatpush1.bf16.msra.mxu0 0
          %1145 = vmatprep.subr.bf16.mxu0 0
          %1146 = vmatpush1.bf16.msra.mxu0 0
          %1147 = vmatprep.subr.bf16.mxu0 0
          %1148 = vmatpush1.bf16.msra.mxu0 0
          %1149 = vmatprep.subr.bf16.mxu0 0
          %1150 = vmatpush1.bf16.msra.mxu0 0
          %1151 = vmatprep.mubr.bf16.mxu0 0
          %1152 = vmatmul.mubr.bf16.gmra.mrb[0].mxu0 %v1072
          %v1153 = vpop.f32.mrb[0].mxu0
          %v1154 = vadd.f32 0.0, %v1153
          %v1155 = vpop.f32.mrb[0].mxu0
          %v1156 = vpop.f32.mrb[0].mxu0
          %v1157 = vadd.f32 0.0, %v1156
          %v1158 = vpop.f32.mrb[0].mxu0
          %1159 = vmatprep.mubr.bf16.mxu0 0
          %1160 = vmatmul.mubr.bf16.gmra.mrb[0].mxu0 %v1075
          %v1161 = vpop.f32.mrb[0].mxu0
          %v1162 = vadd.f32 0.0, %v1161
          %v1163 = vpop.f32.mrb[0].mxu0
          %v1164 = vpop.f32.mrb[0].mxu0
          %v1165 = vadd.f32 0.0, %v1164
          %v1166 = vpop.f32.mrb[0].mxu0
          %1167 = vmatprep.mubr.bf16.mxu0 0
          %1168 = vmatmul.mubr.bf16.gmra.mrb[0].mxu0 %v1078
          %v1169 = vpop.f32.mrb[0].mxu0
          %v1170 = vadd.f32 0.0, %v1169
          %v1171 = vpop.f32.mrb[0].mxu0
          %v1172 = vpop.f32.mrb[0].mxu0
          %v1173 = vadd.f32 0.0, %v1172
          %v1174 = vpop.f32.mrb[0].mxu0
          %1175 = vmatprep.mubr.bf16.mxu0 0
          %1176 = vmatmul.mubr.bf16.gmra.mrb[0].mxu0 %v1081
          %v1177 = vpop.f32.mrb[0].mxu0
          %v1178 = vadd.f32 0.0, %v1177
          %v1179 = vpop.f32.mrb[0].mxu0
          %v1180 = vpop.f32.mrb[0].mxu0
          %v1181 = vadd.f32 0.0, %v1180
          %v1182 = vpop.f32.mrb[0].mxu0
          %1183 = vmatprep.mubr.bf16.mxu0 0
          %1184 = vmatmul.mubr.bf16.gmra.mrb[0].mxu0 %v1084
          %v1185 = vpop.f32.mrb[0].mxu0
          %v1186 = vadd.f32 0.0, %v1185
          %v1187 = vpop.f32.mrb[0].mxu0
          %v1188 = vpop.f32.mrb[0].mxu0
          %v1189 = vadd.f32 0.0, %v1188
          %v1190 = vpop.f32.mrb[0].mxu0
          %1191 = vmatprep.mubr.bf16.mxu0 0
          %1192 = vmatmul.mubr.bf16.gmra.mrb[0].mxu0 %v1087
          %v1193 = vpop.f32.mrb[0].mxu0
          %v1194 = vadd.f32 0.0, %v1193
          %v1195 = vpop.f32.mrb[0].mxu0
          %v1196 = vpop.f32.mrb[0].mxu0
          %v1197 = vadd.f32 0.0, %v1196
          %v1198 = vpop.f32.mrb[0].mxu0
          %1199 = vmatprep.mubr.bf16.mxu0 0
          %1200 = vmatmul.mubr.bf16.gmra.mrb[0].mxu0 %v1090
          %v1201 = vpop.f32.mrb[0].mxu0
          %v1202 = vadd.f32 0.0, %v1201
          %v1203 = vpop.f32.mrb[0].mxu0
          %v1204 = vpop.f32.mrb[0].mxu0
          %v1205 = vadd.f32 0.0, %v1204
          %v1206 = vpop.f32.mrb[0].mxu0
          %1207 = vmatprep.mubr.bf16.mxu0 0
          %1208 = vmatmul.mubr.bf16.gmra.mrb[0].mxu0 %v1093
          %v1209 = vpop.f32.mrb[0].mxu0
          %v1210 = vadd.f32 0.0, %v1209
          %v1211 = vpop.f32.mrb[0].mxu0
          %v1212 = vpop.f32.mrb[0].mxu0
          %v1213 = vadd.f32 0.0, %v1212
          %v1214 = vpop.f32.mrb[0].mxu0
          %1215 = vmatprep.mubr.bf16.mxu0 0
          %1216 = vmatmul.mubr.bf16.gmra.mrb[0].mxu0 %v1096
          %v1217 = vpop.f32.mrb[0].mxu0
          %v1218 = vadd.f32 0.0, %v1217
          %v1219 = vpop.f32.mrb[0].mxu0
          %v1220 = vpop.f32.mrb[0].mxu0
          %v1221 = vadd.f32 0.0, %v1220
          %v1222 = vpop.f32.mrb[0].mxu0
          %1223 = vmatprep.mubr.bf16.mxu0 0
          %1224 = vmatmul.mubr.bf16.gmra.mrb[0].mxu0 %v1099
          %v1225 = vpop.f32.mrb[0].mxu0
          %v1226 = vadd.f32 0.0, %v1225
          %v1227 = vpop.f32.mrb[0].mxu0
          %v1228 = vpop.f32.mrb[0].mxu0
          %v1229 = vadd.f32 0.0, %v1228
          %v1230 = vpop.f32.mrb[0].mxu0
          %1231 = vmatprep.mubr.bf16.mxu0 0
          %1232 = vmatmul.mubr.bf16.gmra.mrb[0].mxu0 %v1102
          %v1233 = vpop.f32.mrb[0].mxu0
          %v1234 = vadd.f32 0.0, %v1233
          %v1235 = vpop.f32.mrb[0].mxu0
          %v1236 = vpop.f32.mrb[0].mxu0
          %v1237 = vadd.f32 0.0, %v1236
          %v1238 = vpop.f32.mrb[0].mxu0
          %1239 = vmatprep.mubr.bf16.mxu0 0
          %1240 = vmatmul.mubr.bf16.gmra.mrb[0].mxu0 %v1105
          %v1241 = vpop.f32.mrb[0].mxu0
          %v1242 = vadd.f32 0.0, %v1241
          %v1243 = vpop.f32.mrb[0].mxu0
          %v1244 = vpop.f32.mrb[0].mxu0
          %v1245 = vadd.f32 0.0, %v1244
          %v1246 = vpop.f32.mrb[0].mxu0
          %1247 = vmatprep.mubr.bf16.mxu0 0
          %1248 = vmatmul.mubr.bf16.gmra.mrb[0].mxu0 %v1108
          %v1249 = vpop.f32.mrb[0].mxu0
          %v1250 = vadd.f32 0.0, %v1249
          %v1251 = vpop.f32.mrb[0].mxu0
          %v1252 = vpop.f32.mrb[0].mxu0
          %v1253 = vadd.f32 0.0, %v1252
          %v1254 = vpop.f32.mrb[0].mxu0
          %1255 = vmatprep.mubr.bf16.mxu0 0
          %1256 = vmatmul.mubr.bf16.gmra.mrb[0].mxu0 %v1111
          %v1257 = vpop.f32.mrb[0].mxu0
          %v1258 = vadd.f32 0.0, %v1257
          %v1259 = vpop.f32.mrb[0].mxu0
          %v1260 = vpop.f32.mrb[0].mxu0
          %v1261 = vadd.f32 0.0, %v1260
          %v1262 = vpop.f32.mrb[0].mxu0
          %1263 = vmatprep.mubr.bf16.mxu0 0
          %1264 = vmatmul.mubr.bf16.gmra.mrb[0].mxu0 %v1114
          %v1265 = vpop.f32.mrb[0].mxu0
          %v1266 = vadd.f32 0.0, %v1265
          %v1267 = vpop.f32.mrb[0].mxu0
          %v1268 = vpop.f32.mrb[0].mxu0
          %v1269 = vadd.f32 0.0, %v1268
          %v1270 = vpop.f32.mrb[0].mxu0
          %1271 = vmatprep.mubr.bf16.mxu0 0
          %1272 = vmatmul.mubr.bf16.gmra.mrb[0].mxu0 %v1117
          %v1273 = vpop.f32.mrb[0].mxu0
          %v1274 = vadd.f32 0.0, %v1273
          %v1275 = vpop.f32.mrb[0].mxu0
          %v1276 = vpop.f32.mrb[0].mxu0
          %v1277 = vadd.f32 0.0, %v1276
          %v1278 = vpop.f32.mrb[0].mxu0
          %1279 = vdwg.mxu0
          %v1280 = vpack.c.bf16 %v1157, %v1154
          %v1281 = vpack.c.bf16 %v1165, %v1162
          %v1282 = vpack.c.bf16 %v1173, %v1170
          %v1283 = vpack.c.bf16 %v1181, %v1178
          %v1284 = vpack.c.bf16 %v1189, %v1186
          %v1285 = vpack.c.bf16 %v1197, %v1194
          %v1286 = vpack.c.bf16 %v1205, %v1202
          %v1287 = vpack.c.bf16 %v1213, %v1210
          %v1288 = vpack.c.bf16 %v1221, %v1218
          %v1289 = vpack.c.bf16 %v1229, %v1226
          %v1290 = vpack.c.bf16 %v1237, %v1234
          %v1291 = vpack.c.bf16 %v1245, %v1242
          %v1292 = vpack.c.bf16 %v1253, %v1250
          %v1293 = vpack.c.bf16 %v1261, %v1258
          %v1294 = vpack.c.bf16 %v1269, %v1266
          %v1295 = vpack.c.bf16 %v1277, %v1274
          %v1312 = vunpack.c.l.b16 %v1280
          %v1313 = vunpack.c.h.b16 %v1280
          %v1314 = vunpack.c.l.b16 %v1281
          %v1315 = vunpack.c.h.b16 %v1281
          %v1316 = vunpack.c.l.b16 %v1282
          %v1317 = vunpack.c.h.b16 %v1282
          %v1318 = vunpack.c.l.b16 %v1283
          %v1319 = vunpack.c.h.b16 %v1283
          %v1320 = vunpack.c.l.b16 %v1284
          %v1321 = vunpack.c.h.b16 %v1284
          %v1322 = vunpack.c.l.b16 %v1285
          %v1323 = vunpack.c.h.b16 %v1285
          %v1324 = vunpack.c.l.b16 %v1286
          %v1325 = vunpack.c.h.b16 %v1286
          %v1326 = vunpack.c.l.b16 %v1287
          %v1327 = vunpack.c.h.b16 %v1287
          %v1328 = vunpack.c.l.b16 %v1288
          %v1329 = vunpack.c.h.b16 %v1288
          %v1330 = vunpack.c.l.b16 %v1289
          %v1331 = vunpack.c.h.b16 %v1289
          %v1332 = vunpack.c.l.b16 %v1290
          %v1333 = vunpack.c.h.b16 %v1290
          %v1334 = vunpack.c.l.b16 %v1291
          %v1335 = vunpack.c.h.b16 %v1291
          %v1336 = vunpack.c.l.b16 %v1292
          %v1337 = vunpack.c.h.b16 %v1292
          %v1338 = vunpack.c.l.b16 %v1293
          %v1339 = vunpack.c.h.b16 %v1293
          %v1340 = vunpack.c.l.b16 %v1294
          %v1341 = vunpack.c.h.b16 %v1294
          %v1342 = vunpack.c.l.b16 %v1295
          %v1343 = vunpack.c.h.b16 %v1295
          %v1344 = vpack.c.b16 %v1312, %v1312
          %v1345 = vpack.c.b16 %v1313, %v1313
          %v1346 = vpack.c.b16 %v1314, %v1314
          %v1347 = vpack.c.b16 %v1315, %v1315
          %v1348 = vpack.c.b16 %v1316, %v1316
          %v1349 = vpack.c.b16 %v1317, %v1317
          %v1350 = vpack.c.b16 %v1318, %v1318
          %v1351 = vpack.c.b16 %v1319, %v1319
          %v1352 = vpack.c.b16 %v1320, %v1320
          %v1353 = vpack.c.b16 %v1321, %v1321
          %v1354 = vpack.c.b16 %v1322, %v1322
          %v1355 = vpack.c.b16 %v1323, %v1323
          %v1356 = vpack.c.b16 %v1324, %v1324
          %v1357 = vpack.c.b16 %v1325, %v1325
          %v1358 = vpack.c.b16 %v1326, %v1326
          %v1359 = vpack.c.b16 %v1327, %v1327
          %v1360 = vpack.c.b16 %v1328, %v1328
          %v1361 = vpack.c.b16 %v1329, %v1329
          %v1362 = vpack.c.b16 %v1330, %v1330
          %v1363 = vpack.c.b16 %v1331, %v1331
          %v1364 = vpack.c.b16 %v1332, %v1332
          %v1365 = vpack.c.b16 %v1333, %v1333
          %v1366 = vpack.c.b16 %v1334, %v1334
          %v1367 = vpack.c.b16 %v1335, %v1335
          %v1368 = vpack.c.b16 %v1336, %v1336
          %v1369 = vpack.c.b16 %v1337, %v1337
          %v1370 = vpack.c.b16 %v1338, %v1338
          %v1371 = vpack.c.b16 %v1339, %v1339
          %v1372 = vpack.c.b16 %v1340, %v1340
          %v1373 = vpack.c.b16 %v1341, %v1341
          %v1374 = vpack.c.b16 %v1342, %v1342
          %v1375 = vpack.c.b16 %v1343, %v1343
          %vm1408 = vcmask 322560
          %1409 = vst.msk [vmem:[%s348] sm:$0xf] %vm1408, %v1344
          %1410 = vst.msk [vmem:[%s348 + $0x4] sm:$0xf] %vm1408, %v1345
          %1411 = vst.msk [vmem:[%s348 + $0x8] sm:$0xf] %vm1408, %v1346
          %1412 = vst.msk [vmem:[%s348 + $0xc] sm:$0xf] %vm1408, %v1347
          %1413 = vst.msk [vmem:[%s348 + $0x10] sm:$0xf] %vm1408, %v1348
          %1414 = vst.msk [vmem:[%s348 + $0x14] sm:$0xf] %vm1408, %v1349
          %1415 = vst.msk [vmem:[%s348 + $0x18] sm:$0xf] %vm1408, %v1350
          %1416 = vst.msk [vmem:[%s348 + $0x1c] sm:$0xf] %vm1408, %v1351
          %1417 = vst.msk [vmem:[%s348 + $0x20] sm:$0xf] %vm1408, %v1352
          %1418 = vst.msk [vmem:[%s348 + $0x24] sm:$0xf] %vm1408, %v1353
          %1419 = vst.msk [vmem:[%s348 + $0x28] sm:$0xf] %vm1408, %v1354
          %1420 = vst.msk [vmem:[%s348 + $0x2c] sm:$0xf] %vm1408, %v1355
          %1421 = vst.msk [vmem:[%s348 + $0x30] sm:$0xf] %vm1408, %v1356
          %1422 = vst.msk [vmem:[%s348 + $0x34] sm:$0xf] %vm1408, %v1357
          %1423 = vst.msk [vmem:[%s348 + $0x38] sm:$0xf] %vm1408, %v1358
          %1424 = vst.msk [vmem:[%s348 + $0x3c] sm:$0xf] %vm1408, %v1359
          %1425 = vst.msk [vmem:[%s348 + $0x40] sm:$0xf] %vm1408, %v1360
          %1426 = vst.msk [vmem:[%s348 + $0x44] sm:$0xf] %vm1408, %v1361
          %1427 = vst.msk [vmem:[%s348 + $0x48] sm:$0xf] %vm1408, %v1362
          %1428 = vst.msk [vmem:[%s348 + $0x4c] sm:$0xf] %vm1408, %v1363
          %1429 = vst.msk [vmem:[%s348 + $0x50] sm:$0xf] %vm1408, %v1364
          %1430 = vst.msk [vmem:[%s348 + $0x54] sm:$0xf] %vm1408, %v1365
          %1431 = vst.msk [vmem:[%s348 + $0x58] sm:$0xf] %vm1408, %v1366
          %1432 = vst.msk [vmem:[%s348 + $0x5c] sm:$0xf] %vm1408, %v1367
          %1433 = vst.msk [vmem:[%s348 + $0x60] sm:$0xf] %vm1408, %v1368
          %1434 = vst.msk [vmem:[%s348 + $0x64] sm:$0xf] %vm1408, %v1369
          %1435 = vst.msk [vmem:[%s348 + $0x68] sm:$0xf] %vm1408, %v1370
          %1436 = vst.msk [vmem:[%s348 + $0x6c] sm:$0xf] %vm1408, %v1371
          %1437 = vst.msk [vmem:[%s348 + $0x70] sm:$0xf] %vm1408, %v1372
          %1438 = vst.msk [vmem:[%s348 + $0x74] sm:$0xf] %vm1408, %v1373
          %1439 = vst.msk [vmem:[%s348 + $0x78] sm:$0xf] %vm1408, %v1374
          %1440 = vst.msk [vmem:[%s348 + $0x7c] sm:$0xf] %vm1408, %v1375
        $region78: #{cdrs_forward.5} parent=65 // pred_fallthru
          _
        %s1441 = smul.u32 32, %s18
        %p1442 = scmp.lt.s32.totalorder %s1441, 95
        %s1443 = scalar_select %p1442, %s1441, 95
        %s1444 = smul.addr %s1443, 4
        %s1445 = scalar_lea.vmem %s3, %s1444
        // Predicated region
        $region79: #{cdrs_forward.5} parent=65 // pred_check
          %p1446 = pneg %p114
        $region80: #{cdrs_forward.5} parent=65 // pred_check_branch
          %1448 = sbr.rel (%p1446) target = $region82
        $region81: #{cdrs_forward.5} parent=65 // pred_region
          %s1449 = smul.u32 32, %s18
        $region82: #{cdrs_forward.5} parent=65 // pred_fallthru
          _
      $region66: #{cdrs_forward.5} parent=5 // pred_fallthru
        _
      %p1450 = scmp.le.s32.totalorder 2, %s9
      // Predicated region
      $region83: #{cdrs_forward.5} parent=5 // pred_check
        %p1451 = pneg %p1450
      $region84: #{cdrs_forward.5} parent=5 // pred_check_branch
        %1453 = sbr.rel (%p1451) target = $region86
      $region85: #{cdrs_forward.5} parent=5 // pred_region
        %s1454 = ssub.s32 %s9, 2
        // Predicated region
        $region87: #{cdrs_forward.5} parent=85 // pred_check
          %p1455 = pneg %p120
        $region88: #{cdrs_forward.5} parent=85 // pred_check_branch
          %1457 = sbr.rel (%p1455) target = $region90
        $region89: #{cdrs_forward.5} parent=85 // pred_region
          %s1458 = smul.u32 32, %s20
          %p1459 = scmp.lt.s32.totalorder %s1458, 95
          %s1460 = scalar_select %p1459, %s1458, 95
          %s1461 = smul.addr %s1460, 4
          %s1462 = scalar_lea.vmem %s3, %s1461
        $region90: #{cdrs_forward.5} parent=85 // pred_fallthru
          _
      $region86: #{cdrs_forward.5} parent=5 // pred_fallthru
        _
    $region6: #{cdrs_forward.5} parent=1 // loop_footer
      %s13 = sadd.s32 1, %s9
    $region7: #{cdrs_forward.5} parent=1 // loop_footer_branch
      %8 = sbr.rel target = $region3
    $region8: #{cdrs_forward.5} parent=1 // loop_exit
      _

// kernel: cdrs_forward.6
$region0: #{cdrs_forward.6}
  #allocation0 [shape = 'u32[]', space=smem, size = 0x4, offset = 0x4, fixed_abs, tag = 'smem constant byte address 0x4 - core index']
  #allocation1 [shape = 'u32[144,128]{1,0:T(1,128)}', space=vmem, size = 0x12000, scoped, tag = 'internal scratch']
  %s0 = inlined_call_operand.vmem [shape: bf16[768,768], index: 0, kind: input, shape index: {}]
  %s1 = inlined_call_operand.vmem [shape: bf16[768,40], index: 1, kind: input, shape index: {}]
  %s2 = inlined_call_operand.vmem [shape: f32[768,40], index: 2, kind: output, shape index: {0}]
  %s3 = inlined_call_operand.vmem [shape: f32[768,8], index: 3, kind: output, shape index: {1}]
  %s4 = inlined_call_operand.vmem [shape: f32[768,8], index: 4, kind: output, shape index: {2}]
  %5 = xla_tuple %s2, %s3, %s4
  %s6 = sld [smem:[#allocation0]]
  $region103: #{cdrs_forward.6} parent=0
    _
  %s8 = ssub.s32 1, %s6
  %s9 = scalar_select 0, %s8, %s6
  $region1: #{cdrs_forward.6} parent=0
    #allocation2 [shape = 'u8[262144]{0}', space=vmem, size = 0x40000, scoped, tag = 'input window, operand 0']
    loop: start=0, step=1, limit=11
    $region2: #{cdrs_forward.6} parent=1 // loop_pre_header
      _
    $region3: #{cdrs_forward.6} parent=1 // loop_header
      %s11 = sphi 0, %s15
      %p12 = scmp.ge.s32.totalorder %s11, 11
      %s18 = sphi 0, %s30
      %s19 = sphi 0, %s26
      %s20 = sphi 0, %s18
      %s21 = sphi 0, %s19
      %s22 = sphi 0, %s20
      %s23 = sphi 0, %s21
      %s35 = sphi 0, %s37
      %s38 = sphi 0, %s35
      %s39 = sphi 0, %s38
      %s55 = sphi 0, %s39
      %s59 = sphi 0, %s59
      %s61 = sphi 0, %s59
      %s62 = sphi 0, %s61
      %s76 = sphi 0, %s62
      %s82 = sphi 0, %s84
      %s85 = sphi 0, %s82
      %s86 = sphi 0, %s85
      %s102 = sphi 0, %s86
      %s108 = sphi 0, %s110
      %s111 = sphi 0, %s108
      %s112 = sphi 0, %s111
      %s128 = sphi 0, %s112
      %s134 = sphi 0, %s136
      %s137 = sphi 0, %s134
      %s138 = sphi 0, %s137
      %s154 = sphi 0, %s138
    $region4: #{cdrs_forward.6} parent=1 // loop_header_branch
      %14 = sbr.rel (%p12) target = $region8
    $region5: #{cdrs_forward.6} parent=1 // loop_body
      %s16 = ssub.s32 %s11, 1
      %s17 = ssub.s32 %s11, 2
      %s24 = sadd.s32 1, %s19
      %p25 = scmp.ge.s32.totalorder %s24, 3
      %s26 = scalar_select %p25, 0, %s24
      %s27 = sadd.s32 1, %s18
      %s28 = scalar_select %p25, %s27, %s18
      %p29 = scmp.ge.s32.totalorder %s28, 3
      %s30 = scalar_select %p29, 0, %s28
      %s31 = ssub.s32 %s18, %s30
      %s32 = ssub.s32 %s19, %s26
      %s33 = sor.u32 %s31, %s32
      %p34 = scmp.eq.s32.totalorder %s33, 0
      %s36 = sadd.s32 %s35, 1
      %s37 = scalar_select %p34, %s35, %s36
      %p40 = pneg %p34
      %p41 = scmp.eq.s32.totalorder %s11, 8
      %p42 = por %p40, %p41
      %p43 = scmp.ne.s32.totalorder %s35, %s38
      %p44 = scmp.eq.s32.totalorder %s11, 0
      %p45 = por %p43, %p44
      %p46 = scmp.ne.s32.totalorder %s35, %s38
      %p47 = scmp.eq.s32.totalorder %s16, 8
      %p48 = por %p46, %p47
      %p49 = scmp.ne.s32.totalorder %s38, %s39
      %p50 = scmp.eq.s32.totalorder %s16, 0
      %p51 = por %p49, %p50
      %p52 = scmp.ne.s32.totalorder %s38, %s39
      %p53 = scmp.eq.s32.totalorder %s17, 8
      %p54 = por %p52, %p53
      %p56 = scmp.ne.s32.totalorder %s39, %s55
      %p57 = scmp.eq.s32.totalorder %s17, 0
      %p58 = por %p56, %p57
      %s60 = sadd.s32 %s59, 1
      %p63 = scmp.eq.s32.totalorder %s11, 8
      %p64 = scmp.ne.s32.totalorder %s59, %s61
      %p65 = scmp.eq.s32.totalorder %s11, 0
      %p66 = por %p64, %p65
      %p67 = scmp.ne.s32.totalorder %s59, %s61
      %p68 = scmp.eq.s32.totalorder %s16, 8
      %p69 = por %p67, %p68
      %p70 = scmp.ne.s32.totalorder %s61, %s62
      %p71 = scmp.eq.s32.totalorder %s16, 0
      %p72 = por %p70, %p71
      %p73 = scmp.ne.s32.totalorder %s61, %s62
      %p74 = scmp.eq.s32.totalorder %s17, 8
      %p75 = por %p73, %p74
      %p77 = scmp.ne.s32.totalorder %s62, %s76
      %p78 = scmp.eq.s32.totalorder %s17, 0
      %p79 = por %p77, %p78
      %s80 = ssub.s32 %s18, %s30
      %p81 = scmp.eq.s32.totalorder %s80, 0
      %s83 = sadd.s32 %s82, 1
      %s84 = scalar_select %p81, %s82, %s83
      %p87 = pneg %p81
      %p88 = scmp.eq.s32.totalorder %s11, 8
      %p89 = por %p87, %p88
      %p90 = scmp.ne.s32.totalorder %s82, %s85
      %p91 = scmp.eq.s32.totalorder %s11, 0
      %p92 = por %p90, %p91
      %p93 = scmp.ne.s32.totalorder %s82, %s85
      %p94 = scmp.eq.s32.totalorder %s16, 8
      %p95 = por %p93, %p94
      %p96 = scmp.ne.s32.totalorder %s85, %s86
      %p97 = scmp.eq.s32.totalorder %s16, 0
      %p98 = por %p96, %p97
      %p99 = scmp.ne.s32.totalorder %s85, %s86
      %p100 = scmp.eq.s32.totalorder %s17, 8
      %p101 = por %p99, %p100
      %p103 = scmp.ne.s32.totalorder %s86, %s102
      %p104 = scmp.eq.s32.totalorder %s17, 0
      %p105 = por %p103, %p104
      %s106 = ssub.s32 %s18, %s30
      %p107 = scmp.eq.s32.totalorder %s106, 0
      %s109 = sadd.s32 %s108, 1
      %s110 = scalar_select %p107, %s108, %s109
      %p113 = pneg %p107
      %p114 = scmp.eq.s32.totalorder %s11, 8
      %p115 = por %p113, %p114
      %p116 = scmp.ne.s32.totalorder %s108, %s111
      %p117 = scmp.eq.s32.totalorder %s11, 0
      %p118 = por %p116, %p117
      %p119 = scmp.ne.s32.totalorder %s108, %s111
      %p120 = scmp.eq.s32.totalorder %s16, 8
      %p121 = por %p119, %p120
      %p122 = scmp.ne.s32.totalorder %s111, %s112
      %p123 = scmp.eq.s32.totalorder %s16, 0
      %p124 = por %p122, %p123
      %p125 = scmp.ne.s32.totalorder %s111, %s112
      %p126 = scmp.eq.s32.totalorder %s17, 8
      %p127 = por %p125, %p126
      %p129 = scmp.ne.s32.totalorder %s112, %s128
      %p130 = scmp.eq.s32.totalorder %s17, 0
      %p131 = por %p129, %p130
      %s132 = ssub.s32 %s18, %s30
      %p133 = scmp.eq.s32.totalorder %s132, 0
      %s135 = sadd.s32 %s134, 1
      %s136 = scalar_select %p133, %s134, %s135
      %p139 = pneg %p133
      %p140 = scmp.eq.s32.totalorder %s11, 8
      %p141 = por %p139, %p140
      %p142 = scmp.ne.s32.totalorder %s134, %s137
      %p143 = scmp.eq.s32.totalorder %s11, 0
      %p144 = por %p142, %p143
      %p145 = scmp.ne.s32.totalorder %s134, %s137
      %p146 = scmp.eq.s32.totalorder %s16, 8
      %p147 = por %p145, %p146
      %p148 = scmp.ne.s32.totalorder %s137, %s138
      %p149 = scmp.eq.s32.totalorder %s16, 0
      %p150 = por %p148, %p149
      %p151 = scmp.ne.s32.totalorder %s137, %s138
      %p152 = scmp.eq.s32.totalorder %s17, 8
      %p153 = por %p151, %p152
      %p155 = scmp.ne.s32.totalorder %s138, %s154
      %p156 = scmp.eq.s32.totalorder %s17, 0
      %p157 = por %p155, %p156
      %p158 = scmp.le.s32.totalorder 1, %s11
      %p159 = scmp.lt.s32.totalorder %s11, 10
      %p160 = pnand %p158, %p159
      %p161 = pneg %p160
      // Predicated region
      $region9: #{cdrs_forward.6} parent=5 // pred_check
        _
      $region10: #{cdrs_forward.6} parent=5 // pred_check_branch
        %163 = sbr.rel (%p160) target = $region12
      $region11: #{cdrs_forward.6} parent=5 // pred_region
        %s164 = ssub.s32 %s11, 1
        // Predicated region
        $region13: #{cdrs_forward.6} parent=11 // pred_check
          %p165 = pneg %p72
        $region14: #{cdrs_forward.6} parent=11 // pred_check_branch
          %167 = sbr.rel (%p165) target = $region16
        $region15: #{cdrs_forward.6} parent=11 // pred_region
          _
        $region16: #{cdrs_forward.6} parent=11 // pred_fallthru
          _
      $region12: #{cdrs_forward.6} parent=5 // pred_fallthru
        _
      %p168 = scmp.lt.s32.totalorder %s11, 9
      // Predicated region
      $region17: #{cdrs_forward.6} parent=5 // pred_check
        %p169 = pneg %p168
      $region18: #{cdrs_forward.6} parent=5 // pred_check_branch
        %171 = sbr.rel (%p169) target = $region20
      $region19: #{cdrs_forward.6} parent=5 // pred_region
        // Predicated region
        $region21: #{cdrs_forward.6} parent=19 // pred_check
          %p172 = pneg %p45
        $region22: #{cdrs_forward.6} parent=19 // pred_check_branch
          %174 = sbr.rel (%p172) target = $region24
        $region23: #{cdrs_forward.6} parent=19 // pred_region
          %s175 = sand.u32 %s35, 1
          %s176 = sand.u32 %s35, 1
          %s177 = smul.addr %s176, 256
          %s178 = scalar_lea.vmem [#allocation2], %s177
          %s179 = smul.u32 32, %s18
          %s180 = smul.u32 2, %s19
          %s181 = smul.addr %s179, 6
          %s182 = sadd.s32 %s180, %s181
          %s183 = smul.addr %s182, 4
          %s184 = scalar_lea.vmem %s0, %s183
          // Predicated region
          $region25: #{cdrs_forward.6} parent=23 // pred_check
            _
          $region26: #{cdrs_forward.6} parent=23 // pred_check_branch
            %186 = sbr.rel (0) target = $region28
          $region27: #{cdrs_forward.6} parent=23 // pred_region
            // Predicated region
            $region29: #{cdrs_forward.6} parent=27 // pred_check
              _
            $region30: #{cdrs_forward.6} parent=27 // pred_check_branch
              %188 = sbr.rel (0) target = $region32
            $region31: #{cdrs_forward.6} parent=27 // pred_region
              // Predicated region
              $region44: #{cdrs_forward.6} parent=31 // pred_check
                _
              $region45: #{cdrs_forward.6} parent=31 // pred_check_branch
                %265 = sbr.rel (0) target = $region47
              $region46: #{cdrs_forward.6} parent=31 // pred_region
                loop: start=0, step=1, limit=1
                $region48: #{cdrs_forward.6} parent=46 // loop_pre_header
                  _
                $region49: #{cdrs_forward.6} parent=46 // loop_header
                  %s267 = sphi 0, %s271
                  %p268 = scmp.ge.s32.totalorder %s267, 1
                  %s272 = sphi %s184, %s184
                  %s273 = sphi %s178, %s178
                $region50: #{cdrs_forward.6} parent=46 // loop_header_branch
                  %270 = sbr.rel (%p268) target = $region54
                $region51: #{cdrs_forward.6} parent=46 // loop_body
                  %v274 = vld [vmem:[%s272] sm:$0xff]
                  %275 = vst [vmem:[%s273] sm:$0xff] %v274
                  %v276 = vld [vmem:[%s272 + $0x18] sm:$0xff]
                  %277 = vst [vmem:[%s273 + $0x8] sm:$0xff] %v276
                  %v278 = vld [vmem:[%s272 + $0x30] sm:$0xff]
                  %279 = vst [vmem:[%s273 + $0x10] sm:$0xff] %v278
                  %v280 = vld [vmem:[%s272 + $0x48] sm:$0xff]
                  %281 = vst [vmem:[%s273 + $0x18] sm:$0xff] %v280
                  %v282 = vld [vmem:[%s272 + $0x60] sm:$0xff]
                  %283 = vst [vmem:[%s273 + $0x20] sm:$0xff] %v282
                  %v284 = vld [vmem:[%s272 + $0x78] sm:$0xff]
                  %285 = vst [vmem:[%s273 + $0x28] sm:$0xff] %v284
                  %v286 = vld [vmem:[%s272 + $0x90] sm:$0xff]
                  %287 = vst [vmem:[%s273 + $0x30] sm:$0xff] %v286
                  %v288 = vld [vmem:[%s272 + $0xa8] sm:$0xff]
                  %289 = vst [vmem:[%s273 + $0x38] sm:$0xff] %v288
                  %v290 = vld [vmem:[%s272 + $0xc0] sm:$0xff]
                  %291 = vst [vmem:[%s273 + $0x40] sm:$0xff] %v290
                  %v292 = vld [vmem:[%s272 + $0xd8] sm:$0xff]
                  %293 = vst [vmem:[%s273 + $0x48] sm:$0xff] %v292
                  %v294 = vld [vmem:[%s272 + $0xf0] sm:$0xff]
                  %295 = vst [vmem:[%s273 + $0x50] sm:$0xff] %v294
                  %v296 = vld [vmem:[%s272 + $0x108] sm:$0xff]
                  %297 = vst [vmem:[%s273 + $0x58] sm:$0xff] %v296
                  %v298 = vld [vmem:[%s272 + $0x120] sm:$0xff]
                  %299 = vst [vmem:[%s273 + $0x60] sm:$0xff] %v298
                  %v300 = vld [vmem:[%s272 + $0x138] sm:$0xff]
                  %301 = vst [vmem:[%s273 + $0x68] sm:$0xff] %v300
                  %v302 = vld [vmem:[%s272 + $0x150] sm:$0xff]
                  %303 = vst [vmem:[%s273 + $0x70] sm:$0xff] %v302
                  %v304 = vld [vmem:[%s272 + $0x168] sm:$0xff]
                  %305 = vst [vmem:[%s273 + $0x78] sm:$0xff] %v304
                  %v306 = vld [vmem:[%s272 + $0x180] sm:$0xff]
                  %307 = vst [vmem:[%s273 + $0x80] sm:$0xff] %v306
                  %v308 = vld [vmem:[%s272 + $0x198] sm:$0xff]
                  %309 = vst [vmem:[%s273 + $0x88] sm:$0xff] %v308
                  %v310 = vld [vmem:[%s272 + $0x1b0] sm:$0xff]
                  %311 = vst [vmem:[%s273 + $0x90] sm:$0xff] %v310
                  %v312 = vld [vmem:[%s272 + $0x1c8] sm:$0xff]
                  %313 = vst [vmem:[%s273 + $0x98] sm:$0xff] %v312
                  %v314 = vld [vmem:[%s272 + $0x1e0] sm:$0xff]
                  %315 = vst [vmem:[%s273 + $0xa0] sm:$0xff] %v314
                  %v316 = vld [vmem:[%s272 + $0x1f8] sm:$0xff]
                  %317 = vst [vmem:[%s273 + $0xa8] sm:$0xff] %v316
                  %v318 = vld [vmem:[%s272 + $0x210] sm:$0xff]
                  %319 = vst [vmem:[%s273 + $0xb0] sm:$0xff] %v318
                  %v320 = vld [vmem:[%s272 + $0x228] sm:$0xff]
                  %321 = vst [vmem:[%s273 + $0xb8] sm:$0xff] %v320
                  %v322 = vld [vmem:[%s272 + $0x240] sm:$0xff]
                  %323 = vst [vmem:[%s273 + $0xc0] sm:$0xff] %v322
                  %v324 = vld [vmem:[%s272 + $0x258] sm:$0xff]
                  %325 = vst [vmem:[%s273 + $0xc8] sm:$0xff] %v324
                  %v326 = vld [vmem:[%s272 + $0x270] sm:$0xff]
                  %327 = vst [vmem:[%s273 + $0xd0] sm:$0xff] %v326
                  %v328 = vld [vmem:[%s272 + $0x288] sm:$0xff]
                  %329 = vst [vmem:[%s273 + $0xd8] sm:$0xff] %v328
                  %v330 = vld [vmem:[%s272 + $0x2a0] sm:$0xff]
                  %331 = vst [vmem:[%s273 + $0xe0] sm:$0xff] %v330
                  %v332 = vld [vmem:[%s272 + $0x2b8] sm:$0xff]
                  %333 = vst [vmem:[%s273 + $0xe8] sm:$0xff] %v332
                  %v334 = vld [vmem:[%s272 + $0x2d0] sm:$0xff]
                  %335 = vst [vmem:[%s273 + $0xf0] sm:$0xff] %v334
                  %v336 = vld [vmem:[%s272 + $0x2e8] sm:$0xff]
                  %337 = vst [vmem:[%s273 + $0xf8] sm:$0xff] %v336
                $region52: #{cdrs_forward.6} parent=46 // loop_footer
                  %s271 = sadd.s32 1, %s267
                $region53: #{cdrs_forward.6} parent=46 // loop_footer_branch
                  %266 = sbr.rel target = $region49
                $region54: #{cdrs_forward.6} parent=46 // loop_exit
                  _
              $region47: #{cdrs_forward.6} parent=31 // pred_fallthru
                _
              // Predicated region
              $region55: #{cdrs_forward.6} parent=31 // pred_check
                _
              $region56: #{cdrs_forward.6} parent=31 // pred_check_branch
                %339 = sbr.rel target = $region58
              $region57: #{cdrs_forward.6} parent=31 // pred_region
                _
              $region58: #{cdrs_forward.6} parent=31 // pred_fallthru
                _
            $region32: #{cdrs_forward.6} parent=27 // pred_fallthru
              _
            // Predicated region
            $region33: #{cdrs_forward.6} parent=27 // pred_check
              _
            $region34: #{cdrs_forward.6} parent=27 // pred_check_branch
              %190 = sbr.rel target = $region36
            $region35: #{cdrs_forward.6} parent=27 // pred_region
              loop: start=0, step=1, limit=1
              $region37: #{cdrs_forward.6} parent=35 // loop_pre_header
                _
              $region38: #{cdrs_forward.6} parent=35 // loop_header
                %s193 = sphi 0, %s197
                %p194 = scmp.ge.s32.totalorder %s193, 1
                %s198 = sphi %s184, %s184
                %s199 = sphi %s178, %s178
              $region39: #{cdrs_forward.6} parent=35 // loop_header_branch
                %196 = sbr.rel (%p194) target = $region43
              $region40: #{cdrs_forward.6} parent=35 // loop_body
                %v200 = vld [vmem:[%s198] sm:$0xff]
                %201 = vst [vmem:[%s199] sm:$0xff] %v200
                %v202 = vld [vmem:[%s198 + $0x18] sm:$0xff]
                %203 = vst [vmem:[%s199 + $0x8] sm:$0xff] %v202
                %v204 = vld [vmem:[%s198 + $0x30] sm:$0xff]
                %205 = vst [vmem:[%s199 + $0x10] sm:$0xff] %v204
                %v206 = vld [vmem:[%s198 + $0x48] sm:$0xff]
                %207 = vst [vmem:[%s199 + $0x18] sm:$0xff] %v206
                %v208 = vld [vmem:[%s198 + $0x60] sm:$0xff]
                %209 = vst [vmem:[%s199 + $0x20] sm:$0xff] %v208
                %v210 = vld [vmem:[%s198 + $0x78] sm:$0xff]
                %211 = vst [vmem:[%s199 + $0x28] sm:$0xff] %v210
                %v212 = vld [vmem:[%s198 + $0x90] sm:$0xff]
                %213 = vst [vmem:[%s199 + $0x30] sm:$0xff] %v212
                %v214 = vld [vmem:[%s198 + $0xa8] sm:$0xff]
                %215 = vst [vmem:[%s199 + $0x38] sm:$0xff] %v214
                %v216 = vld [vmem:[%s198 + $0xc0] sm:$0xff]
                %217 = vst [vmem:[%s199 + $0x40] sm:$0xff] %v216
                %v218 = vld [vmem:[%s198 + $0xd8] sm:$0xff]
                %219 = vst [vmem:[%s199 + $0x48] sm:$0xff] %v218
                %v220 = vld [vmem:[%s198 + $0xf0] sm:$0xff]
                %221 = vst [vmem:[%s199 + $0x50] sm:$0xff] %v220
                %v222 = vld [vmem:[%s198 + $0x108] sm:$0xff]
                %223 = vst [vmem:[%s199 + $0x58] sm:$0xff] %v222
                %v224 = vld [vmem:[%s198 + $0x120] sm:$0xff]
                %225 = vst [vmem:[%s199 + $0x60] sm:$0xff] %v224
                %v226 = vld [vmem:[%s198 + $0x138] sm:$0xff]
                %227 = vst [vmem:[%s199 + $0x68] sm:$0xff] %v226
                %v228 = vld [vmem:[%s198 + $0x150] sm:$0xff]
                %229 = vst [vmem:[%s199 + $0x70] sm:$0xff] %v228
                %v230 = vld [vmem:[%s198 + $0x168] sm:$0xff]
                %231 = vst [vmem:[%s199 + $0x78] sm:$0xff] %v230
                %v232 = vld [vmem:[%s198 + $0x180] sm:$0xff]
                %233 = vst [vmem:[%s199 + $0x80] sm:$0xff] %v232
                %v234 = vld [vmem:[%s198 + $0x198] sm:$0xff]
                %235 = vst [vmem:[%s199 + $0x88] sm:$0xff] %v234
                %v236 = vld [vmem:[%s198 + $0x1b0] sm:$0xff]
                %237 = vst [vmem:[%s199 + $0x90] sm:$0xff] %v236
                %v238 = vld [vmem:[%s198 + $0x1c8] sm:$0xff]
                %239 = vst [vmem:[%s199 + $0x98] sm:$0xff] %v238
                %v240 = vld [vmem:[%s198 + $0x1e0] sm:$0xff]
                %241 = vst [vmem:[%s199 + $0xa0] sm:$0xff] %v240
                %v242 = vld [vmem:[%s198 + $0x1f8] sm:$0xff]
                %243 = vst [vmem:[%s199 + $0xa8] sm:$0xff] %v242
                %v244 = vld [vmem:[%s198 + $0x210] sm:$0xff]
                %245 = vst [vmem:[%s199 + $0xb0] sm:$0xff] %v244
                %v246 = vld [vmem:[%s198 + $0x228] sm:$0xff]
                %247 = vst [vmem:[%s199 + $0xb8] sm:$0xff] %v246
                %v248 = vld [vmem:[%s198 + $0x240] sm:$0xff]
                %249 = vst [vmem:[%s199 + $0xc0] sm:$0xff] %v248
                %v250 = vld [vmem:[%s198 + $0x258] sm:$0xff]
                %251 = vst [vmem:[%s199 + $0xc8] sm:$0xff] %v250
                %v252 = vld [vmem:[%s198 + $0x270] sm:$0xff]
                %253 = vst [vmem:[%s199 + $0xd0] sm:$0xff] %v252
                %v254 = vld [vmem:[%s198 + $0x288] sm:$0xff]
                %255 = vst [vmem:[%s199 + $0xd8] sm:$0xff] %v254
                %v256 = vld [vmem:[%s198 + $0x2a0] sm:$0xff]
                %257 = vst [vmem:[%s199 + $0xe0] sm:$0xff] %v256
                %v258 = vld [vmem:[%s198 + $0x2b8] sm:$0xff]
                %259 = vst [vmem:[%s199 + $0xe8] sm:$0xff] %v258
                %v260 = vld [vmem:[%s198 + $0x2d0] sm:$0xff]
                %261 = vst [vmem:[%s199 + $0xf0] sm:$0xff] %v260
                %v262 = vld [vmem:[%s198 + $0x2e8] sm:$0xff]
                %263 = vst [vmem:[%s199 + $0xf8] sm:$0xff] %v262
              $region41: #{cdrs_forward.6} parent=35 // loop_footer
                %s197 = sadd.s32 1, %s193
              $region42: #{cdrs_forward.6} parent=35 // loop_footer_branch
                %192 = sbr.rel target = $region38
              $region43: #{cdrs_forward.6} parent=35 // loop_exit
                _
            $region36: #{cdrs_forward.6} parent=27 // pred_fallthru
              _
          $region28: #{cdrs_forward.6} parent=23 // pred_fallthru
            _
          %340 = vnop
        $region24: #{cdrs_forward.6} parent=19 // pred_fallthru
          _
      $region20: #{cdrs_forward.6} parent=5 // pred_fallthru
        _
      %p341 = scmp.le.s32.totalorder 1, %s11
      %p342 = scmp.lt.s32.totalorder %s11, 10
      %p343 = pnand %p341, %p342
      %p344 = pneg %p343
      // Predicated region
      $region59: #{cdrs_forward.6} parent=5 // pred_check
        _
      $region60: #{cdrs_forward.6} parent=5 // pred_check_branch
        %346 = sbr.rel (%p343) target = $region62
      $region61: #{cdrs_forward.6} parent=5 // pred_region
        %s347 = ssub.s32 %s11, 1
        %s348 = sand.u32 %s38, 1
        %s349 = sand.u32 %s38, 1
        %s350 = smul.addr %s349, 256
        %s351 = scalar_lea.vmem [#allocation2], %s350
        // Predicated region
        $region63: #{cdrs_forward.6} parent=61 // pred_check
          %p352 = pneg %p51
        $region64: #{cdrs_forward.6} parent=61 // pred_check_branch
          %354 = sbr.rel (%p352) target = $region66
        $region65: #{cdrs_forward.6} parent=61 // pred_region
          _
        $region66: #{cdrs_forward.6} parent=61 // pred_fallthru
          _
        %s355 = sand.u32 %s38, 1
        %s356 = sand.u32 %s38, 1
        %s357 = smul.addr %s356, 256
        %s358 = scalar_lea.vmem [#allocation2], %s357
        %p359 = pneg %p51
        %p360 = pneg %p48
        %p361 = pneg %p72
        %p362 = pneg %p69
        %p363 = pneg %p98
        %p364 = pneg %p95
        %s365 = smul.u32 32, %s20
        %p366 = scmp.lt.s32.totalorder %s365, 95
        %s367 = scalar_select %p366, %s365, 95
        %s368 = smul.addr %s367, 8
        %s369 = scalar_lea.vmem %s2, %s368
        %p370 = pneg %p124
        %p371 = pneg %p121
        %s372 = smul.u32 32, %s20
        %p373 = scmp.lt.s32.totalorder %s372, 95
        %s374 = scalar_select %p373, %s372, 95
        %s375 = smul.addr %s374, 8
        %s376 = scalar_lea.vmem %s3, %s375
        %p377 = pneg %p150
        %p378 = pneg %p147
        %s379 = smul.u32 32, %s20
        %p380 = scmp.lt.s32.totalorder %s379, 95
        %s381 = scalar_select %p380, %s379, 95
        %s382 = smul.addr %s381, 8
        %s383 = scalar_lea.vmem %s4, %s382
        %s384 = smul.u32 32, %s20
        %s385 = smul.u32 2, %s21
        %s386 = smul.u32 32, %s20
        %p387 = scmp.lt.s32.totalorder %s386, 95
        %s388 = scalar_select %p387, %s386, 95
        %s389 = smul.addr %s388, 8
        %s390 = scalar_lea.vmem %s2, %s389
        %s391 = smul.u32 32, %s20
        %s392 = smul.u32 32, %s20
        %p393 = scmp.lt.s32.totalorder %s392, 95
        %s394 = scalar_select %p393, %s392, 95
        %s395 = smul.addr %s394, 8
        %s396 = scalar_lea.vmem %s3, %s395
        %s397 = smul.u32 32, %s20
        %s398 = smul.u32 32, %s20
        %p399 = scmp.lt.s32.totalorder %s398, 95
        %s400 = scalar_select %p399, %s398, 95
        %s401 = smul.addr %s400, 8
        %s402 = scalar_lea.vmem %s4, %s401
        %s403 = smul.u32 32, %s20
        %p405 = scmp.eq.s32.totalorder %s21, 0
        // Predicated region
        $region67: #{cdrs_forward.6} parent=61 // pred_check
          %p406 = pneg %p405
        $region68: #{cdrs_forward.6} parent=61 // pred_check_branch
          %408 = sbr.rel (%p406) target = $region70
        $region69: #{cdrs_forward.6} parent=61 // pred_region
          %vm409 = vcmask 326656
          %410 = vst.msk [vmem:[%s390] sm:$0xff] %vm409, 0.0
          %411 = vst.msk [vmem:[%s390 + $0x8] sm:$0xff] %vm409, 0.0
          %412 = vst.msk [vmem:[%s390 + $0x10] sm:$0xff] %vm409, 0.0
          %413 = vst.msk [vmem:[%s390 + $0x18] sm:$0xff] %vm409, 0.0
          %414 = vst.msk [vmem:[%s390 + $0x20] sm:$0xff] %vm409, 0.0
          %415 = vst.msk [vmem:[%s390 + $0x28] sm:$0xff] %vm409, 0.0
          %416 = vst.msk [vmem:[%s390 + $0x30] sm:$0xff] %vm409, 0.0
          %417 = vst.msk [vmem:[%s390 + $0x38] sm:$0xff] %vm409, 0.0
          %418 = vst.msk [vmem:[%s390 + $0x40] sm:$0xff] %vm409, 0.0
          %419 = vst.msk [vmem:[%s390 + $0x48] sm:$0xff] %vm409, 0.0
          %420 = vst.msk [vmem:[%s390 + $0x50] sm:$0xff] %vm409, 0.0
          %421 = vst.msk [vmem:[%s390 + $0x58] sm:$0xff] %vm409, 0.0
          %422 = vst.msk [vmem:[%s390 + $0x60] sm:$0xff] %vm409, 0.0
          %423 = vst.msk [vmem:[%s390 + $0x68] sm:$0xff] %vm409, 0.0
          %424 = vst.msk [vmem:[%s390 + $0x70] sm:$0xff] %vm409, 0.0
          %425 = vst.msk [vmem:[%s390 + $0x78] sm:$0xff] %vm409, 0.0
          %426 = vst.msk [vmem:[%s390 + $0x80] sm:$0xff] %vm409, 0.0
          %427 = vst.msk [vmem:[%s390 + $0x88] sm:$0xff] %vm409, 0.0
          %428 = vst.msk [vmem:[%s390 + $0x90] sm:$0xff] %vm409, 0.0
          %429 = vst.msk [vmem:[%s390 + $0x98] sm:$0xff] %vm409, 0.0
          %430 = vst.msk [vmem:[%s390 + $0xa0] sm:$0xff] %vm409, 0.0
          %431 = vst.msk [vmem:[%s390 + $0xa8] sm:$0xff] %vm409, 0.0
          %432 = vst.msk [vmem:[%s390 + $0xb0] sm:$0xff] %vm409, 0.0
          %433 = vst.msk [vmem:[%s390 + $0xb8] sm:$0xff] %vm409, 0.0
          %434 = vst.msk [vmem:[%s390 + $0xc0] sm:$0xff] %vm409, 0.0
          %435 = vst.msk [vmem:[%s390 + $0xc8] sm:$0xff] %vm409, 0.0
          %436 = vst.msk [vmem:[%s390 + $0xd0] sm:$0xff] %vm409, 0.0
          %437 = vst.msk [vmem:[%s390 + $0xd8] sm:$0xff] %vm409, 0.0
          %438 = vst.msk [vmem:[%s390 + $0xe0] sm:$0xff] %vm409, 0.0
          %439 = vst.msk [vmem:[%s390 + $0xe8] sm:$0xff] %vm409, 0.0
          %440 = vst.msk [vmem:[%s390 + $0xf0] sm:$0xff] %vm409, 0.0
          %441 = vst.msk [vmem:[%s390 + $0xf8] sm:$0xff] %vm409, 0.0
        $region70: #{cdrs_forward.6} parent=61 // pred_fallthru
          _
        %s442 = smul.u32 %s21, 256
        %s443 = sshra.s32 %s442, 3
        %s444 = sand.u32 %s442, 7
        %s445 = smul.addr %s443, 4
        %s446 = scalar_lea.vmem %s1, %s445
        %v447 = vld [vmem:[%s446] sm:$0xf]
        %v448 = vld [vmem:[%s446 + $0x4] sm:$0xf]
        %v449 = vld [vmem:[%s446 + $0x8] sm:$0xf]
        %v450 = vld [vmem:[%s446 + $0xc] sm:$0xf]
        %v451 = vld [vmem:[%s446 + $0x10] sm:$0xf]
        %v452 = vld [vmem:[%s446 + $0x14] sm:$0xf]
        %v453 = vld [vmem:[%s446 + $0x18] sm:$0xf]
        %v454 = vld [vmem:[%s446 + $0x1c] sm:$0xf]
        %v455 = vld [vmem:[%s446 + $0x20] sm:$0xf]
        %v456 = vld [vmem:[%s446 + $0x24] sm:$0xf]
        %v457 = vld [vmem:[%s446 + $0x28] sm:$0xf]
        %v458 = vld [vmem:[%s446 + $0x2c] sm:$0xf]
        %v459 = vld [vmem:[%s446 + $0x30] sm:$0xf]
        %v460 = vld [vmem:[%s446 + $0x34] sm:$0xf]
        %v461 = vld [vmem:[%s446 + $0x38] sm:$0xf]
        %v462 = vld [vmem:[%s446 + $0x3c] sm:$0xf]
        %v463 = vld [vmem:[%s446 + $0x40] sm:$0xf]
        %v464 = vld [vmem:[%s446 + $0x44] sm:$0xf]
        %v465 = vld [vmem:[%s446 + $0x48] sm:$0xf]
        %v466 = vld [vmem:[%s446 + $0x4c] sm:$0xf]
        %v467 = vld [vmem:[%s446 + $0x50] sm:$0xf]
        %v468 = vld [vmem:[%s446 + $0x54] sm:$0xf]
        %v469 = vld [vmem:[%s446 + $0x58] sm:$0xf]
        %v470 = vld [vmem:[%s446 + $0x5c] sm:$0xf]
        %v471 = vld [vmem:[%s446 + $0x60] sm:$0xf]
        %v472 = vld [vmem:[%s446 + $0x64] sm:$0xf]
        %v473 = vld [vmem:[%s446 + $0x68] sm:$0xf]
        %v474 = vld [vmem:[%s446 + $0x6c] sm:$0xf]
        %v475 = vld [vmem:[%s446 + $0x70] sm:$0xf]
        %v476 = vld [vmem:[%s446 + $0x74] sm:$0xf]
        %v477 = vld [vmem:[%s446 + $0x78] sm:$0xf]
        %v478 = vld [vmem:[%s446 + $0x7c] sm:$0xf]
        %v479 = vld [vmem:[%s390] sm:$0xff]
        %v480 = vld [vmem:[%s390 + $0x8] sm:$0xff]
        %v481 = vld [vmem:[%s390 + $0x10] sm:$0xff]
        %v482 = vld [vmem:[%s390 + $0x18] sm:$0xff]
        %v483 = vld [vmem:[%s390 + $0x20] sm:$0xff]
        %v484 = vld [vmem:[%s390 + $0x28] sm:$0xff]
        %v485 = vld [vmem:[%s390 + $0x30] sm:$0xff]
        %v486 = vld [vmem:[%s390 + $0x38] sm:$0xff]
        %v487 = vld [vmem:[%s390 + $0x40] sm:$0xff]
        %v488 = vld [vmem:[%s390 + $0x48] sm:$0xff]
        %v489 = vld [vmem:[%s390 + $0x50] sm:$0xff]
        %v490 = vld [vmem:[%s390 + $0x58] sm:$0xff]
        %v491 = vld [vmem:[%s390 + $0x60] sm:$0xff]
        %v492 = vld [vmem:[%s390 + $0x68] sm:$0xff]
        %v493 = vld [vmem:[%s390 + $0x70] sm:$0xff]
        %v494 = vld [vmem:[%s390 + $0x78] sm:$0xff]
        %v495 = vld [vmem:[%s390 + $0x80] sm:$0xff]
        %v496 = vld [vmem:[%s390 + $0x88] sm:$0xff]
        %v497 = vld [vmem:[%s390 + $0x90] sm:$0xff]
        %v498 = vld [vmem:[%s390 + $0x98] sm:$0xff]
        %v499 = vld [vmem:[%s390 + $0xa0] sm:$0xff]
        %v500 = vld [vmem:[%s390 + $0xa8] sm:$0xff]
        %v501 = vld [vmem:[%s390 + $0xb0] sm:$0xff]
        %v502 = vld [vmem:[%s390 + $0xb8] sm:$0xff]
        %v503 = vld [vmem:[%s390 + $0xc0] sm:$0xff]
        %v504 = vld [vmem:[%s390 + $0xc8] sm:$0xff]
        %v505 = vld [vmem:[%s390 + $0xd0] sm:$0xff]
        %v506 = vld [vmem:[%s390 + $0xd8] sm:$0xff]
        %v507 = vld [vmem:[%s390 + $0xe0] sm:$0xff]
        %v508 = vld [vmem:[%s390 + $0xe8] sm:$0xff]
        %v509 = vld [vmem:[%s390 + $0xf0] sm:$0xff]
        %v510 = vld [vmem:[%s390 + $0xf8] sm:$0xff]
        %v511 = vld [vmem:[%s351] sm:$0xff]
        %v512 = vld [vmem:[%s351 + $0x8] sm:$0xff]
        %v513 = vld [vmem:[%s351 + $0x10] sm:$0xff]
        %v514 = vld [vmem:[%s351 + $0x18] sm:$0xff]
        %v515 = vld [vmem:[%s351 + $0x20] sm:$0xff]
        %v516 = vld [vmem:[%s351 + $0x28] sm:$0xff]
        %v517 = vld [vmem:[%s351 + $0x30] sm:$0xff]
        %v518 = vld [vmem:[%s351 + $0x38] sm:$0xff]
        %v519 = vld [vmem:[%s351 + $0x40] sm:$0xff]
        %v520 = vld [vmem:[%s351 + $0x48] sm:$0xff]
        %v521 = vld [vmem:[%s351 + $0x50] sm:$0xff]
        %v522 = vld [vmem:[%s351 + $0x58] sm:$0xff]
        %v523 = vld [vmem:[%s351 + $0x60] sm:$0xff]
        %v524 = vld [vmem:[%s351 + $0x68] sm:$0xff]
        %v525 = vld [vmem:[%s351 + $0x70] sm:$0xff]
        %v526 = vld [vmem:[%s351 + $0x78] sm:$0xff]
        %v527 = vld [vmem:[%s351 + $0x80] sm:$0xff]
        %v528 = vld [vmem:[%s351 + $0x88] sm:$0xff]
        %v529 = vld [vmem:[%s351 + $0x90] sm:$0xff]
        %v530 = vld [vmem:[%s351 + $0x98] sm:$0xff]
        %v531 = vld [vmem:[%s351 + $0xa0] sm:$0xff]
        %v532 = vld [vmem:[%s351 + $0xa8] sm:$0xff]
        %v533 = vld [vmem:[%s351 + $0xb0] sm:$0xff]
        %v534 = vld [vmem:[%s351 + $0xb8] sm:$0xff]
        %v535 = vld [vmem:[%s351 + $0xc0] sm:$0xff]
        %v536 = vld [vmem:[%s351 + $0xc8] sm:$0xff]
        %v537 = vld [vmem:[%s351 + $0xd0] sm:$0xff]
        %v538 = vld [vmem:[%s351 + $0xd8] sm:$0xff]
        %v539 = vld [vmem:[%s351 + $0xe0] sm:$0xff]
        %v540 = vld [vmem:[%s351 + $0xe8] sm:$0xff]
        %v541 = vld [vmem:[%s351 + $0xf0] sm:$0xff]
        %v542 = vld [vmem:[%s351 + $0xf8] sm:$0xff]
        %v575 = vunpack.c.l.b16 %v511
        %v576 = vunpack.c.h.b16 %v511
        %v577 = vunpack.c.l.b16 %v512
        %v578 = vunpack.c.h.b16 %v512
        %v579 = vunpack.c.l.b16 %v513
        %v580 = vunpack.c.h.b16 %v513
        %v581 = vunpack.c.l.b16 %v514
        %v582 = vunpack.c.h.b16 %v514
        %v583 = vunpack.c.l.b16 %v515
        %v584 = vunpack.c.h.b16 %v515
        %v585 = vunpack.c.l.b16 %v516
        %v586 = vunpack.c.h.b16 %v516
        %v587 = vunpack.c.l.b16 %v517
        %v588 = vunpack.c.h.b16 %v517
        %v589 = vunpack.c.l.b16 %v518
        %v590 = vunpack.c.h.b16 %v518
        %v591 = vunpack.c.l.b16 %v519
        %v592 = vunpack.c.h.b16 %v519
        %v593 = vunpack.c.l.b16 %v520
        %v594 = vunpack.c.h.b16 %v520
        %v595 = vunpack.c.l.b16 %v521
        %v596 = vunpack.c.h.b16 %v521
        %v597 = vunpack.c.l.b16 %v522
        %v598 = vunpack.c.h.b16 %v522
        %v599 = vunpack.c.l.b16 %v523
        %v600 = vunpack.c.h.b16 %v523
        %v601 = vunpack.c.l.b16 %v524
        %v602 = vunpack.c.h.b16 %v524
        %v603 = vunpack.c.l.b16 %v525
        %v604 = vunpack.c.h.b16 %v525
        %v605 = vunpack.c.l.b16 %v526
        %v606 = vunpack.c.h.b16 %v526
        %v607 = vunpack.c.l.b16 %v527
        %v608 = vunpack.c.h.b16 %v527
        %v609 = vunpack.c.l.b16 %v528
        %v610 = vunpack.c.h.b16 %v528
        %v611 = vunpack.c.l.b16 %v529
        %v612 = vunpack.c.h.b16 %v529
        %v613 = vunpack.c.l.b16 %v530
        %v614 = vunpack.c.h.b16 %v530
        %v615 = vunpack.c.l.b16 %v531
        %v616 = vunpack.c.h.b16 %v531
        %v617 = vunpack.c.l.b16 %v532
        %v618 = vunpack.c.h.b16 %v532
        %v619 = vunpack.c.l.b16 %v533
        %v620 = vunpack.c.h.b16 %v533
        %v621 = vunpack.c.l.b16 %v534
        %v622 = vunpack.c.h.b16 %v534
        %v623 = vunpack.c.l.b16 %v535
        %v624 = vunpack.c.h.b16 %v535
        %v625 = vunpack.c.l.b16 %v536
        %v626 = vunpack.c.h.b16 %v536
        %v627 = vunpack.c.l.b16 %v537
        %v628 = vunpack.c.h.b16 %v537
        %v629 = vunpack.c.l.b16 %v538
        %v630 = vunpack.c.h.b16 %v538
        %v631 = vunpack.c.l.b16 %v539
        %v632 = vunpack.c.h.b16 %v539
        %v633 = vunpack.c.l.b16 %v540
        %v634 = vunpack.c.h.b16 %v540
        %v635 = vunpack.c.l.b16 %v541
        %v636 = vunpack.c.h.b16 %v541
        %v637 = vunpack.c.l.b16 %v542
        %v638 = vunpack.c.h.b16 %v542
        %v639 = vpack.c.b16 %v577, %v575
        %v640 = vpack.c.b16 %v578, %v576
        %v641 = vpack.c.b16 %v581, %v579
        %v642 = vpack.c.b16 %v582, %v580
        %v643 = vpack.c.b16 %v585, %v583
        %v644 = vpack.c.b16 %v586, %v584
        %v645 = vpack.c.b16 %v589, %v587
        %v646 = vpack.c.b16 %v590, %v588
        %v647 = vpack.c.b16 %v593, %v591
        %v648 = vpack.c.b16 %v594, %v592
        %v649 = vpack.c.b16 %v597, %v595
        %v650 = vpack.c.b16 %v598, %v596
        %v651 = vpack.c.b16 %v601, %v599
        %v652 = vpack.c.b16 %v602, %v600
        %v653 = vpack.c.b16 %v605, %v603
        %v654 = vpack.c.b16 %v606, %v604
        %v655 = vpack.c.b16 %v609, %v607
        %v656 = vpack.c.b16 %v610, %v608
        %v657 = vpack.c.b16 %v613, %v611
        %v658 = vpack.c.b16 %v614, %v612
        %v659 = vpack.c.b16 %v617, %v615
        %v660 = vpack.c.b16 %v618, %v616
        %v661 = vpack.c.b16 %v621, %v619
        %v662 = vpack.c.b16 %v622, %v620
        %v663 = vpack.c.b16 %v625, %v623
        %v664 = vpack.c.b16 %v626, %v624
        %v665 = vpack.c.b16 %v629, %v627
        %v666 = vpack.c.b16 %v630, %v628
        %v667 = vpack.c.b16 %v633, %v631
        %v668 = vpack.c.b16 %v634, %v632
        %v669 = vpack.c.b16 %v637, %v635
        %v670 = vpack.c.b16 %v638, %v636
        %v735 = vunpack.c.l.b16 %v447
        %v736 = vunpack.c.l.b16 %v448
        %v737 = vunpack.c.l.b16 %v449
        %v738 = vunpack.c.l.b16 %v450
        %v739 = vunpack.c.l.b16 %v451
        %v740 = vunpack.c.l.b16 %v452
        %v741 = vunpack.c.l.b16 %v453
        %v742 = vunpack.c.l.b16 %v454
        %v743 = vunpack.c.l.b16 %v455
        %v744 = vunpack.c.l.b16 %v456
        %v745 = vunpack.c.l.b16 %v457
        %v746 = vunpack.c.l.b16 %v458
        %v747 = vunpack.c.l.b16 %v459
        %v748 = vunpack.c.l.b16 %v460
        %v749 = vunpack.c.l.b16 %v461
        %v750 = vunpack.c.l.b16 %v462
        %v751 = vunpack.c.l.b16 %v463
        %v752 = vunpack.c.l.b16 %v464
        %v753 = vunpack.c.l.b16 %v465
        %v754 = vunpack.c.l.b16 %v466
        %v755 = vunpack.c.l.b16 %v467
        %v756 = vunpack.c.l.b16 %v468
        %v757 = vunpack.c.l.b16 %v469
        %v758 = vunpack.c.l.b16 %v470
        %v759 = vunpack.c.l.b16 %v471
        %v760 = vunpack.c.l.b16 %v472
        %v761 = vunpack.c.l.b16 %v473
        %v762 = vunpack.c.l.b16 %v474
        %v763 = vunpack.c.l.b16 %v475
        %v764 = vunpack.c.l.b16 %v476
        %v765 = vunpack.c.l.b16 %v477
        %v766 = vunpack.c.l.b16 %v478
        %v767 = vpack.c.b16 %v736, %v735
        %v768 = vpack.c.b16 %v738, %v737
        %v769 = vpack.c.b16 %v740, %v739
        %v770 = vpack.c.b16 %v742, %v741
        %v771 = vpack.c.b16 %v744, %v743
        %v772 = vpack.c.b16 %v746, %v745
        %v773 = vpack.c.b16 %v748, %v747
        %v774 = vpack.c.b16 %v750, %v749
        %v775 = vpack.c.b16 %v752, %v751
        %v776 = vpack.c.b16 %v754, %v753
        %v777 = vpack.c.b16 %v756, %v755
        %v778 = vpack.c.b16 %v758, %v757
        %v779 = vpack.c.b16 %v760, %v759
        %v780 = vpack.c.b16 %v762, %v761
        %v781 = vpack.c.b16 %v764, %v763
        %v782 = vpack.c.b16 %v766, %v765
        %799 = vmatprep.subr.bf16.mxu0 0
        %800 = vmatpush1.bf16.msra.mxu0 %v767
        %801 = vmatprep.subr.bf16.mxu0 0
        %802 = vmatpush1.bf16.msra.mxu0 %v768
        %803 = vmatprep.subr.bf16.mxu0 0
        %804 = vmatpush1.bf16.msra.mxu0 %v769
        %805 = vmatprep.subr.bf16.mxu0 0
        %806 = vmatpush1.bf16.msra.mxu0 %v770
        %807 = vmatprep.subr.bf16.mxu0 0
        %808 = vmatpush1.bf16.msra.mxu0 %v771
        %809 = vmatprep.subr.bf16.mxu0 0
        %810 = vmatpush1.bf16.msra.mxu0 %v772
        %811 = vmatprep.subr.bf16.mxu0 0
        %812 = vmatpush1.bf16.msra.mxu0 %v773
        %813 = vmatprep.subr.bf16.mxu0 0
        %814 = vmatpush1.bf16.msra.mxu0 %v774
        %815 = vmatprep.subr.bf16.mxu0 0
        %816 = vmatpush1.bf16.msra.mxu0 %v775
        %817 = vmatprep.subr.bf16.mxu0 0
        %818 = vmatpush1.bf16.msra.mxu0 %v776
        %819 = vmatprep.subr.bf16.mxu0 0
        %820 = vmatpush1.bf16.msra.mxu0 %v777
        %821 = vmatprep.subr.bf16.mxu0 0
        %822 = vmatpush1.bf16.msra.mxu0 %v778
        %823 = vmatprep.subr.bf16.mxu0 0
        %824 = vmatpush1.bf16.msra.mxu0 %v779
        %825 = vmatprep.subr.bf16.mxu0 0
        %826 = vmatpush1.bf16.msra.mxu0 %v780
        %827 = vmatprep.subr.bf16.mxu0 0
        %828 = vmatpush1.bf16.msra.mxu0 %v781
        %829 = vmatprep.subr.bf16.mxu0 0
        %830 = vmatpush1.bf16.msra.mxu0 %v782
        %831 = vmatprep.mubr.bf16.mxu0 %v640
        %832 = vmatmul.mubr.bf16.gmra.mrb[0].mxu0 %v639
        %v833 = vpop.f32.mrb[0].mxu0
        %v834 = vadd.f32 0.0, %v833
        %v835 = vpop.f32.mrb[0].mxu0
        %v836 = vpop.f32.mrb[0].mxu0
        %v837 = vadd.f32 0.0, %v836
        %v838 = vpop.f32.mrb[0].mxu0
        %839 = vmatprep.mubr.bf16.mxu0 %v642
        %840 = vmatmul.mubr.bf16.gmra.mrb[0].mxu0 %v641
        %v841 = vpop.f32.mrb[0].mxu0
        %v842 = vadd.f32 0.0, %v841
        %v843 = vpop.f32.mrb[0].mxu0
        %v844 = vpop.f32.mrb[0].mxu0
        %v845 = vadd.f32 0.0, %v844
        %v846 = vpop.f32.mrb[0].mxu0
        %847 = vmatprep.mubr.bf16.mxu0 %v644
        %848 = vmatmul.mubr.bf16.gmra.mrb[0].mxu0 %v643
        %v849 = vpop.f32.mrb[0].mxu0
        %v850 = vadd.f32 0.0, %v849
        %v851 = vpop.f32.mrb[0].mxu0
        %v852 = vpop.f32.mrb[0].mxu0
        %v853 = vadd.f32 0.0, %v852
        %v854 = vpop.f32.mrb[0].mxu0
        %855 = vmatprep.mubr.bf16.mxu0 %v646
        %856 = vmatmul.mubr.bf16.gmra.mrb[0].mxu0 %v645
        %v857 = vpop.f32.mrb[0].mxu0
        %v858 = vadd.f32 0.0, %v857
        %v859 = vpop.f32.mrb[0].mxu0
        %v860 = vpop.f32.mrb[0].mxu0
        %v861 = vadd.f32 0.0, %v860
        %v862 = vpop.f32.mrb[0].mxu0
        %863 = vmatprep.mubr.bf16.mxu0 %v648
        %864 = vmatmul.mubr.bf16.gmra.mrb[0].mxu0 %v647
        %v865 = vpop.f32.mrb[0].mxu0
        %v866 = vadd.f32 0.0, %v865
        %v867 = vpop.f32.mrb[0].mxu0
        %v868 = vpop.f32.mrb[0].mxu0
        %v869 = vadd.f32 0.0, %v868
        %v870 = vpop.f32.mrb[0].mxu0
        %871 = vmatprep.mubr.bf16.mxu0 %v650
        %872 = vmatmul.mubr.bf16.gmra.mrb[0].mxu0 %v649
        %v873 = vpop.f32.mrb[0].mxu0
        %v874 = vadd.f32 0.0, %v873
        %v875 = vpop.f32.mrb[0].mxu0
        %v876 = vpop.f32.mrb[0].mxu0
        %v877 = vadd.f32 0.0, %v876
        %v878 = vpop.f32.mrb[0].mxu0
        %879 = vmatprep.mubr.bf16.mxu0 %v652
        %880 = vmatmul.mubr.bf16.gmra.mrb[0].mxu0 %v651
        %v881 = vpop.f32.mrb[0].mxu0
        %v882 = vadd.f32 0.0, %v881
        %v883 = vpop.f32.mrb[0].mxu0
        %v884 = vpop.f32.mrb[0].mxu0
        %v885 = vadd.f32 0.0, %v884
        %v886 = vpop.f32.mrb[0].mxu0
        %887 = vmatprep.mubr.bf16.mxu0 %v654
        %888 = vmatmul.mubr.bf16.gmra.mrb[0].mxu0 %v653
        %v889 = vpop.f32.mrb[0].mxu0
        %v890 = vadd.f32 0.0, %v889
        %v891 = vpop.f32.mrb[0].mxu0
        %v892 = vpop.f32.mrb[0].mxu0
        %v893 = vadd.f32 0.0, %v892
        %v894 = vpop.f32.mrb[0].mxu0
        %895 = vmatprep.mubr.bf16.mxu0 %v656
        %896 = vmatmul.mubr.bf16.gmra.mrb[0].mxu0 %v655
        %v897 = vpop.f32.mrb[0].mxu0
        %v898 = vadd.f32 0.0, %v897
        %v899 = vpop.f32.mrb[0].mxu0
        %v900 = vpop.f32.mrb[0].mxu0
        %v901 = vadd.f32 0.0, %v900
        %v902 = vpop.f32.mrb[0].mxu0
        %903 = vmatprep.mubr.bf16.mxu0 %v658
        %904 = vmatmul.mubr.bf16.gmra.mrb[0].mxu0 %v657
        %v905 = vpop.f32.mrb[0].mxu0
        %v906 = vadd.f32 0.0, %v905
        %v907 = vpop.f32.mrb[0].mxu0
        %v908 = vpop.f32.mrb[0].mxu0
        %v909 = vadd.f32 0.0, %v908
        %v910 = vpop.f32.mrb[0].mxu0
        %911 = vmatprep.mubr.bf16.mxu0 %v660
        %912 = vmatmul.mubr.bf16.gmra.mrb[0].mxu0 %v659
        %v913 = vpop.f32.mrb[0].mxu0
        %v914 = vadd.f32 0.0, %v913
        %v915 = vpop.f32.mrb[0].mxu0
        %v916 = vpop.f32.mrb[0].mxu0
        %v917 = vadd.f32 0.0, %v916
        %v918 = vpop.f32.mrb[0].mxu0
        %919 = vmatprep.mubr.bf16.mxu0 %v662
        %920 = vmatmul.mubr.bf16.gmra.mrb[0].mxu0 %v661
        %v921 = vpop.f32.mrb[0].mxu0
        %v922 = vadd.f32 0.0, %v921
        %v923 = vpop.f32.mrb[0].mxu0
        %v924 = vpop.f32.mrb[0].mxu0
        %v925 = vadd.f32 0.0, %v924
        %v926 = vpop.f32.mrb[0].mxu0
        %927 = vmatprep.mubr.bf16.mxu0 %v664
        %928 = vmatmul.mubr.bf16.gmra.mrb[0].mxu0 %v663
        %v929 = vpop.f32.mrb[0].mxu0
        %v930 = vadd.f32 0.0, %v929
        %v931 = vpop.f32.mrb[0].mxu0
        %v932 = vpop.f32.mrb[0].mxu0
        %v933 = vadd.f32 0.0, %v932
        %v934 = vpop.f32.mrb[0].mxu0
        %935 = vmatprep.mubr.bf16.mxu0 %v666
        %936 = vmatmul.mubr.bf16.gmra.mrb[0].mxu0 %v665
        %v937 = vpop.f32.mrb[0].mxu0
        %v938 = vadd.f32 0.0, %v937
        %v939 = vpop.f32.mrb[0].mxu0
        %v940 = vpop.f32.mrb[0].mxu0
        %v941 = vadd.f32 0.0, %v940
        %v942 = vpop.f32.mrb[0].mxu0
        %943 = vmatprep.mubr.bf16.mxu0 %v668
        %944 = vmatmul.mubr.bf16.gmra.mrb[0].mxu0 %v667
        %v945 = vpop.f32.mrb[0].mxu0
        %v946 = vadd.f32 0.0, %v945
        %v947 = vpop.f32.mrb[0].mxu0
        %v948 = vpop.f32.mrb[0].mxu0
        %v949 = vadd.f32 0.0, %v948
        %v950 = vpop.f32.mrb[0].mxu0
        %951 = vmatprep.mubr.bf16.mxu0 %v670
        %952 = vmatmul.mubr.bf16.gmra.mrb[0].mxu0 %v669
        %v953 = vpop.f32.mrb[0].mxu0
        %v954 = vadd.f32 0.0, %v953
        %v955 = vpop.f32.mrb[0].mxu0
        %v956 = vpop.f32.mrb[0].mxu0
        %v957 = vadd.f32 0.0, %v956
        %v958 = vpop.f32.mrb[0].mxu0
        %959 = vdwg.mxu0
        %v960 = vadd.f32 %v479, %v834
        %v961 = vadd.f32 %v480, %v837
        %v962 = vadd.f32 %v481, %v842
        %v963 = vadd.f32 %v482, %v845
        %v964 = vadd.f32 %v483, %v850
        %v965 = vadd.f32 %v484, %v853
        %v966 = vadd.f32 %v485, %v858
        %v967 = vadd.f32 %v486, %v861
        %v968 = vadd.f32 %v487, %v866
        %v969 = vadd.f32 %v488, %v869
        %v970 = vadd.f32 %v489, %v874
        %v971 = vadd.f32 %v490, %v877
        %v972 = vadd.f32 %v491, %v882
        %v973 = vadd.f32 %v492, %v885
        %v974 = vadd.f32 %v493, %v890
        %v975 = vadd.f32 %v494, %v893
        %v976 = vadd.f32 %v495, %v898
        %v977 = vadd.f32 %v496, %v901
        %v978 = vadd.f32 %v497, %v906
        %v979 = vadd.f32 %v498, %v909
        %v980 = vadd.f32 %v499, %v914
        %v981 = vadd.f32 %v500, %v917
        %v982 = vadd.f32 %v501, %v922
        %v983 = vadd.f32 %v502, %v925
        %v984 = vadd.f32 %v503, %v930
        %v985 = vadd.f32 %v504, %v933
        %v986 = vadd.f32 %v505, %v938
        %v987 = vadd.f32 %v506, %v941
        %v988 = vadd.f32 %v507, %v946
        %v989 = vadd.f32 %v508, %v949
        %v990 = vadd.f32 %v509, %v954
        %v991 = vadd.f32 %v510, %v957
        %vm992 = vcmask 326656
        %993 = vst.msk [vmem:[%s390] sm:$0xff] %vm992, %v960
        %994 = vst.msk [vmem:[%s390 + $0x8] sm:$0xff] %vm992, %v961
        %995 = vst.msk [vmem:[%s390 + $0x10] sm:$0xff] %vm992, %v962
        %996 = vst.msk [vmem:[%s390 + $0x18] sm:$0xff] %vm992, %v963
        %997 = vst.msk [vmem:[%s390 + $0x20] sm:$0xff] %vm992, %v964
        %998 = vst.msk [vmem:[%s390 + $0x28] sm:$0xff] %vm992, %v965
        %999 = vst.msk [vmem:[%s390 + $0x30] sm:$0xff] %vm992, %v966
        %1000 = vst.msk [vmem:[%s390 + $0x38] sm:$0xff] %vm992, %v967
        %1001 = vst.msk [vmem:[%s390 + $0x40] sm:$0xff] %vm992, %v968
        %1002 = vst.msk [vmem:[%s390 + $0x48] sm:$0xff] %vm992, %v969
        %1003 = vst.msk [vmem:[%s390 + $0x50] sm:$0xff] %vm992, %v970
        %1004 = vst.msk [vmem:[%s390 + $0x58] sm:$0xff] %vm992, %v971
        %1005 = vst.msk [vmem:[%s390 + $0x60] sm:$0xff] %vm992, %v972
        %1006 = vst.msk [vmem:[%s390 + $0x68] sm:$0xff] %vm992, %v973
        %1007 = vst.msk [vmem:[%s390 + $0x70] sm:$0xff] %vm992, %v974
        %1008 = vst.msk [vmem:[%s390 + $0x78] sm:$0xff] %vm992, %v975
        %1009 = vst.msk [vmem:[%s390 + $0x80] sm:$0xff] %vm992, %v976
        %1010 = vst.msk [vmem:[%s390 + $0x88] sm:$0xff] %vm992, %v977
        %1011 = vst.msk [vmem:[%s390 + $0x90] sm:$0xff] %vm992, %v978
        %1012 = vst.msk [vmem:[%s390 + $0x98] sm:$0xff] %vm992, %v979
        %1013 = vst.msk [vmem:[%s390 + $0xa0] sm:$0xff] %vm992, %v980
        %1014 = vst.msk [vmem:[%s390 + $0xa8] sm:$0xff] %vm992, %v981
        %1015 = vst.msk [vmem:[%s390 + $0xb0] sm:$0xff] %vm992, %v982
        %1016 = vst.msk [vmem:[%s390 + $0xb8] sm:$0xff] %vm992, %v983
        %1017 = vst.msk [vmem:[%s390 + $0xc0] sm:$0xff] %vm992, %v984
        %1018 = vst.msk [vmem:[%s390 + $0xc8] sm:$0xff] %vm992, %v985
        %1019 = vst.msk [vmem:[%s390 + $0xd0] sm:$0xff] %vm992, %v986
        %1020 = vst.msk [vmem:[%s390 + $0xd8] sm:$0xff] %vm992, %v987
        %1021 = vst.msk [vmem:[%s390 + $0xe0] sm:$0xff] %vm992, %v988
        %1022 = vst.msk [vmem:[%s390 + $0xe8] sm:$0xff] %vm992, %v989
        %1023 = vst.msk [vmem:[%s390 + $0xf0] sm:$0xff] %vm992, %v990
        %1024 = vst.msk [vmem:[%s390 + $0xf8] sm:$0xff] %vm992, %v991
        %p1025 = scmp.eq.s32.totalorder %s21, 2
        // Predicated region
        $region71: #{cdrs_forward.6} parent=61 // pred_check
          %p1026 = pneg %p1025
        $region72: #{cdrs_forward.6} parent=61 // pred_check_branch
          %1028 = sbr.rel (%p1026) target = $region74
        $region73: #{cdrs_forward.6} parent=61 // pred_region
          %v1029 = vld [vmem:[%s390] sm:$0xff]
          %v1030 = vld [vmem:[%s390 + $0x8] sm:$0xff]
          %v1031 = vld [vmem:[%s390 + $0x10] sm:$0xff]
          %v1032 = vld [vmem:[%s390 + $0x18] sm:$0xff]
          %v1033 = vld [vmem:[%s390 + $0x20] sm:$0xff]
          %v1034 = vld [vmem:[%s390 + $0x28] sm:$0xff]
          %v1035 = vld [vmem:[%s390 + $0x30] sm:$0xff]
          %v1036 = vld [vmem:[%s390 + $0x38] sm:$0xff]
          %v1037 = vld [vmem:[%s390 + $0x40] sm:$0xff]
          %v1038 = vld [vmem:[%s390 + $0x48] sm:$0xff]
          %v1039 = vld [vmem:[%s390 + $0x50] sm:$0xff]
          %v1040 = vld [vmem:[%s390 + $0x58] sm:$0xff]
          %v1041 = vld [vmem:[%s390 + $0x60] sm:$0xff]
          %v1042 = vld [vmem:[%s390 + $0x68] sm:$0xff]
          %v1043 = vld [vmem:[%s390 + $0x70] sm:$0xff]
          %v1044 = vld [vmem:[%s390 + $0x78] sm:$0xff]
          %v1045 = vld [vmem:[%s390 + $0x80] sm:$0xff]
          %v1046 = vld [vmem:[%s390 + $0x88] sm:$0xff]
          %v1047 = vld [vmem:[%s390 + $0x90] sm:$0xff]
          %v1048 = vld [vmem:[%s390 + $0x98] sm:$0xff]
          %v1049 = vld [vmem:[%s390 + $0xa0] sm:$0xff]
          %v1050 = vld [vmem:[%s390 + $0xa8] sm:$0xff]
          %v1051 = vld [vmem:[%s390 + $0xb0] sm:$0xff]
          %v1052 = vld [vmem:[%s390 + $0xb8] sm:$0xff]
          %v1053 = vld [vmem:[%s390 + $0xc0] sm:$0xff]
          %v1054 = vld [vmem:[%s390 + $0xc8] sm:$0xff]
          %v1055 = vld [vmem:[%s390 + $0xd0] sm:$0xff]
          %v1056 = vld [vmem:[%s390 + $0xd8] sm:$0xff]
          %v1057 = vld [vmem:[%s390 + $0xe0] sm:$0xff]
          %v1058 = vld [vmem:[%s390 + $0xe8] sm:$0xff]
          %v1059 = vld [vmem:[%s390 + $0xf0] sm:$0xff]
          %v1060 = vld [vmem:[%s390 + $0xf8] sm:$0xff]
          %vm1061 = vcmask 326912
          %v1062 = vsel %vm1061, %v1029, -inf
          %1063 = vmax.xlane.f32.xlu0 %v1062
          %v1064 = vpop.xlane.xlu0 %1063
          %v1065 = vsel %vm1061, %v1030, -inf
          %1066 = vmax.xlane.f32.xlu0 %v1065
          %v1067 = vpop.xlane.xlu0 %1066
          %v1068 = vsel %vm1061, %v1031, -inf
          %1069 = vmax.xlane.f32.xlu0 %v1068
          %v1070 = vpop.xlane.xlu0 %1069
          %v1071 = vsel %vm1061, %v1032, -inf
          %1072 = vmax.xlane.f32.xlu0 %v1071
          %v1073 = vpop.xlane.xlu0 %1072
          %v1074 = vsel %vm1061, %v1033, -inf
          %1075 = vmax.xlane.f32.xlu0 %v1074
          %v1076 = vpop.xlane.xlu0 %1075
          %v1077 = vsel %vm1061, %v1034, -inf
          %1078 = vmax.xlane.f32.xlu0 %v1077
          %v1079 = vpop.xlane.xlu0 %1078
          %v1080 = vsel %vm1061, %v1035, -inf
          %1081 = vmax.xlane.f32.xlu0 %v1080
          %v1082 = vpop.xlane.xlu0 %1081
          %v1083 = vsel %vm1061, %v1036, -inf
          %1084 = vmax.xlane.f32.xlu0 %v1083
          %v1085 = vpop.xlane.xlu0 %1084
          %v1086 = vsel %vm1061, %v1037, -inf
          %1087 = vmax.xlane.f32.xlu0 %v1086
          %v1088 = vpop.xlane.xlu0 %1087
          %v1089 = vsel %vm1061, %v1038, -inf
          %1090 = vmax.xlane.f32.xlu0 %v1089
          %v1091 = vpop.xlane.xlu0 %1090
          %v1092 = vsel %vm1061, %v1039, -inf
          %1093 = vmax.xlane.f32.xlu0 %v1092
          %v1094 = vpop.xlane.xlu0 %1093
          %v1095 = vsel %vm1061, %v1040, -inf
          %1096 = vmax.xlane.f32.xlu0 %v1095
          %v1097 = vpop.xlane.xlu0 %1096
          %v1098 = vsel %vm1061, %v1041, -inf
          %1099 = vmax.xlane.f32.xlu0 %v1098
          %v1100 = vpop.xlane.xlu0 %1099
          %v1101 = vsel %vm1061, %v1042, -inf
          %1102 = vmax.xlane.f32.xlu0 %v1101
          %v1103 = vpop.xlane.xlu0 %1102
          %v1104 = vsel %vm1061, %v1043, -inf
          %1105 = vmax.xlane.f32.xlu0 %v1104
          %v1106 = vpop.xlane.xlu0 %1105
          %v1107 = vsel %vm1061, %v1044, -inf
          %1108 = vmax.xlane.f32.xlu0 %v1107
          %v1109 = vpop.xlane.xlu0 %1108
          %v1110 = vsel %vm1061, %v1045, -inf
          %1111 = vmax.xlane.f32.xlu0 %v1110
          %v1112 = vpop.xlane.xlu0 %1111
          %v1113 = vsel %vm1061, %v1046, -inf
          %1114 = vmax.xlane.f32.xlu0 %v1113
          %v1115 = vpop.xlane.xlu0 %1114
          %v1116 = vsel %vm1061, %v1047, -inf
          %1117 = vmax.xlane.f32.xlu0 %v1116
          %v1118 = vpop.xlane.xlu0 %1117
          %v1119 = vsel %vm1061, %v1048, -inf
          %1120 = vmax.xlane.f32.xlu0 %v1119
          %v1121 = vpop.xlane.xlu0 %1120
          %v1122 = vsel %vm1061, %v1049, -inf
          %1123 = vmax.xlane.f32.xlu0 %v1122
          %v1124 = vpop.xlane.xlu0 %1123
          %v1125 = vsel %vm1061, %v1050, -inf
          %1126 = vmax.xlane.f32.xlu0 %v1125
          %v1127 = vpop.xlane.xlu0 %1126
          %v1128 = vsel %vm1061, %v1051, -inf
          %1129 = vmax.xlane.f32.xlu0 %v1128
          %v1130 = vpop.xlane.xlu0 %1129
          %v1131 = vsel %vm1061, %v1052, -inf
          %1132 = vmax.xlane.f32.xlu0 %v1131
          %v1133 = vpop.xlane.xlu0 %1132
          %v1134 = vsel %vm1061, %v1053, -inf
          %1135 = vmax.xlane.f32.xlu0 %v1134
          %v1136 = vpop.xlane.xlu0 %1135
          %v1137 = vsel %vm1061, %v1054, -inf
          %1138 = vmax.xlane.f32.xlu0 %v1137
          %v1139 = vpop.xlane.xlu0 %1138
          %v1140 = vsel %vm1061, %v1055, -inf
          %1141 = vmax.xlane.f32.xlu0 %v1140
          %v1142 = vpop.xlane.xlu0 %1141
          %v1143 = vsel %vm1061, %v1056, -inf
          %1144 = vmax.xlane.f32.xlu0 %v1143
          %v1145 = vpop.xlane.xlu0 %1144
          %v1146 = vsel %vm1061, %v1057, -inf
          %1147 = vmax.xlane.f32.xlu0 %v1146
          %v1148 = vpop.xlane.xlu0 %1147
          %v1149 = vsel %vm1061, %v1058, -inf
          %1150 = vmax.xlane.f32.xlu0 %v1149
          %v1151 = vpop.xlane.xlu0 %1150
          %v1152 = vsel %vm1061, %v1059, -inf
          %1153 = vmax.xlane.f32.xlu0 %v1152
          %v1154 = vpop.xlane.xlu0 %1153
          %v1155 = vsel %vm1061, %v1060, -inf
          %1156 = vmax.xlane.f32.xlu0 %v1155
          %v1157 = vpop.xlane.xlu0 %1156
          %v1158 = vsub.f32 %v1029, %v1064
          %v1159 = vsub.f32 %v1030, %v1067
          %v1160 = vsub.f32 %v1031, %v1070
          %v1161 = vsub.f32 %v1032, %v1073
          %v1162 = vsub.f32 %v1033, %v1076
          %v1163 = vsub.f32 %v1034, %v1079
          %v1164 = vsub.f32 %v1035, %v1082
          %v1165 = vsub.f32 %v1036, %v1085
          %v1166 = vsub.f32 %v1037, %v1088
          %v1167 = vsub.f32 %v1038, %v1091
          %v1168 = vsub.f32 %v1039, %v1094
          %v1169 = vsub.f32 %v1040, %v1097
          %v1170 = vsub.f32 %v1041, %v1100
          %v1171 = vsub.f32 %v1042, %v1103
          %v1172 = vsub.f32 %v1043, %v1106
          %v1173 = vsub.f32 %v1044, %v1109
          %v1174 = vsub.f32 %v1045, %v1112
          %v1175 = vsub.f32 %v1046, %v1115
          %v1176 = vsub.f32 %v1047, %v1118
          %v1177 = vsub.f32 %v1048, %v1121
          %v1178 = vsub.f32 %v1049, %v1124
          %v1179 = vsub.f32 %v1050, %v1127
          %v1180 = vsub.f32 %v1051, %v1130
          %v1181 = vsub.f32 %v1052, %v1133
          %v1182 = vsub.f32 %v1053, %v1136
          %v1183 = vsub.f32 %v1054, %v1139
          %v1184 = vsub.f32 %v1055, %v1142
          %v1185 = vsub.f32 %v1056, %v1145
          %v1186 = vsub.f32 %v1057, %v1148
          %v1187 = vsub.f32 %v1058, %v1151
          %v1188 = vsub.f32 %v1059, %v1154
          %v1189 = vsub.f32 %v1060, %v1157
          %v1190 = vmul.f32 %v1158, 1.442695
          %v1191 = vpow.pop %v1190
          %v1192 = vmul.f32 %v1159, 1.442695
          %v1193 = vpow.pop %v1192
          %v1194 = vmul.f32 %v1160, 1.442695
          %v1195 = vpow.pop %v1194
          %v1196 = vmul.f32 %v1161, 1.442695
          %v1197 = vpow.pop %v1196
          %v1198 = vmul.f32 %v1162, 1.442695
          %v1199 = vpow.pop %v1198
          %v1200 = vmul.f32 %v1163, 1.442695
          %v1201 = vpow.pop %v1200
          %v1202 = vmul.f32 %v1164, 1.442695
          %v1203 = vpow.pop %v1202
          %v1204 = vmul.f32 %v1165, 1.442695
          %v1205 = vpow.pop %v1204
          %v1206 = vmul.f32 %v1166, 1.442695
          %v1207 = vpow.pop %v1206
          %v1208 = vmul.f32 %v1167, 1.442695
          %v1209 = vpow.pop %v1208
          %v1210 = vmul.f32 %v1168, 1.442695
          %v1211 = vpow.pop %v1210
          %v1212 = vmul.f32 %v1169, 1.442695
          %v1213 = vpow.pop %v1212
          %v1214 = vmul.f32 %v1170, 1.442695
          %v1215 = vpow.pop %v1214
          %v1216 = vmul.f32 %v1171, 1.442695
          %v1217 = vpow.pop %v1216
          %v1218 = vmul.f32 %v1172, 1.442695
          %v1219 = vpow.pop %v1218
          %v1220 = vmul.f32 %v1173, 1.442695
          %v1221 = vpow.pop %v1220
          %v1222 = vmul.f32 %v1174, 1.442695
          %v1223 = vpow.pop %v1222
          %v1224 = vmul.f32 %v1175, 1.442695
          %v1225 = vpow.pop %v1224
          %v1226 = vmul.f32 %v1176, 1.442695
          %v1227 = vpow.pop %v1226
          %v1228 = vmul.f32 %v1177, 1.442695
          %v1229 = vpow.pop %v1228
          %v1230 = vmul.f32 %v1178, 1.442695
          %v1231 = vpow.pop %v1230
          %v1232 = vmul.f32 %v1179, 1.442695
          %v1233 = vpow.pop %v1232
          %v1234 = vmul.f32 %v1180, 1.442695
          %v1235 = vpow.pop %v1234
          %v1236 = vmul.f32 %v1181, 1.442695
          %v1237 = vpow.pop %v1236
          %v1238 = vmul.f32 %v1182, 1.442695
          %v1239 = vpow.pop %v1238
          %v1240 = vmul.f32 %v1183, 1.442695
          %v1241 = vpow.pop %v1240
          %v1242 = vmul.f32 %v1184, 1.442695
          %v1243 = vpow.pop %v1242
          %v1244 = vmul.f32 %v1185, 1.442695
          %v1245 = vpow.pop %v1244
          %v1246 = vmul.f32 %v1186, 1.442695
          %v1247 = vpow.pop %v1246
          %v1248 = vmul.f32 %v1187, 1.442695
          %v1249 = vpow.pop %v1248
          %v1250 = vmul.f32 %v1188, 1.442695
          %v1251 = vpow.pop %v1250
          %v1252 = vmul.f32 %v1189, 1.442695
          %v1253 = vpow.pop %v1252
          %1286 = vrot.lane.b32.xlu0 %v1191, 96
          %v1287 = vpop.permute.xlu0 %1286
          %1288 = vrot.lane.b32.xlu0 %v1193, 96
          %v1289 = vpop.permute.xlu0 %1288
          %1290 = vrot.lane.b32.xlu0 %v1195, 96
          %v1291 = vpop.permute.xlu0 %1290
          %1292 = vrot.lane.b32.xlu0 %v1197, 96
          %v1293 = vpop.permute.xlu0 %1292
          %1294 = vrot.lane.b32.xlu0 %v1199, 96
          %v1295 = vpop.permute.xlu0 %1294
          %1296 = vrot.lane.b32.xlu0 %v1201, 96
          %v1297 = vpop.permute.xlu0 %1296
          %1298 = vrot.lane.b32.xlu0 %v1203, 96
          %v1299 = vpop.permute.xlu0 %1298
          %1300 = vrot.lane.b32.xlu0 %v1205, 96
          %v1301 = vpop.permute.xlu0 %1300
          %1302 = vrot.lane.b32.xlu0 %v1207, 96
          %v1303 = vpop.permute.xlu0 %1302
          %1304 = vrot.lane.b32.xlu0 %v1209, 96
          %v1305 = vpop.permute.xlu0 %1304
          %1306 = vrot.lane.b32.xlu0 %v1211, 96
          %v1307 = vpop.permute.xlu0 %1306
          %1308 = vrot.lane.b32.xlu0 %v1213, 96
          %v1309 = vpop.permute.xlu0 %1308
          %1310 = vrot.lane.b32.xlu0 %v1215, 96
          %v1311 = vpop.permute.xlu0 %1310
          %1312 = vrot.lane.b32.xlu0 %v1217, 96
          %v1313 = vpop.permute.xlu0 %1312
          %1314 = vrot.lane.b32.xlu0 %v1219, 96
          %v1315 = vpop.permute.xlu0 %1314
          %1316 = vrot.lane.b32.xlu0 %v1221, 96
          %v1317 = vpop.permute.xlu0 %1316
          %1318 = vrot.lane.b32.xlu0 %v1223, 96
          %v1319 = vpop.permute.xlu0 %1318
          %1320 = vrot.lane.b32.xlu0 %v1225, 96
          %v1321 = vpop.permute.xlu0 %1320
          %1322 = vrot.lane.b32.xlu0 %v1227, 96
          %v1323 = vpop.permute.xlu0 %1322
          %1324 = vrot.lane.b32.xlu0 %v1229, 96
          %v1325 = vpop.permute.xlu0 %1324
          %1326 = vrot.lane.b32.xlu0 %v1231, 96
          %v1327 = vpop.permute.xlu0 %1326
          %1328 = vrot.lane.b32.xlu0 %v1233, 96
          %v1329 = vpop.permute.xlu0 %1328
          %1330 = vrot.lane.b32.xlu0 %v1235, 96
          %v1331 = vpop.permute.xlu0 %1330
          %1332 = vrot.lane.b32.xlu0 %v1237, 96
          %v1333 = vpop.permute.xlu0 %1332
          %1334 = vrot.lane.b32.xlu0 %v1239, 96
          %v1335 = vpop.permute.xlu0 %1334
          %1336 = vrot.lane.b32.xlu0 %v1241, 96
          %v1337 = vpop.permute.xlu0 %1336
          %1338 = vrot.lane.b32.xlu0 %v1243, 96
          %v1339 = vpop.permute.xlu0 %1338
          %1340 = vrot.lane.b32.xlu0 %v1245, 96
          %v1341 = vpop.permute.xlu0 %1340
          %1342 = vrot.lane.b32.xlu0 %v1247, 96
          %v1343 = vpop.permute.xlu0 %1342
          %1344 = vrot.lane.b32.xlu0 %v1249, 96
          %v1345 = vpop.permute.xlu0 %1344
          %1346 = vrot.lane.b32.xlu0 %v1251, 96
          %v1347 = vpop.permute.xlu0 %1346
          %1348 = vrot.lane.b32.xlu0 %v1253, 96
          %v1349 = vpop.permute.xlu0 %1348
          %vm1382 = vcmask 64512
          %v1383 = vsel %vm1382, %v1287, 0.0
          %1384 = vadd.xlane.f32.xlu0 %v1383
          %v1385 = vpop.xlane.xlu0 %1384
          %v1386 = vsel %vm1382, %v1289, 0.0
          %1387 = vadd.xlane.f32.xlu0 %v1386
          %v1388 = vpop.xlane.xlu0 %1387
          %v1389 = vsel %vm1382, %v1291, 0.0
          %1390 = vadd.xlane.f32.xlu0 %v1389
          %v1391 = vpop.xlane.xlu0 %1390
          %v1392 = vsel %vm1382, %v1293, 0.0
          %1393 = vadd.xlane.f32.xlu0 %v1392
          %v1394 = vpop.xlane.xlu0 %1393
          %v1395 = vsel %vm1382, %v1295, 0.0
          %1396 = vadd.xlane.f32.xlu0 %v1395
          %v1397 = vpop.xlane.xlu0 %1396
          %v1398 = vsel %vm1382, %v1297, 0.0
          %1399 = vadd.xlane.f32.xlu0 %v1398
          %v1400 = vpop.xlane.xlu0 %1399
          %v1401 = vsel %vm1382, %v1299, 0.0
          %1402 = vadd.xlane.f32.xlu0 %v1401
          %v1403 = vpop.xlane.xlu0 %1402
          %v1404 = vsel %vm1382, %v1301, 0.0
          %1405 = vadd.xlane.f32.xlu0 %v1404
          %v1406 = vpop.xlane.xlu0 %1405
          %v1407 = vsel %vm1382, %v1303, 0.0
          %1408 = vadd.xlane.f32.xlu0 %v1407
          %v1409 = vpop.xlane.xlu0 %1408
          %v1410 = vsel %vm1382, %v1305, 0.0
          %1411 = vadd.xlane.f32.xlu0 %v1410
          %v1412 = vpop.xlane.xlu0 %1411
          %v1413 = vsel %vm1382, %v1307, 0.0
          %1414 = vadd.xlane.f32.xlu0 %v1413
          %v1415 = vpop.xlane.xlu0 %1414
          %v1416 = vsel %vm1382, %v1309, 0.0
          %1417 = vadd.xlane.f32.xlu0 %v1416
          %v1418 = vpop.xlane.xlu0 %1417
          %v1419 = vsel %vm1382, %v1311, 0.0
          %1420 = vadd.xlane.f32.xlu0 %v1419
          %v1421 = vpop.xlane.xlu0 %1420
          %v1422 = vsel %vm1382, %v1313, 0.0
          %1423 = vadd.xlane.f32.xlu0 %v1422
          %v1424 = vpop.xlane.xlu0 %1423
          %v1425 = vsel %vm1382, %v1315, 0.0
          %1426 = vadd.xlane.f32.xlu0 %v1425
          %v1427 = vpop.xlane.xlu0 %1426
          %v1428 = vsel %vm1382, %v1317, 0.0
          %1429 = vadd.xlane.f32.xlu0 %v1428
          %v1430 = vpop.xlane.xlu0 %1429
          %v1431 = vsel %vm1382, %v1319, 0.0
          %1432 = vadd.xlane.f32.xlu0 %v1431
          %v1433 = vpop.xlane.xlu0 %1432
          %v1434 = vsel %vm1382, %v1321, 0.0
          %1435 = vadd.xlane.f32.xlu0 %v1434
          %v1436 = vpop.xlane.xlu0 %1435
          %v1437 = vsel %vm1382, %v1323, 0.0
          %1438 = vadd.xlane.f32.xlu0 %v1437
          %v1439 = vpop.xlane.xlu0 %1438
          %v1440 = vsel %vm1382, %v1325, 0.0
          %1441 = vadd.xlane.f32.xlu0 %v1440
          %v1442 = vpop.xlane.xlu0 %1441
          %v1443 = vsel %vm1382, %v1327, 0.0
          %1444 = vadd.xlane.f32.xlu0 %v1443
          %v1445 = vpop.xlane.xlu0 %1444
          %v1446 = vsel %vm1382, %v1329, 0.0
          %1447 = vadd.xlane.f32.xlu0 %v1446
          %v1448 = vpop.xlane.xlu0 %1447
          %v1449 = vsel %vm1382, %v1331, 0.0
          %1450 = vadd.xlane.f32.xlu0 %v1449
          %v1451 = vpop.xlane.xlu0 %1450
          %v1452 = vsel %vm1382, %v1333, 0.0
          %1453 = vadd.xlane.f32.xlu0 %v1452
          %v1454 = vpop.xlane.xlu0 %1453
          %v1455 = vsel %vm1382, %v1335, 0.0
          %1456 = vadd.xlane.f32.xlu0 %v1455
          %v1457 = vpop.xlane.xlu0 %1456
          %v1458 = vsel %vm1382, %v1337, 0.0
          %1459 = vadd.xlane.f32.xlu0 %v1458
          %v1460 = vpop.xlane.xlu0 %1459
          %v1461 = vsel %vm1382, %v1339, 0.0
          %1462 = vadd.xlane.f32.xlu0 %v1461
          %v1463 = vpop.xlane.xlu0 %1462
          %v1464 = vsel %vm1382, %v1341, 0.0
          %1465 = vadd.xlane.f32.xlu0 %v1464
          %v1466 = vpop.xlane.xlu0 %1465
          %v1467 = vsel %vm1382, %v1343, 0.0
          %1468 = vadd.xlane.f32.xlu0 %v1467
          %v1469 = vpop.xlane.xlu0 %1468
          %v1470 = vsel %vm1382, %v1345, 0.0
          %1471 = vadd.xlane.f32.xlu0 %v1470
          %v1472 = vpop.xlane.xlu0 %1471
          %v1473 = vsel %vm1382, %v1347, 0.0
          %1474 = vadd.xlane.f32.xlu0 %v1473
          %v1475 = vpop.xlane.xlu0 %1474
          %v1476 = vsel %vm1382, %v1349, 0.0
          %1477 = vadd.xlane.f32.xlu0 %v1476
          %v1478 = vpop.xlane.xlu0 %1477
          %v1479 = vlog2.pop %v1385
          %v1480 = vmul.f32 %v1479, 0.6931472
          %v1481 = vlog2.pop %v1388
          %v1482 = vmul.f32 %v1481, 0.6931472
          %v1483 = vlog2.pop %v1391
          %v1484 = vmul.f32 %v1483, 0.6931472
          %v1485 = vlog2.pop %v1394
          %v1486 = vmul.f32 %v1485, 0.6931472
          %v1487 = vlog2.pop %v1397
          %v1488 = vmul.f32 %v1487, 0.6931472
          %v1489 = vlog2.pop %v1400
          %v1490 = vmul.f32 %v1489, 0.6931472
          %v1491 = vlog2.pop %v1403
          %v1492 = vmul.f32 %v1491, 0.6931472
          %v1493 = vlog2.pop %v1406
          %v1494 = vmul.f32 %v1493, 0.6931472
          %v1495 = vlog2.pop %v1409
          %v1496 = vmul.f32 %v1495, 0.6931472
          %v1497 = vlog2.pop %v1412
          %v1498 = vmul.f32 %v1497, 0.6931472
          %v1499 = vlog2.pop %v1415
          %v1500 = vmul.f32 %v1499, 0.6931472
          %v1501 = vlog2.pop %v1418
          %v1502 = vmul.f32 %v1501, 0.6931472
          %v1503 = vlog2.pop %v1421
          %v1504 = vmul.f32 %v1503, 0.6931472
          %v1505 = vlog2.pop %v1424
          %v1506 = vmul.f32 %v1505, 0.6931472
          %v1507 = vlog2.pop %v1427
          %v1508 = vmul.f32 %v1507, 0.6931472
          %v1509 = vlog2.pop %v1430
          %v1510 = vmul.f32 %v1509, 0.6931472
          %v1511 = vlog2.pop %v1433
          %v1512 = vmul.f32 %v1511, 0.6931472
          %v1513 = vlog2.pop %v1436
          %v1514 = vmul.f32 %v1513, 0.6931472
          %v1515 = vlog2.pop %v1439
          %v1516 = vmul.f32 %v1515, 0.6931472
          %v1517 = vlog2.pop %v1442
          %v1518 = vmul.f32 %v1517, 0.6931472
          %v1519 = vlog2.pop %v1445
          %v1520 = vmul.f32 %v1519, 0.6931472
          %v1521 = vlog2.pop %v1448
          %v1522 = vmul.f32 %v1521, 0.6931472
          %v1523 = vlog2.pop %v1451
          %v1524 = vmul.f32 %v1523, 0.6931472
          %v1525 = vlog2.pop %v1454
          %v1526 = vmul.f32 %v1525, 0.6931472
          %v1527 = vlog2.pop %v1457
          %v1528 = vmul.f32 %v1527, 0.6931472
          %v1529 = vlog2.pop %v1460
          %v1530 = vmul.f32 %v1529, 0.6931472
          %v1531 = vlog2.pop %v1463
          %v1532 = vmul.f32 %v1531, 0.6931472
          %v1533 = vlog2.pop %v1466
          %v1534 = vmul.f32 %v1533, 0.6931472
          %v1535 = vlog2.pop %v1469
          %v1536 = vmul.f32 %v1535, 0.6931472
          %v1537 = vlog2.pop %v1472
          %v1538 = vmul.f32 %v1537, 0.6931472
          %v1539 = vlog2.pop %v1475
          %v1540 = vmul.f32 %v1539, 0.6931472
          %v1541 = vlog2.pop %v1478
          %v1542 = vmul.f32 %v1541, 0.6931472
          %v1543 = vsub.f32 %v1158, %v1480
          %v1544 = vsub.f32 %v1159, %v1482
          %v1545 = vsub.f32 %v1160, %v1484
          %v1546 = vsub.f32 %v1161, %v1486
          %v1547 = vsub.f32 %v1162, %v1488
          %v1548 = vsub.f32 %v1163, %v1490
          %v1549 = vsub.f32 %v1164, %v1492
          %v1550 = vsub.f32 %v1165, %v1494
          %v1551 = vsub.f32 %v1166, %v1496
          %v1552 = vsub.f32 %v1167, %v1498
          %v1553 = vsub.f32 %v1168, %v1500
          %v1554 = vsub.f32 %v1169, %v1502
          %v1555 = vsub.f32 %v1170, %v1504
          %v1556 = vsub.f32 %v1171, %v1506
          %v1557 = vsub.f32 %v1172, %v1508
          %v1558 = vsub.f32 %v1173, %v1510
          %v1559 = vsub.f32 %v1174, %v1512
          %v1560 = vsub.f32 %v1175, %v1514
          %v1561 = vsub.f32 %v1176, %v1516
          %v1562 = vsub.f32 %v1177, %v1518
          %v1563 = vsub.f32 %v1178, %v1520
          %v1564 = vsub.f32 %v1179, %v1522
          %v1565 = vsub.f32 %v1180, %v1524
          %v1566 = vsub.f32 %v1181, %v1526
          %v1567 = vsub.f32 %v1182, %v1528
          %v1568 = vsub.f32 %v1183, %v1530
          %v1569 = vsub.f32 %v1184, %v1532
          %v1570 = vsub.f32 %v1185, %v1534
          %v1571 = vsub.f32 %v1186, %v1536
          %v1572 = vsub.f32 %v1187, %v1538
          %v1573 = vsub.f32 %v1188, %v1540
          %v1574 = vsub.f32 %v1189, %v1542
          %1607 = vrot.lane.b32.xlu0 %v1543, 96
          %v1608 = vpop.permute.xlu0 %1607
          %1609 = vrot.lane.b32.xlu0 %v1544, 96
          %v1610 = vpop.permute.xlu0 %1609
          %1611 = vrot.lane.b32.xlu0 %v1545, 96
          %v1612 = vpop.permute.xlu0 %1611
          %1613 = vrot.lane.b32.xlu0 %v1546, 96
          %v1614 = vpop.permute.xlu0 %1613
          %1615 = vrot.lane.b32.xlu0 %v1547, 96
          %v1616 = vpop.permute.xlu0 %1615
          %1617 = vrot.lane.b32.xlu0 %v1548, 96
          %v1618 = vpop.permute.xlu0 %1617
          %1619 = vrot.lane.b32.xlu0 %v1549, 96
          %v1620 = vpop.permute.xlu0 %1619
          %1621 = vrot.lane.b32.xlu0 %v1550, 96
          %v1622 = vpop.permute.xlu0 %1621
          %1623 = vrot.lane.b32.xlu0 %v1551, 96
          %v1624 = vpop.permute.xlu0 %1623
          %1625 = vrot.lane.b32.xlu0 %v1552, 96
          %v1626 = vpop.permute.xlu0 %1625
          %1627 = vrot.lane.b32.xlu0 %v1553, 96
          %v1628 = vpop.permute.xlu0 %1627
          %1629 = vrot.lane.b32.xlu0 %v1554, 96
          %v1630 = vpop.permute.xlu0 %1629
          %1631 = vrot.lane.b32.xlu0 %v1555, 96
          %v1632 = vpop.permute.xlu0 %1631
          %1633 = vrot.lane.b32.xlu0 %v1556, 96
          %v1634 = vpop.permute.xlu0 %1633
          %1635 = vrot.lane.b32.xlu0 %v1557, 96
          %v1636 = vpop.permute.xlu0 %1635
          %1637 = vrot.lane.b32.xlu0 %v1558, 96
          %v1638 = vpop.permute.xlu0 %1637
          %1639 = vrot.lane.b32.xlu0 %v1559, 96
          %v1640 = vpop.permute.xlu0 %1639
          %1641 = vrot.lane.b32.xlu0 %v1560, 96
          %v1642 = vpop.permute.xlu0 %1641
          %1643 = vrot.lane.b32.xlu0 %v1561, 96
          %v1644 = vpop.permute.xlu0 %1643
          %1645 = vrot.lane.b32.xlu0 %v1562, 96
          %v1646 = vpop.permute.xlu0 %1645
          %1647 = vrot.lane.b32.xlu0 %v1563, 96
          %v1648 = vpop.permute.xlu0 %1647
          %1649 = vrot.lane.b32.xlu0 %v1564, 96
          %v1650 = vpop.permute.xlu0 %1649
          %1651 = vrot.lane.b32.xlu0 %v1565, 96
          %v1652 = vpop.permute.xlu0 %1651
          %1653 = vrot.lane.b32.xlu0 %v1566, 96
          %v1654 = vpop.permute.xlu0 %1653
          %1655 = vrot.lane.b32.xlu0 %v1567, 96
          %v1656 = vpop.permute.xlu0 %1655
          %1657 = vrot.lane.b32.xlu0 %v1568, 96
          %v1658 = vpop.permute.xlu0 %1657
          %1659 = vrot.lane.b32.xlu0 %v1569, 96
          %v1660 = vpop.permute.xlu0 %1659
          %1661 = vrot.lane.b32.xlu0 %v1570, 96
          %v1662 = vpop.permute.xlu0 %1661
          %1663 = vrot.lane.b32.xlu0 %v1571, 96
          %v1664 = vpop.permute.xlu0 %1663
          %1665 = vrot.lane.b32.xlu0 %v1572, 96
          %v1666 = vpop.permute.xlu0 %1665
          %1667 = vrot.lane.b32.xlu0 %v1573, 96
          %v1668 = vpop.permute.xlu0 %1667
          %1669 = vrot.lane.b32.xlu0 %v1574, 96
          %v1670 = vpop.permute.xlu0 %1669
          %1703 = vst.msk [vmem:[%s396] sm:$0xff] %vm1382, %v1608
          %1704 = vst.msk [vmem:[%s396 + $0x8] sm:$0xff] %vm1382, %v1610
          %1705 = vst.msk [vmem:[%s396 + $0x10] sm:$0xff] %vm1382, %v1612
          %1706 = vst.msk [vmem:[%s396 + $0x18] sm:$0xff] %vm1382, %v1614
          %1707 = vst.msk [vmem:[%s396 + $0x20] sm:$0xff] %vm1382, %v1616
          %1708 = vst.msk [vmem:[%s396 + $0x28] sm:$0xff] %vm1382, %v1618
          %1709 = vst.msk [vmem:[%s396 + $0x30] sm:$0xff] %vm1382, %v1620
          %1710 = vst.msk [vmem:[%s396 + $0x38] sm:$0xff] %vm1382, %v1622
          %1711 = vst.msk [vmem:[%s396 + $0x40] sm:$0xff] %vm1382, %v1624
          %1712 = vst.msk [vmem:[%s396 + $0x48] sm:$0xff] %vm1382, %v1626
          %1713 = vst.msk [vmem:[%s396 + $0x50] sm:$0xff] %vm1382, %v1628
          %1714 = vst.msk [vmem:[%s396 + $0x58] sm:$0xff] %vm1382, %v1630
          %1715 = vst.msk [vmem:[%s396 + $0x60] sm:$0xff] %vm1382, %v1632
          %1716 = vst.msk [vmem:[%s396 + $0x68] sm:$0xff] %vm1382, %v1634
          %1717 = vst.msk [vmem:[%s396 + $0x70] sm:$0xff] %vm1382, %v1636
          %1718 = vst.msk [vmem:[%s396 + $0x78] sm:$0xff] %vm1382, %v1638
          %1719 = vst.msk [vmem:[%s396 + $0x80] sm:$0xff] %vm1382, %v1640
          %1720 = vst.msk [vmem:[%s396 + $0x88] sm:$0xff] %vm1382, %v1642
          %1721 = vst.msk [vmem:[%s396 + $0x90] sm:$0xff] %vm1382, %v1644
          %1722 = vst.msk [vmem:[%s396 + $0x98] sm:$0xff] %vm1382, %v1646
          %1723 = vst.msk [vmem:[%s396 + $0xa0] sm:$0xff] %vm1382, %v1648
          %1724 = vst.msk [vmem:[%s396 + $0xa8] sm:$0xff] %vm1382, %v1650
          %1725 = vst.msk [vmem:[%s396 + $0xb0] sm:$0xff] %vm1382, %v1652
          %1726 = vst.msk [vmem:[%s396 + $0xb8] sm:$0xff] %vm1382, %v1654
          %1727 = vst.msk [vmem:[%s396 + $0xc0] sm:$0xff] %vm1382, %v1656
          %1728 = vst.msk [vmem:[%s396 + $0xc8] sm:$0xff] %vm1382, %v1658
          %1729 = vst.msk [vmem:[%s396 + $0xd0] sm:$0xff] %vm1382, %v1660
          %1730 = vst.msk [vmem:[%s396 + $0xd8] sm:$0xff] %vm1382, %v1662
          %1731 = vst.msk [vmem:[%s396 + $0xe0] sm:$0xff] %vm1382, %v1664
          %1732 = vst.msk [vmem:[%s396 + $0xe8] sm:$0xff] %vm1382, %v1666
          %1733 = vst.msk [vmem:[%s396 + $0xf0] sm:$0xff] %vm1382, %v1668
          %1734 = vst.msk [vmem:[%s396 + $0xf8] sm:$0xff] %vm1382, %v1670
          %v1735 = vmul.f32 %v1543, 1.442695
          %v1736 = vpow.pop %v1735
          %v1737 = vmul.f32 %v1544, 1.442695
          %v1738 = vpow.pop %v1737
          %v1739 = vmul.f32 %v1545, 1.442695
          %v1740 = vpow.pop %v1739
          %v1741 = vmul.f32 %v1546, 1.442695
          %v1742 = vpow.pop %v1741
          %v1743 = vmul.f32 %v1547, 1.442695
          %v1744 = vpow.pop %v1743
          %v1745 = vmul.f32 %v1548, 1.442695
          %v1746 = vpow.pop %v1745
          %v1747 = vmul.f32 %v1549, 1.442695
          %v1748 = vpow.pop %v1747
          %v1749 = vmul.f32 %v1550, 1.442695
          %v1750 = vpow.pop %v1749
          %v1751 = vmul.f32 %v1551, 1.442695
          %v1752 = vpow.pop %v1751
          %v1753 = vmul.f32 %v1552, 1.442695
          %v1754 = vpow.pop %v1753
          %v1755 = vmul.f32 %v1553, 1.442695
          %v1756 = vpow.pop %v1755
          %v1757 = vmul.f32 %v1554, 1.442695
          %v1758 = vpow.pop %v1757
          %v1759 = vmul.f32 %v1555, 1.442695
          %v1760 = vpow.pop %v1759
          %v1761 = vmul.f32 %v1556, 1.442695
          %v1762 = vpow.pop %v1761
          %v1763 = vmul.f32 %v1557, 1.442695
          %v1764 = vpow.pop %v1763
          %v1765 = vmul.f32 %v1558, 1.442695
          %v1766 = vpow.pop %v1765
          %v1767 = vmul.f32 %v1559, 1.442695
          %v1768 = vpow.pop %v1767
          %v1769 = vmul.f32 %v1560, 1.442695
          %v1770 = vpow.pop %v1769
          %v1771 = vmul.f32 %v1561, 1.442695
          %v1772 = vpow.pop %v1771
          %v1773 = vmul.f32 %v1562, 1.442695
          %v1774 = vpow.pop %v1773
          %v1775 = vmul.f32 %v1563, 1.442695
          %v1776 = vpow.pop %v1775
          %v1777 = vmul.f32 %v1564, 1.442695
          %v1778 = vpow.pop %v1777
          %v1779 = vmul.f32 %v1565, 1.442695
          %v1780 = vpow.pop %v1779
          %v1781 = vmul.f32 %v1566, 1.442695
          %v1782 = vpow.pop %v1781
          %v1783 = vmul.f32 %v1567, 1.442695
          %v1784 = vpow.pop %v1783
          %v1785 = vmul.f32 %v1568, 1.442695
          %v1786 = vpow.pop %v1785
          %v1787 = vmul.f32 %v1569, 1.442695
          %v1788 = vpow.pop %v1787
          %v1789 = vmul.f32 %v1570, 1.442695
          %v1790 = vpow.pop %v1789
          %v1791 = vmul.f32 %v1571, 1.442695
          %v1792 = vpow.pop %v1791
          %v1793 = vmul.f32 %v1572, 1.442695
          %v1794 = vpow.pop %v1793
          %v1795 = vmul.f32 %v1573, 1.442695
          %v1796 = vpow.pop %v1795
          %v1797 = vmul.f32 %v1574, 1.442695
          %v1798 = vpow.pop %v1797
          %1831 = vrot.lane.b32.xlu0 %v1736, 96
          %v1832 = vpop.permute.xlu0 %1831
          %1833 = vrot.lane.b32.xlu0 %v1738, 96
          %v1834 = vpop.permute.xlu0 %1833
          %1835 = vrot.lane.b32.xlu0 %v1740, 96
          %v1836 = vpop.permute.xlu0 %1835
          %1837 = vrot.lane.b32.xlu0 %v1742, 96
          %v1838 = vpop.permute.xlu0 %1837
          %1839 = vrot.lane.b32.xlu0 %v1744, 96
          %v1840 = vpop.permute.xlu0 %1839
          %1841 = vrot.lane.b32.xlu0 %v1746, 96
          %v1842 = vpop.permute.xlu0 %1841
          %1843 = vrot.lane.b32.xlu0 %v1748, 96
          %v1844 = vpop.permute.xlu0 %1843
          %1845 = vrot.lane.b32.xlu0 %v1750, 96
          %v1846 = vpop.permute.xlu0 %1845
          %1847 = vrot.lane.b32.xlu0 %v1752, 96
          %v1848 = vpop.permute.xlu0 %1847
          %1849 = vrot.lane.b32.xlu0 %v1754, 96
          %v1850 = vpop.permute.xlu0 %1849
          %1851 = vrot.lane.b32.xlu0 %v1756, 96
          %v1852 = vpop.permute.xlu0 %1851
          %1853 = vrot.lane.b32.xlu0 %v1758, 96
          %v1854 = vpop.permute.xlu0 %1853
          %1855 = vrot.lane.b32.xlu0 %v1760, 96
          %v1856 = vpop.permute.xlu0 %1855
          %1857 = vrot.lane.b32.xlu0 %v1762, 96
          %v1858 = vpop.permute.xlu0 %1857
          %1859 = vrot.lane.b32.xlu0 %v1764, 96
          %v1860 = vpop.permute.xlu0 %1859
          %1861 = vrot.lane.b32.xlu0 %v1766, 96
          %v1862 = vpop.permute.xlu0 %1861
          %1863 = vrot.lane.b32.xlu0 %v1768, 96
          %v1864 = vpop.permute.xlu0 %1863
          %1865 = vrot.lane.b32.xlu0 %v1770, 96
          %v1866 = vpop.permute.xlu0 %1865
          %1867 = vrot.lane.b32.xlu0 %v1772, 96
          %v1868 = vpop.permute.xlu0 %1867
          %1869 = vrot.lane.b32.xlu0 %v1774, 96
          %v1870 = vpop.permute.xlu0 %1869
          %1871 = vrot.lane.b32.xlu0 %v1776, 96
          %v1872 = vpop.permute.xlu0 %1871
          %1873 = vrot.lane.b32.xlu0 %v1778, 96
          %v1874 = vpop.permute.xlu0 %1873
          %1875 = vrot.lane.b32.xlu0 %v1780, 96
          %v1876 = vpop.permute.xlu0 %1875
          %1877 = vrot.lane.b32.xlu0 %v1782, 96
          %v1878 = vpop.permute.xlu0 %1877
          %1879 = vrot.lane.b32.xlu0 %v1784, 96
          %v1880 = vpop.permute.xlu0 %1879
          %1881 = vrot.lane.b32.xlu0 %v1786, 96
          %v1882 = vpop.permute.xlu0 %1881
          %1883 = vrot.lane.b32.xlu0 %v1788, 96
          %v1884 = vpop.permute.xlu0 %1883
          %1885 = vrot.lane.b32.xlu0 %v1790, 96
          %v1886 = vpop.permute.xlu0 %1885
          %1887 = vrot.lane.b32.xlu0 %v1792, 96
          %v1888 = vpop.permute.xlu0 %1887
          %1889 = vrot.lane.b32.xlu0 %v1794, 96
          %v1890 = vpop.permute.xlu0 %1889
          %1891 = vrot.lane.b32.xlu0 %v1796, 96
          %v1892 = vpop.permute.xlu0 %1891
          %1893 = vrot.lane.b32.xlu0 %v1798, 96
          %v1894 = vpop.permute.xlu0 %1893
          %1927 = vst.msk [vmem:[%s402] sm:$0xff] %vm1382, %v1832
          %1928 = vst.msk [vmem:[%s402 + $0x8] sm:$0xff] %vm1382, %v1834
          %1929 = vst.msk [vmem:[%s402 + $0x10] sm:$0xff] %vm1382, %v1836
          %1930 = vst.msk [vmem:[%s402 + $0x18] sm:$0xff] %vm1382, %v1838
          %1931 = vst.msk [vmem:[%s402 + $0x20] sm:$0xff] %vm1382, %v1840
          %1932 = vst.msk [vmem:[%s402 + $0x28] sm:$0xff] %vm1382, %v1842
          %1933 = vst.msk [vmem:[%s402 + $0x30] sm:$0xff] %vm1382, %v1844
          %1934 = vst.msk [vmem:[%s402 + $0x38] sm:$0xff] %vm1382, %v1846
          %1935 = vst.msk [vmem:[%s402 + $0x40] sm:$0xff] %vm1382, %v1848
          %1936 = vst.msk [vmem:[%s402 + $0x48] sm:$0xff] %vm1382, %v1850
          %1937 = vst.msk [vmem:[%s402 + $0x50] sm:$0xff] %vm1382, %v1852
          %1938 = vst.msk [vmem:[%s402 + $0x58] sm:$0xff] %vm1382, %v1854
          %1939 = vst.msk [vmem:[%s402 + $0x60] sm:$0xff] %vm1382, %v1856
          %1940 = vst.msk [vmem:[%s402 + $0x68] sm:$0xff] %vm1382, %v1858
          %1941 = vst.msk [vmem:[%s402 + $0x70] sm:$0xff] %vm1382, %v1860
          %1942 = vst.msk [vmem:[%s402 + $0x78] sm:$0xff] %vm1382, %v1862
          %1943 = vst.msk [vmem:[%s402 + $0x80] sm:$0xff] %vm1382, %v1864
          %1944 = vst.msk [vmem:[%s402 + $0x88] sm:$0xff] %vm1382, %v1866
          %1945 = vst.msk [vmem:[%s402 + $0x90] sm:$0xff] %vm1382, %v1868
          %1946 = vst.msk [vmem:[%s402 + $0x98] sm:$0xff] %vm1382, %v1870
          %1947 = vst.msk [vmem:[%s402 + $0xa0] sm:$0xff] %vm1382, %v1872
          %1948 = vst.msk [vmem:[%s402 + $0xa8] sm:$0xff] %vm1382, %v1874
          %1949 = vst.msk [vmem:[%s402 + $0xb0] sm:$0xff] %vm1382, %v1876
          %1950 = vst.msk [vmem:[%s402 + $0xb8] sm:$0xff] %vm1382, %v1878
          %1951 = vst.msk [vmem:[%s402 + $0xc0] sm:$0xff] %vm1382, %v1880
          %1952 = vst.msk [vmem:[%s402 + $0xc8] sm:$0xff] %vm1382, %v1882
          %1953 = vst.msk [vmem:[%s402 + $0xd0] sm:$0xff] %vm1382, %v1884
          %1954 = vst.msk [vmem:[%s402 + $0xd8] sm:$0xff] %vm1382, %v1886
          %1955 = vst.msk [vmem:[%s402 + $0xe0] sm:$0xff] %vm1382, %v1888
          %1956 = vst.msk [vmem:[%s402 + $0xe8] sm:$0xff] %vm1382, %v1890
          %1957 = vst.msk [vmem:[%s402 + $0xf0] sm:$0xff] %vm1382, %v1892
          %1958 = vst.msk [vmem:[%s402 + $0xf8] sm:$0xff] %vm1382, %v1894
        $region74: #{cdrs_forward.6} parent=61 // pred_fallthru
          _
        %s1959 = smul.u32 32, %s20
        %p1960 = scmp.lt.s32.totalorder %s1959, 95
        %s1961 = scalar_select %p1960, %s1959, 95
        %s1962 = smul.addr %s1961, 8
        %s1963 = scalar_lea.vmem %s2, %s1962
        %s1964 = smul.u32 32, %s20
        %p1965 = scmp.lt.s32.totalorder %s1964, 95
        %s1966 = scalar_select %p1965, %s1964, 95
        %s1967 = smul.addr %s1966, 8
        %s1968 = scalar_lea.vmem %s3, %s1967
        %s1969 = smul.u32 32, %s20
        %p1970 = scmp.lt.s32.totalorder %s1969, 95
        %s1971 = scalar_select %p1970, %s1969, 95
        %s1972 = smul.addr %s1971, 8
        %s1973 = scalar_lea.vmem %s4, %s1972
        // Predicated region
        $region75: #{cdrs_forward.6} parent=61 // pred_check
          %p1974 = pneg %p95
        $region76: #{cdrs_forward.6} parent=61 // pred_check_branch
          %1976 = sbr.rel (%p1974) target = $region78
        $region77: #{cdrs_forward.6} parent=61 // pred_region
          %s1977 = smul.u32 32, %s20
        $region78: #{cdrs_forward.6} parent=61 // pred_fallthru
          _
        // Predicated region
        $region79: #{cdrs_forward.6} parent=61 // pred_check
          %p1978 = pneg %p121
        $region80: #{cdrs_forward.6} parent=61 // pred_check_branch
          %1980 = sbr.rel (%p1978) target = $region82
        $region81: #{cdrs_forward.6} parent=61 // pred_region
          %s1981 = smul.u32 32, %s20
        $region82: #{cdrs_forward.6} parent=61 // pred_fallthru
          _
        // Predicated region
        $region83: #{cdrs_forward.6} parent=61 // pred_check
          %p1982 = pneg %p147
        $region84: #{cdrs_forward.6} parent=61 // pred_check_branch
          %1984 = sbr.rel (%p1982) target = $region86
        $region85: #{cdrs_forward.6} parent=61 // pred_region
          %s1985 = smul.u32 32, %s20
        $region86: #{cdrs_forward.6} parent=61 // pred_fallthru
          _
      $region62: #{cdrs_forward.6} parent=5 // pred_fallthru
        _
      %p1986 = scmp.le.s32.totalorder 2, %s11
      // Predicated region
      $region87: #{cdrs_forward.6} parent=5 // pred_check
        %p1987 = pneg %p1986
      $region88: #{cdrs_forward.6} parent=5 // pred_check_branch
        %1989 = sbr.rel (%p1987) target = $region90
      $region89: #{cdrs_forward.6} parent=5 // pred_region
        %s1990 = ssub.s32 %s11, 2
        // Predicated region
        $region91: #{cdrs_forward.6} parent=89 // pred_check
          %p1991 = pneg %p101
        $region92: #{cdrs_forward.6} parent=89 // pred_check_branch
          %1993 = sbr.rel (%p1991) target = $region94
        $region93: #{cdrs_forward.6} parent=89 // pred_region
          %s1994 = smul.u32 32, %s22
          %p1995 = scmp.lt.s32.totalorder %s1994, 95
          %s1996 = scalar_select %p1995, %s1994, 95
          %s1997 = smul.addr %s1996, 8
          %s1998 = scalar_lea.vmem %s2, %s1997
        $region94: #{cdrs_forward.6} parent=89 // pred_fallthru
          _
        // Predicated region
        $region95: #{cdrs_forward.6} parent=89 // pred_check
          %p1999 = pneg %p127
        $region96: #{cdrs_forward.6} parent=89 // pred_check_branch
          %2001 = sbr.rel (%p1999) target = $region98
        $region97: #{cdrs_forward.6} parent=89 // pred_region
          %s2002 = smul.u32 32, %s22
          %p2003 = scmp.lt.s32.totalorder %s2002, 95
          %s2004 = scalar_select %p2003, %s2002, 95
          %s2005 = smul.addr %s2004, 8
          %s2006 = scalar_lea.vmem %s3, %s2005
        $region98: #{cdrs_forward.6} parent=89 // pred_fallthru
          _
        // Predicated region
        $region99: #{cdrs_forward.6} parent=89 // pred_check
          %p2007 = pneg %p153
        $region100: #{cdrs_forward.6} parent=89 // pred_check_branch
          %2009 = sbr.rel (%p2007) target = $region102
        $region101: #{cdrs_forward.6} parent=89 // pred_region
          %s2010 = smul.u32 32, %s22
          %p2011 = scmp.lt.s32.totalorder %s2010, 95
          %s2012 = scalar_select %p2011, %s2010, 95
          %s2013 = smul.addr %s2012, 8
          %s2014 = scalar_lea.vmem %s4, %s2013
        $region102: #{cdrs_forward.6} parent=89 // pred_fallthru
          _
      $region90: #{cdrs_forward.6} parent=5 // pred_fallthru
        _
    $region6: #{cdrs_forward.6} parent=1 // loop_footer
      %s15 = sadd.s32 1, %s11
    $region7: #{cdrs_forward.6} parent=1 // loop_footer_branch
      %10 = sbr.rel target = $region3
    $region8: #{cdrs_forward.6} parent=1 // loop_exit
      _

// kernel: cdrs_forward.7
$region0: #{cdrs_forward.7}
  #allocation0 [shape = 'u32[]', space=smem, size = 0x4, offset = 0x4, fixed_abs, tag = 'smem constant byte address 0x4 - core index']
  #allocation1 [shape = 'u32[144,128]{1,0:T(1,128)}', space=vmem, size = 0x12000, scoped, tag = 'internal scratch']
  %s0 = inlined_call_operand.vmem [shape: f32[768,16], index: 0, kind: input, shape index: {}, may-alias: {0,1}]
  %s1 = inlined_call_operand.vmem [shape: f32[768,16], index: 1, kind: input, shape index: {}, may-alias: {0,1}]
  %s2 = inlined_call_operand.vmem [shape: f32[768,768], index: 2, kind: output, shape index: {}]
  %s3 = sld [smem:[#allocation0]]
  $region60: #{cdrs_forward.7} parent=0
    _
  %s5 = ssub.s32 1, %s3
  %s6 = scalar_select 0, %s5, %s3
  $region1: #{cdrs_forward.7} parent=0
    #allocation2 [shape = 'u8[524288]{0}', space=vmem, size = 0x80000, scoped, tag = 'output window, operand 0']
    loop: start=0, step=1, limit=11
    $region2: #{cdrs_forward.7} parent=1 // loop_pre_header
      _
    $region3: #{cdrs_forward.7} parent=1 // loop_header
      %s8 = sphi 0, %s12
      %p9 = scmp.ge.s32.totalorder %s8, 11
      %s15 = sphi 0, %s27
      %s16 = sphi 0, %s23
      %s17 = sphi 0, %s15
      %s18 = sphi 0, %s16
      %s19 = sphi 0, %s17
      %s20 = sphi 0, %s18
      %s30 = sphi 0, %s32
      %s33 = sphi 0, %s30
      %s34 = sphi 0, %s33
      %s50 = sphi 0, %s34
      %s54 = sphi 0, %s54
      %s56 = sphi 0, %s54
      %s57 = sphi 0, %s56
      %s71 = sphi 0, %s57
      %s79 = sphi 0, %s81
      %s82 = sphi 0, %s79
      %s83 = sphi 0, %s82
      %s99 = sphi 0, %s83
    $region4: #{cdrs_forward.7} parent=1 // loop_header_branch
      %11 = sbr.rel (%p9) target = $region8
    $region5: #{cdrs_forward.7} parent=1 // loop_body
      %s13 = ssub.s32 %s8, 1
      %s14 = ssub.s32 %s8, 2
      %s21 = sadd.s32 1, %s16
      %p22 = scmp.ge.s32.totalorder %s21, 3
      %s23 = scalar_select %p22, 0, %s21
      %s24 = sadd.s32 1, %s15
      %s25 = scalar_select %p22, %s24, %s15
      %p26 = scmp.ge.s32.totalorder %s25, 3
      %s27 = scalar_select %p26, 0, %s25
      %s28 = ssub.s32 %s15, %s27
      %p29 = scmp.eq.s32.totalorder %s28, 0
      %s31 = sadd.s32 %s30, 1
      %s32 = scalar_select %p29, %s30, %s31
      %p35 = pneg %p29
      %p36 = scmp.eq.s32.totalorder %s8, 8
      %p37 = por %p35, %p36
      %p38 = scmp.ne.s32.totalorder %s30, %s33
      %p39 = scmp.eq.s32.totalorder %s8, 0
      %p40 = por %p38, %p39
      %p41 = scmp.ne.s32.totalorder %s30, %s33
      %p42 = scmp.eq.s32.totalorder %s13, 8
      %p43 = por %p41, %p42
      %p44 = scmp.ne.s32.totalorder %s33, %s34
      %p45 = scmp.eq.s32.totalorder %s13, 0
      %p46 = por %p44, %p45
      %p47 = scmp.ne.s32.totalorder %s33, %s34
      %p48 = scmp.eq.s32.totalorder %s14, 8
      %p49 = por %p47, %p48
      %p51 = scmp.ne.s32.totalorder %s34, %s50
      %p52 = scmp.eq.s32.totalorder %s14, 0
      %p53 = por %p51, %p52
      %s55 = sadd.s32 %s54, 1
      %p58 = scmp.eq.s32.totalorder %s8, 8
      %p59 = scmp.ne.s32.totalorder %s54, %s56
      %p60 = scmp.eq.s32.totalorder %s8, 0
      %p61 = por %p59, %p60
      %p62 = scmp.ne.s32.totalorder %s54, %s56
      %p63 = scmp.eq.s32.totalorder %s13, 8
      %p64 = por %p62, %p63
      %p65 = scmp.ne.s32.totalorder %s56, %s57
      %p66 = scmp.eq.s32.totalorder %s13, 0
      %p67 = por %p65, %p66
      %p68 = scmp.ne.s32.totalorder %s56, %s57
      %p69 = scmp.eq.s32.totalorder %s14, 8
      %p70 = por %p68, %p69
      %p72 = scmp.ne.s32.totalorder %s57, %s71
      %p73 = scmp.eq.s32.totalorder %s14, 0
      %p74 = por %p72, %p73
      %s75 = ssub.s32 %s15, %s27
      %s76 = ssub.s32 %s16, %s23
      %s77 = sor.u32 %s75, %s76
      %p78 = scmp.eq.s32.totalorder %s77, 0
      %s80 = sadd.s32 %s79, 1
      %s81 = scalar_select %p78, %s79, %s80
      %p84 = pneg %p78
      %p85 = scmp.eq.s32.totalorder %s8, 8
      %p86 = por %p84, %p85
      %p87 = scmp.ne.s32.totalorder %s79, %s82
      %p88 = scmp.eq.s32.totalorder %s8, 0
      %p89 = por %p87, %p88
      %p90 = scmp.ne.s32.totalorder %s79, %s82
      %p91 = scmp.eq.s32.totalorder %s13, 8
      %p92 = por %p90, %p91
      %p93 = scmp.ne.s32.totalorder %s82, %s83
      %p94 = scmp.eq.s32.totalorder %s13, 0
      %p95 = por %p93, %p94
      %p96 = scmp.ne.s32.totalorder %s82, %s83
      %p97 = scmp.eq.s32.totalorder %s14, 8
      %p98 = por %p96, %p97
      %p100 = scmp.ne.s32.totalorder %s83, %s99
      %p101 = scmp.eq.s32.totalorder %s14, 0
      %p102 = por %p100, %p101
      %p103 = scmp.le.s32.totalorder 1, %s8
      %p104 = scmp.lt.s32.totalorder %s8, 10
      %p105 = pnand %p103, %p104
      %p106 = pneg %p105
      // Predicated region
      $region9: #{cdrs_forward.7} parent=5 // pred_check
        _
      $region10: #{cdrs_forward.7} parent=5 // pred_check_branch
        %108 = sbr.rel (%p105) target = $region12
      $region11: #{cdrs_forward.7} parent=5 // pred_region
        %s109 = ssub.s32 %s8, 1
        // Predicated region
        $region13: #{cdrs_forward.7} parent=11 // pred_check
          %p110 = pneg %p67
        $region14: #{cdrs_forward.7} parent=11 // pred_check_branch
          %112 = sbr.rel (%p110) target = $region16
        $region15: #{cdrs_forward.7} parent=11 // pred_region
          _
        $region16: #{cdrs_forward.7} parent=11 // pred_fallthru
          _
      $region12: #{cdrs_forward.7} parent=5 // pred_fallthru
        _
      %p113 = scmp.lt.s32.totalorder %s8, 9
      // Predicated region
      $region17: #{cdrs_forward.7} parent=5 // pred_check
        %p114 = pneg %p113
      $region18: #{cdrs_forward.7} parent=5 // pred_check_branch
        %116 = sbr.rel (%p114) target = $region20
      $region19: #{cdrs_forward.7} parent=5 // pred_region
        // Predicated region
        $region21: #{cdrs_forward.7} parent=19 // pred_check
          %p117 = pneg %p40
        $region22: #{cdrs_forward.7} parent=19 // pred_check_branch
          %119 = sbr.rel (%p117) target = $region24
        $region23: #{cdrs_forward.7} parent=19 // pred_region
          %s120 = smul.u32 32, %s15
          %p121 = scmp.lt.s32.totalorder %s120, 95
          %s122 = scalar_select %p121, %s120, 95
          %s123 = smul.addr %s122, 8
          %s124 = scalar_lea.vmem %s0, %s123
          %s125 = smul.u32 32, %s15
        $region24: #{cdrs_forward.7} parent=19 // pred_fallthru
          _
      $region20: #{cdrs_forward.7} parent=5 // pred_fallthru
        _
      %p126 = scmp.le.s32.totalorder 1, %s8
      %p127 = scmp.lt.s32.totalorder %s8, 10
      %p128 = pnand %p126, %p127
      %p129 = pneg %p128
      // Predicated region
      $region25: #{cdrs_forward.7} parent=5 // pred_check
        _
      $region26: #{cdrs_forward.7} parent=5 // pred_check_branch
        %131 = sbr.rel (%p128) target = $region28
      $region27: #{cdrs_forward.7} parent=5 // pred_region
        %s132 = ssub.s32 %s8, 1
        %s133 = smul.u32 32, %s17
        %p134 = scmp.lt.s32.totalorder %s133, 95
        %s135 = scalar_select %p134, %s133, 95
        %s136 = smul.addr %s135, 8
        %s137 = scalar_lea.vmem %s0, %s136
        %p138 = pneg %p46
        %p139 = pneg %p43
        %p140 = pneg %p67
        %p141 = pneg %p64
        %p142 = pneg %p95
        %p143 = pneg %p92
        %s144 = sand.u32 %s82, 1
        %s145 = sand.u32 %s82, 1
        %s146 = smul.addr %s145, 512
        %s147 = scalar_lea.vmem [#allocation2], %s146
        %s148 = smul.u32 32, %s17
        %p149 = scmp.lt.s32.totalorder %s148, 95
        %s150 = scalar_select %p149, %s148, 95
        %s151 = smul.addr %s150, 8
        %s152 = scalar_lea.vmem %s0, %s151
        %s153 = smul.u32 32, %s17
        %s154 = smul.u32 32, %s17
        %s155 = smul.u32 2, %s18
        %s156 = smul.u32 %s18, 256
        %s157 = scalar_lea.vmem %s1, %s156
        %v158 = vld [vmem:[%s157] sm:$0xff]
        %v159 = vld [vmem:[%s157 + $0x8] sm:$0xff]
        %v160 = vld [vmem:[%s157 + $0x10] sm:$0xff]
        %v161 = vld [vmem:[%s157 + $0x18] sm:$0xff]
        %v162 = vld [vmem:[%s157 + $0x20] sm:$0xff]
        %v163 = vld [vmem:[%s157 + $0x28] sm:$0xff]
        %v164 = vld [vmem:[%s157 + $0x30] sm:$0xff]
        %v165 = vld [vmem:[%s157 + $0x38] sm:$0xff]
        %v166 = vld [vmem:[%s157 + $0x40] sm:$0xff]
        %v167 = vld [vmem:[%s157 + $0x48] sm:$0xff]
        %v168 = vld [vmem:[%s157 + $0x50] sm:$0xff]
        %v169 = vld [vmem:[%s157 + $0x58] sm:$0xff]
        %v170 = vld [vmem:[%s157 + $0x60] sm:$0xff]
        %v171 = vld [vmem:[%s157 + $0x68] sm:$0xff]
        %v172 = vld [vmem:[%s157 + $0x70] sm:$0xff]
        %v173 = vld [vmem:[%s157 + $0x78] sm:$0xff]
        %v174 = vld [vmem:[%s157 + $0x80] sm:$0xff]
        %v175 = vld [vmem:[%s157 + $0x88] sm:$0xff]
        %v176 = vld [vmem:[%s157 + $0x90] sm:$0xff]
        %v177 = vld [vmem:[%s157 + $0x98] sm:$0xff]
        %v178 = vld [vmem:[%s157 + $0xa0] sm:$0xff]
        %v179 = vld [vmem:[%s157 + $0xa8] sm:$0xff]
        %v180 = vld [vmem:[%s157 + $0xb0] sm:$0xff]
        %v181 = vld [vmem:[%s157 + $0xb8] sm:$0xff]
        %v182 = vld [vmem:[%s157 + $0xc0] sm:$0xff]
        %v183 = vld [vmem:[%s157 + $0xc8] sm:$0xff]
        %v184 = vld [vmem:[%s157 + $0xd0] sm:$0xff]
        %v185 = vld [vmem:[%s157 + $0xd8] sm:$0xff]
        %v186 = vld [vmem:[%s157 + $0xe0] sm:$0xff]
        %v187 = vld [vmem:[%s157 + $0xe8] sm:$0xff]
        %v188 = vld [vmem:[%s157 + $0xf0] sm:$0xff]
        %v189 = vld [vmem:[%s157 + $0xf8] sm:$0xff]
        %v190 = vld [vmem:[%s152] sm:$0xff]
        %v191 = vld [vmem:[%s152 + $0x8] sm:$0xff]
        %v192 = vld [vmem:[%s152 + $0x10] sm:$0xff]
        %v193 = vld [vmem:[%s152 + $0x18] sm:$0xff]
        %v194 = vld [vmem:[%s152 + $0x20] sm:$0xff]
        %v195 = vld [vmem:[%s152 + $0x28] sm:$0xff]
        %v196 = vld [vmem:[%s152 + $0x30] sm:$0xff]
        %v197 = vld [vmem:[%s152 + $0x38] sm:$0xff]
        %v198 = vld [vmem:[%s152 + $0x40] sm:$0xff]
        %v199 = vld [vmem:[%s152 + $0x48] sm:$0xff]
        %v200 = vld [vmem:[%s152 + $0x50] sm:$0xff]
        %v201 = vld [vmem:[%s152 + $0x58] sm:$0xff]
        %v202 = vld [vmem:[%s152 + $0x60] sm:$0xff]
        %v203 = vld [vmem:[%s152 + $0x68] sm:$0xff]
        %v204 = vld [vmem:[%s152 + $0x70] sm:$0xff]
        %v205 = vld [vmem:[%s152 + $0x78] sm:$0xff]
        %v206 = vld [vmem:[%s152 + $0x80] sm:$0xff]
        %v207 = vld [vmem:[%s152 + $0x88] sm:$0xff]
        %v208 = vld [vmem:[%s152 + $0x90] sm:$0xff]
        %v209 = vld [vmem:[%s152 + $0x98] sm:$0xff]
        %v210 = vld [vmem:[%s152 + $0xa0] sm:$0xff]
        %v211 = vld [vmem:[%s152 + $0xa8] sm:$0xff]
        %v212 = vld [vmem:[%s152 + $0xb0] sm:$0xff]
        %v213 = vld [vmem:[%s152 + $0xb8] sm:$0xff]
        %v214 = vld [vmem:[%s152 + $0xc0] sm:$0xff]
        %v215 = vld [vmem:[%s152 + $0xc8] sm:$0xff]
        %v216 = vld [vmem:[%s152 + $0xd0] sm:$0xff]
        %v217 = vld [vmem:[%s152 + $0xd8] sm:$0xff]
        %v218 = vld [vmem:[%s152 + $0xe0] sm:$0xff]
        %v219 = vld [vmem:[%s152 + $0xe8] sm:$0xff]
        %v220 = vld [vmem:[%s152 + $0xf0] sm:$0xff]
        %v221 = vld [vmem:[%s152 + $0xf8] sm:$0xff]
        %vm222 = vcmask 130048
        %v224 = vsel %vm222, %v190, 0
        %v227 = vsel %vm222, %v191, 0
        %v230 = vsel %vm222, %v192, 0
        %v233 = vsel %vm222, %v193, 0
        %v236 = vsel %vm222, %v194, 0
        %v239 = vsel %vm222, %v195, 0
        %v242 = vsel %vm222, %v196, 0
        %v245 = vsel %vm222, %v197, 0
        %v248 = vsel %vm222, %v198, 0
        %v251 = vsel %vm222, %v199, 0
        %v254 = vsel %vm222, %v200, 0
        %v257 = vsel %vm222, %v201, 0
        %v260 = vsel %vm222, %v202, 0
        %v263 = vsel %vm222, %v203, 0
        %v266 = vsel %vm222, %v204, 0
        %v269 = vsel %vm222, %v205, 0
        %v272 = vsel %vm222, %v206, 0
        %v275 = vsel %vm222, %v207, 0
        %v278 = vsel %vm222, %v208, 0
        %v281 = vsel %vm222, %v209, 0
        %v284 = vsel %vm222, %v210, 0
        %v287 = vsel %vm222, %v211, 0
        %v290 = vsel %vm222, %v212, 0
        %v293 = vsel %vm222, %v213, 0
        %v296 = vsel %vm222, %v214, 0
        %v299 = vsel %vm222, %v215, 0
        %v302 = vsel %vm222, %v216, 0
        %v305 = vsel %vm222, %v217, 0
        %v308 = vsel %vm222, %v218, 0
        %v311 = vsel %vm222, %v219, 0
        %v314 = vsel %vm222, %v220, 0
        %v317 = vsel %vm222, %v221, 0
        %v320 = vsel %vm222, %v158, 0
        %v323 = vsel %vm222, %v159, 0
        %v326 = vsel %vm222, %v160, 0
        %v329 = vsel %vm222, %v161, 0
        %v332 = vsel %vm222, %v162, 0
        %v335 = vsel %vm222, %v163, 0
        %v338 = vsel %vm222, %v164, 0
        %v341 = vsel %vm222, %v165, 0
        %v344 = vsel %vm222, %v166, 0
        %v347 = vsel %vm222, %v167, 0
        %v350 = vsel %vm222, %v168, 0
        %v353 = vsel %vm222, %v169, 0
        %v356 = vsel %vm222, %v170, 0
        %v359 = vsel %vm222, %v171, 0
        %v362 = vsel %vm222, %v172, 0
        %v365 = vsel %vm222, %v173, 0
        %v368 = vsel %vm222, %v174, 0
        %v371 = vsel %vm222, %v175, 0
        %v374 = vsel %vm222, %v176, 0
        %v377 = vsel %vm222, %v177, 0
        %v380 = vsel %vm222, %v178, 0
        %v383 = vsel %vm222, %v179, 0
        %v386 = vsel %vm222, %v180, 0
        %v389 = vsel %vm222, %v181, 0
        %v392 = vsel %vm222, %v182, 0
        %v395 = vsel %vm222, %v183, 0
        %v398 = vsel %vm222, %v184, 0
        %v401 = vsel %vm222, %v185, 0
        %v404 = vsel %vm222, %v186, 0
        %v407 = vsel %vm222, %v187, 0
        %v410 = vsel %vm222, %v188, 0
        %v413 = vsel %vm222, %v189, 0
        %415 = vmatprep.subr.mxu0 0.0
        %416 = vmatpush1.xpose.msra.mxu0 %v320
        %417 = vmatprep.subr.mxu0 0.0
        %418 = vmatpush1.xpose.msra.mxu0 %v323
        %419 = vmatprep.subr.mxu0 0.0
        %420 = vmatpush1.xpose.msra.mxu0 %v326
        %421 = vmatprep.subr.mxu0 0.0
        %422 = vmatpush1.xpose.msra.mxu0 %v329
        %423 = vmatprep.subr.mxu0 0.0
        %424 = vmatpush1.xpose.msra.mxu0 %v332
        %425 = vmatprep.subr.mxu0 0.0
        %426 = vmatpush1.xpose.msra.mxu0 %v335
        %427 = vmatprep.subr.mxu0 0.0
        %428 = vmatpush1.xpose.msra.mxu0 %v338
        %429 = vmatprep.subr.mxu0 0.0
        %430 = vmatpush1.xpose.msra.mxu0 %v341
        %431 = vmatprep.subr.mxu0 0.0
        %432 = vmatpush1.xpose.msra.mxu0 %v344
        %433 = vmatprep.subr.mxu0 0.0
        %434 = vmatpush1.xpose.msra.mxu0 %v347
        %435 = vmatprep.subr.mxu0 0.0
        %436 = vmatpush1.xpose.msra.mxu0 %v350
        %437 = vmatprep.subr.mxu0 0.0
        %438 = vmatpush1.xpose.msra.mxu0 %v353
        %439 = vmatprep.subr.mxu0 0.0
        %440 = vmatpush1.xpose.msra.mxu0 %v356
        %441 = vmatprep.subr.mxu0 0.0
        %442 = vmatpush1.xpose.msra.mxu0 %v359
        %443 = vmatprep.subr.mxu0 0.0
        %444 = vmatpush1.xpose.msra.mxu0 %v362
        %445 = vmatprep.subr.mxu0 0.0
        %446 = vmatpush1.xpose.msra.mxu0 %v365
        %447 = vmatprep.subr.mxu0 0.0
        %448 = vmatpush1.xpose.msra.mxu0 %v368
        %449 = vmatprep.subr.mxu0 0.0
        %450 = vmatpush1.xpose.msra.mxu0 %v371
        %451 = vmatprep.subr.mxu0 0.0
        %452 = vmatpush1.xpose.msra.mxu0 %v374
        %453 = vmatprep.subr.mxu0 0.0
        %454 = vmatpush1.xpose.msra.mxu0 %v377
        %455 = vmatprep.subr.mxu0 0.0
        %456 = vmatpush1.xpose.msra.mxu0 %v380
        %457 = vmatprep.subr.mxu0 0.0
        %458 = vmatpush1.xpose.msra.mxu0 %v383
        %459 = vmatprep.subr.mxu0 0.0
        %460 = vmatpush1.xpose.msra.mxu0 %v386
        %461 = vmatprep.subr.mxu0 0.0
        %462 = vmatpush1.xpose.msra.mxu0 %v389
        %463 = vmatprep.subr.mxu0 0.0
        %464 = vmatpush1.xpose.msra.mxu0 %v392
        %465 = vmatprep.subr.mxu0 0.0
        %466 = vmatpush1.xpose.msra.mxu0 %v395
        %467 = vmatprep.subr.mxu0 0.0
        %468 = vmatpush1.xpose.msra.mxu0 %v398
        %469 = vmatprep.subr.mxu0 0.0
        %470 = vmatpush1.xpose.msra.mxu0 %v401
        %471 = vmatprep.subr.mxu0 0.0
        %472 = vmatpush1.xpose.msra.mxu0 %v404
        %473 = vmatprep.subr.mxu0 0.0
        %474 = vmatpush1.xpose.msra.mxu0 %v407
        %475 = vmatprep.subr.mxu0 0.0
        %476 = vmatpush1.xpose.msra.mxu0 %v410
        %477 = vmatprep.subr.mxu0 0.0
        %478 = vmatpush1.xpose.msra.mxu0 %v413
        %479 = vmatprep.mubr.f32.mxu0 0.0
        %480 = vmatmul.mubr.f32.gmra.mrb[0].mxu0 %v224
        %v481 = vpop.f32.mrb[0].mxu0
        %v482 = vadd.f32 0.0, %v481
        %v483 = vpop.f32.mrb[0].mxu0
        %v484 = vadd.f32 0.0, %v483
        %485 = vmatprep.mubr.f32.mxu0 0.0
        %486 = vmatmul.mubr.f32.gmra.mrb[0].mxu0 %v227
        %v487 = vpop.f32.mrb[0].mxu0
        %v488 = vadd.f32 0.0, %v487
        %v489 = vpop.f32.mrb[0].mxu0
        %v490 = vadd.f32 0.0, %v489
        %491 = vmatprep.mubr.f32.mxu0 0.0
        %492 = vmatmul.mubr.f32.gmra.mrb[0].mxu0 %v230
        %v493 = vpop.f32.mrb[0].mxu0
        %v494 = vadd.f32 0.0, %v493
        %v495 = vpop.f32.mrb[0].mxu0
        %v496 = vadd.f32 0.0, %v495
        %497 = vmatprep.mubr.f32.mxu0 0.0
        %498 = vmatmul.mubr.f32.gmra.mrb[0].mxu0 %v233
        %v499 = vpop.f32.mrb[0].mxu0
        %v500 = vadd.f32 0.0, %v499
        %v501 = vpop.f32.mrb[0].mxu0
        %v502 = vadd.f32 0.0, %v501
        %503 = vmatprep.mubr.f32.mxu0 0.0
        %504 = vmatmul.mubr.f32.gmra.mrb[0].mxu0 %v236
        %v505 = vpop.f32.mrb[0].mxu0
        %v506 = vadd.f32 0.0, %v505
        %v507 = vpop.f32.mrb[0].mxu0
        %v508 = vadd.f32 0.0, %v507
        %509 = vmatprep.mubr.f32.mxu0 0.0
        %510 = vmatmul.mubr.f32.gmra.mrb[0].mxu0 %v239
        %v511 = vpop.f32.mrb[0].mxu0
        %v512 = vadd.f32 0.0, %v511
        %v513 = vpop.f32.mrb[0].mxu0
        %v514 = vadd.f32 0.0, %v513
        %515 = vmatprep.mubr.f32.mxu0 0.0
        %516 = vmatmul.mubr.f32.gmra.mrb[0].mxu0 %v242
        %v517 = vpop.f32.mrb[0].mxu0
        %v518 = vadd.f32 0.0, %v517
        %v519 = vpop.f32.mrb[0].mxu0
        %v520 = vadd.f32 0.0, %v519
        %521 = vmatprep.mubr.f32.mxu0 0.0
        %522 = vmatmul.mubr.f32.gmra.mrb[0].mxu0 %v245
        %v523 = vpop.f32.mrb[0].mxu0
        %v524 = vadd.f32 0.0, %v523
        %v525 = vpop.f32.mrb[0].mxu0
        %v526 = vadd.f32 0.0, %v525
        %527 = vmatprep.mubr.f32.mxu0 0.0
        %528 = vmatmul.mubr.f32.gmra.mrb[0].mxu0 %v248
        %v529 = vpop.f32.mrb[0].mxu0
        %v530 = vadd.f32 0.0, %v529
        %v531 = vpop.f32.mrb[0].mxu0
        %v532 = vadd.f32 0.0, %v531
        %533 = vmatprep.mubr.f32.mxu0 0.0
        %534 = vmatmul.mubr.f32.gmra.mrb[0].mxu0 %v251
        %v535 = vpop.f32.mrb[0].mxu0
        %v536 = vadd.f32 0.0, %v535
        %v537 = vpop.f32.mrb[0].mxu0
        %v538 = vadd.f32 0.0, %v537
        %539 = vmatprep.mubr.f32.mxu0 0.0
        %540 = vmatmul.mubr.f32.gmra.mrb[0].mxu0 %v254
        %v541 = vpop.f32.mrb[0].mxu0
        %v542 = vadd.f32 0.0, %v541
        %v543 = vpop.f32.mrb[0].mxu0
        %v544 = vadd.f32 0.0, %v543
        %545 = vmatprep.mubr.f32.mxu0 0.0
        %546 = vmatmul.mubr.f32.gmra.mrb[0].mxu0 %v257
        %v547 = vpop.f32.mrb[0].mxu0
        %v548 = vadd.f32 0.0, %v547
        %v549 = vpop.f32.mrb[0].mxu0
        %v550 = vadd.f32 0.0, %v549
        %551 = vmatprep.mubr.f32.mxu0 0.0
        %552 = vmatmul.mubr.f32.gmra.mrb[0].mxu0 %v260
        %v553 = vpop.f32.mrb[0].mxu0
        %v554 = vadd.f32 0.0, %v553
        %v555 = vpop.f32.mrb[0].mxu0
        %v556 = vadd.f32 0.0, %v555
        %557 = vmatprep.mubr.f32.mxu0 0.0
        %558 = vmatmul.mubr.f32.gmra.mrb[0].mxu0 %v263
        %v559 = vpop.f32.mrb[0].mxu0
        %v560 = vadd.f32 0.0, %v559
        %v561 = vpop.f32.mrb[0].mxu0
        %v562 = vadd.f32 0.0, %v561
        %563 = vmatprep.mubr.f32.mxu0 0.0
        %564 = vmatmul.mubr.f32.gmra.mrb[0].mxu0 %v266
        %v565 = vpop.f32.mrb[0].mxu0
        %v566 = vadd.f32 0.0, %v565
        %v567 = vpop.f32.mrb[0].mxu0
        %v568 = vadd.f32 0.0, %v567
        %569 = vmatprep.mubr.f32.mxu0 0.0
        %570 = vmatmul.mubr.f32.gmra.mrb[0].mxu0 %v269
        %v571 = vpop.f32.mrb[0].mxu0
        %v572 = vadd.f32 0.0, %v571
        %v573 = vpop.f32.mrb[0].mxu0
        %v574 = vadd.f32 0.0, %v573
        %575 = vmatprep.mubr.f32.mxu0 0.0
        %576 = vmatmul.mubr.f32.gmra.mrb[0].mxu0 %v272
        %v577 = vpop.f32.mrb[0].mxu0
        %v578 = vadd.f32 0.0, %v577
        %v579 = vpop.f32.mrb[0].mxu0
        %v580 = vadd.f32 0.0, %v579
        %581 = vmatprep.mubr.f32.mxu0 0.0
        %582 = vmatmul.mubr.f32.gmra.mrb[0].mxu0 %v275
        %v583 = vpop.f32.mrb[0].mxu0
        %v584 = vadd.f32 0.0, %v583
        %v585 = vpop.f32.mrb[0].mxu0
        %v586 = vadd.f32 0.0, %v585
        %587 = vmatprep.mubr.f32.mxu0 0.0
        %588 = vmatmul.mubr.f32.gmra.mrb[0].mxu0 %v278
        %v589 = vpop.f32.mrb[0].mxu0
        %v590 = vadd.f32 0.0, %v589
        %v591 = vpop.f32.mrb[0].mxu0
        %v592 = vadd.f32 0.0, %v591
        %593 = vmatprep.mubr.f32.mxu0 0.0
        %594 = vmatmul.mubr.f32.gmra.mrb[0].mxu0 %v281
        %v595 = vpop.f32.mrb[0].mxu0
        %v596 = vadd.f32 0.0, %v595
        %v597 = vpop.f32.mrb[0].mxu0
        %v598 = vadd.f32 0.0, %v597
        %599 = vmatprep.mubr.f32.mxu0 0.0
        %600 = vmatmul.mubr.f32.gmra.mrb[0].mxu0 %v284
        %v601 = vpop.f32.mrb[0].mxu0
        %v602 = vadd.f32 0.0, %v601
        %v603 = vpop.f32.mrb[0].mxu0
        %v604 = vadd.f32 0.0, %v603
        %605 = vmatprep.mubr.f32.mxu0 0.0
        %606 = vmatmul.mubr.f32.gmra.mrb[0].mxu0 %v287
        %v607 = vpop.f32.mrb[0].mxu0
        %v608 = vadd.f32 0.0, %v607
        %v609 = vpop.f32.mrb[0].mxu0
        %v610 = vadd.f32 0.0, %v609
        %611 = vmatprep.mubr.f32.mxu0 0.0
        %612 = vmatmul.mubr.f32.gmra.mrb[0].mxu0 %v290
        %v613 = vpop.f32.mrb[0].mxu0
        %v614 = vadd.f32 0.0, %v613
        %v615 = vpop.f32.mrb[0].mxu0
        %v616 = vadd.f32 0.0, %v615
        %617 = vmatprep.mubr.f32.mxu0 0.0
        %618 = vmatmul.mubr.f32.gmra.mrb[0].mxu0 %v293
        %v619 = vpop.f32.mrb[0].mxu0
        %v620 = vadd.f32 0.0, %v619
        %v621 = vpop.f32.mrb[0].mxu0
        %v622 = vadd.f32 0.0, %v621
        %623 = vmatprep.mubr.f32.mxu0 0.0
        %624 = vmatmul.mubr.f32.gmra.mrb[0].mxu0 %v296
        %v625 = vpop.f32.mrb[0].mxu0
        %v626 = vadd.f32 0.0, %v625
        %v627 = vpop.f32.mrb[0].mxu0
        %v628 = vadd.f32 0.0, %v627
        %629 = vmatprep.mubr.f32.mxu0 0.0
        %630 = vmatmul.mubr.f32.gmra.mrb[0].mxu0 %v299
        %v631 = vpop.f32.mrb[0].mxu0
        %v632 = vadd.f32 0.0, %v631
        %v633 = vpop.f32.mrb[0].mxu0
        %v634 = vadd.f32 0.0, %v633
        %635 = vmatprep.mubr.f32.mxu0 0.0
        %636 = vmatmul.mubr.f32.gmra.mrb[0].mxu0 %v302
        %v637 = vpop.f32.mrb[0].mxu0
        %v638 = vadd.f32 0.0, %v637
        %v639 = vpop.f32.mrb[0].mxu0
        %v640 = vadd.f32 0.0, %v639
        %641 = vmatprep.mubr.f32.mxu0 0.0
        %642 = vmatmul.mubr.f32.gmra.mrb[0].mxu0 %v305
        %v643 = vpop.f32.mrb[0].mxu0
        %v644 = vadd.f32 0.0, %v643
        %v645 = vpop.f32.mrb[0].mxu0
        %v646 = vadd.f32 0.0, %v645
        %647 = vmatprep.mubr.f32.mxu0 0.0
        %648 = vmatmul.mubr.f32.gmra.mrb[0].mxu0 %v308
        %v649 = vpop.f32.mrb[0].mxu0
        %v650 = vadd.f32 0.0, %v649
        %v651 = vpop.f32.mrb[0].mxu0
        %v652 = vadd.f32 0.0, %v651
        %653 = vmatprep.mubr.f32.mxu0 0.0
        %654 = vmatmul.mubr.f32.gmra.mrb[0].mxu0 %v311
        %v655 = vpop.f32.mrb[0].mxu0
        %v656 = vadd.f32 0.0, %v655
        %v657 = vpop.f32.mrb[0].mxu0
        %v658 = vadd.f32 0.0, %v657
        %659 = vmatprep.mubr.f32.mxu0 0.0
        %660 = vmatmul.mubr.f32.gmra.mrb[0].mxu0 %v314
        %v661 = vpop.f32.mrb[0].mxu0
        %v662 = vadd.f32 0.0, %v661
        %v663 = vpop.f32.mrb[0].mxu0
        %v664 = vadd.f32 0.0, %v663
        %665 = vmatprep.mubr.f32.mxu0 0.0
        %666 = vmatmul.mubr.f32.gmra.mrb[0].mxu0 %v317
        %v667 = vpop.f32.mrb[0].mxu0
        %v668 = vadd.f32 0.0, %v667
        %v669 = vpop.f32.mrb[0].mxu0
        %v670 = vadd.f32 0.0, %v669
        %671 = vdwg.mxu0
        %672 = vst [vmem:[%s147] sm:$0xff] %v482
        %673 = vst [vmem:[%s147 + $0x8] sm:$0xff] %v484
        %674 = vst [vmem:[%s147 + $0x10] sm:$0xff] %v488
        %675 = vst [vmem:[%s147 + $0x18] sm:$0xff] %v490
        %676 = vst [vmem:[%s147 + $0x20] sm:$0xff] %v494
        %677 = vst [vmem:[%s147 + $0x28] sm:$0xff] %v496
        %678 = vst [vmem:[%s147 + $0x30] sm:$0xff] %v500
        %679 = vst [vmem:[%s147 + $0x38] sm:$0xff] %v502
        %680 = vst [vmem:[%s147 + $0x40] sm:$0xff] %v506
        %681 = vst [vmem:[%s147 + $0x48] sm:$0xff] %v508
        %682 = vst [vmem:[%s147 + $0x50] sm:$0xff] %v512
        %683 = vst [vmem:[%s147 + $0x58] sm:$0xff] %v514
        %684 = vst [vmem:[%s147 + $0x60] sm:$0xff] %v518
        %685 = vst [vmem:[%s147 + $0x68] sm:$0xff] %v520
        %686 = vst [vmem:[%s147 + $0x70] sm:$0xff] %v524
        %687 = vst [vmem:[%s147 + $0x78] sm:$0xff] %v526
        %688 = vst [vmem:[%s147 + $0x80] sm:$0xff] %v530
        %689 = vst [vmem:[%s147 + $0x88] sm:$0xff] %v532
        %690 = vst [vmem:[%s147 + $0x90] sm:$0xff] %v536
        %691 = vst [vmem:[%s147 + $0x98] sm:$0xff] %v538
        %692 = vst [vmem:[%s147 + $0xa0] sm:$0xff] %v542
        %693 = vst [vmem:[%s147 + $0xa8] sm:$0xff] %v544
        %694 = vst [vmem:[%s147 + $0xb0] sm:$0xff] %v548
        %695 = vst [vmem:[%s147 + $0xb8] sm:$0xff] %v550
        %696 = vst [vmem:[%s147 + $0xc0] sm:$0xff] %v554
        %697 = vst [vmem:[%s147 + $0xc8] sm:$0xff] %v556
        %698 = vst [vmem:[%s147 + $0xd0] sm:$0xff] %v560
        %699 = vst [vmem:[%s147 + $0xd8] sm:$0xff] %v562
        %700 = vst [vmem:[%s147 + $0xe0] sm:$0xff] %v566
        %701 = vst [vmem:[%s147 + $0xe8] sm:$0xff] %v568
        %702 = vst [vmem:[%s147 + $0xf0] sm:$0xff] %v572
        %703 = vst [vmem:[%s147 + $0xf8] sm:$0xff] %v574
        %704 = vst [vmem:[%s147 + $0x100] sm:$0xff] %v578
        %705 = vst [vmem:[%s147 + $0x108] sm:$0xff] %v580
        %706 = vst [vmem:[%s147 + $0x110] sm:$0xff] %v584
        %707 = vst [vmem:[%s147 + $0x118] sm:$0xff] %v586
        %708 = vst [vmem:[%s147 + $0x120] sm:$0xff] %v590
        %709 = vst [vmem:[%s147 + $0x128] sm:$0xff] %v592
        %710 = vst [vmem:[%s147 + $0x130] sm:$0xff] %v596
        %711 = vst [vmem:[%s147 + $0x138] sm:$0xff] %v598
        %712 = vst [vmem:[%s147 + $0x140] sm:$0xff] %v602
        %713 = vst [vmem:[%s147 + $0x148] sm:$0xff] %v604
        %714 = vst [vmem:[%s147 + $0x150] sm:$0xff] %v608
        %715 = vst [vmem:[%s147 + $0x158] sm:$0xff] %v610
        %716 = vst [vmem:[%s147 + $0x160] sm:$0xff] %v614
        %717 = vst [vmem:[%s147 + $0x168] sm:$0xff] %v616
        %718 = vst [vmem:[%s147 + $0x170] sm:$0xff] %v620
        %719 = vst [vmem:[%s147 + $0x178] sm:$0xff] %v622
        %720 = vst [vmem:[%s147 + $0x180] sm:$0xff] %v626
        %721 = vst [vmem:[%s147 + $0x188] sm:$0xff] %v628
        %722 = vst [vmem:[%s147 + $0x190] sm:$0xff] %v632
        %723 = vst [vmem:[%s147 + $0x198] sm:$0xff] %v634
        %724 = vst [vmem:[%s147 + $0x1a0] sm:$0xff] %v638
        %725 = vst [vmem:[%s147 + $0x1a8] sm:$0xff] %v640
        %726 = vst [vmem:[%s147 + $0x1b0] sm:$0xff] %v644
        %727 = vst [vmem:[%s147 + $0x1b8] sm:$0xff] %v646
        %728 = vst [vmem:[%s147 + $0x1c0] sm:$0xff] %v650
        %729 = vst [vmem:[%s147 + $0x1c8] sm:$0xff] %v652
        %730 = vst [vmem:[%s147 + $0x1d0] sm:$0xff] %v656
        %731 = vst [vmem:[%s147 + $0x1d8] sm:$0xff] %v658
        %732 = vst [vmem:[%s147 + $0x1e0] sm:$0xff] %v662
        %733 = vst [vmem:[%s147 + $0x1e8] sm:$0xff] %v664
        %734 = vst [vmem:[%s147 + $0x1f0] sm:$0xff] %v668
        %735 = vst [vmem:[%s147 + $0x1f8] sm:$0xff] %v670
        %s736 = sand.u32 %s82, 1
        %s737 = sand.u32 %s82, 1
        %s738 = smul.addr %s737, 512
        %s739 = scalar_lea.vmem [#allocation2], %s738
        // Predicated region
        $region29: #{cdrs_forward.7} parent=27 // pred_check
          %p740 = pneg %p92
        $region30: #{cdrs_forward.7} parent=27 // pred_check_branch
          %742 = sbr.rel (%p740) target = $region32
        $region31: #{cdrs_forward.7} parent=27 // pred_region
          %s743 = smul.u32 32, %s17
          %s744 = smul.u32 2, %s18
          %s745 = smul.addr %s743, 6
          %s746 = sadd.s32 %s744, %s745
          %s747 = smul.addr %s746, 8
          %s748 = scalar_lea.vmem %s2, %s747
          // Predicated region
          $region33: #{cdrs_forward.7} parent=31 // pred_check
            _
          $region34: #{cdrs_forward.7} parent=31 // pred_check_branch
            %750 = sbr.rel (0) target = $region36
          $region35: #{cdrs_forward.7} parent=31 // pred_region
            // Predicated region
            $region37: #{cdrs_forward.7} parent=35 // pred_check
              _
            $region38: #{cdrs_forward.7} parent=35 // pred_check_branch
              %752 = sbr.rel (0) target = $region40
            $region39: #{cdrs_forward.7} parent=35 // pred_region
              loop: start=0, step=1, limit=1
              $region41: #{cdrs_forward.7} parent=39 // loop_pre_header
                _
              $region42: #{cdrs_forward.7} parent=39 // loop_header
                %s754 = sphi 0, %s758
                %p755 = scmp.ge.s32.totalorder %s754, 1
                %s759 = sphi %s739, %s739
                %s760 = sphi %s748, %s748
              $region43: #{cdrs_forward.7} parent=39 // loop_header_branch
                %757 = sbr.rel (%p755) target = $region47
              $region44: #{cdrs_forward.7} parent=39 // loop_body
                %v761 = vld [vmem:[%s759] sm:$0xff]
                %762 = vst [vmem:[%s760] sm:$0xff] %v761
                %v763 = vld [vmem:[%s759 + $0x8] sm:$0xff]
                %764 = vst [vmem:[%s760 + $0x8] sm:$0xff] %v763
                %v765 = vld [vmem:[%s759 + $0x10] sm:$0xff]
                %766 = vst [vmem:[%s760 + $0x30] sm:$0xff] %v765
                %v767 = vld [vmem:[%s759 + $0x18] sm:$0xff]
                %768 = vst [vmem:[%s760 + $0x38] sm:$0xff] %v767
                %v769 = vld [vmem:[%s759 + $0x20] sm:$0xff]
                %770 = vst [vmem:[%s760 + $0x60] sm:$0xff] %v769
                %v771 = vld [vmem:[%s759 + $0x28] sm:$0xff]
                %772 = vst [vmem:[%s760 + $0x68] sm:$0xff] %v771
                %v773 = vld [vmem:[%s759 + $0x30] sm:$0xff]
                %774 = vst [vmem:[%s760 + $0x90] sm:$0xff] %v773
                %v775 = vld [vmem:[%s759 + $0x38] sm:$0xff]
                %776 = vst [vmem:[%s760 + $0x98] sm:$0xff] %v775
                %v777 = vld [vmem:[%s759 + $0x40] sm:$0xff]
                %778 = vst [vmem:[%s760 + $0xc0] sm:$0xff] %v777
                %v779 = vld [vmem:[%s759 + $0x48] sm:$0xff]
                %780 = vst [vmem:[%s760 + $0xc8] sm:$0xff] %v779
                %v781 = vld [vmem:[%s759 + $0x50] sm:$0xff]
                %782 = vst [vmem:[%s760 + $0xf0] sm:$0xff] %v781
                %v783 = vld [vmem:[%s759 + $0x58] sm:$0xff]
                %784 = vst [vmem:[%s760 + $0xf8] sm:$0xff] %v783
                %v785 = vld [vmem:[%s759 + $0x60] sm:$0xff]
                %786 = vst [vmem:[%s760 + $0x120] sm:$0xff] %v785
                %v787 = vld [vmem:[%s759 + $0x68] sm:$0xff]
                %788 = vst [vmem:[%s760 + $0x128] sm:$0xff] %v787
                %v789 = vld [vmem:[%s759 + $0x70] sm:$0xff]
                %790 = vst [vmem:[%s760 + $0x150] sm:$0xff] %v789
                %v791 = vld [vmem:[%s759 + $0x78] sm:$0xff]
                %792 = vst [vmem:[%s760 + $0x158] sm:$0xff] %v791
                %v793 = vld [vmem:[%s759 + $0x80] sm:$0xff]
                %794 = vst [vmem:[%s760 + $0x180] sm:$0xff] %v793
                %v795 = vld [vmem:[%s759 + $0x88] sm:$0xff]
                %796 = vst [vmem:[%s760 + $0x188] sm:$0xff] %v795
                %v797 = vld [vmem:[%s759 + $0x90] sm:$0xff]
                %798 = vst [vmem:[%s760 + $0x1b0] sm:$0xff] %v797
                %v799 = vld [vmem:[%s759 + $0x98] sm:$0xff]
                %800 = vst [vmem:[%s760 + $0x1b8] sm:$0xff] %v799
                %v801 = vld [vmem:[%s759 + $0xa0] sm:$0xff]
                %802 = vst [vmem:[%s760 + $0x1e0] sm:$0xff] %v801
                %v803 = vld [vmem:[%s759 + $0xa8] sm:$0xff]
                %804 = vst [vmem:[%s760 + $0x1e8] sm:$0xff] %v803
                %v805 = vld [vmem:[%s759 + $0xb0] sm:$0xff]
                %806 = vst [vmem:[%s760 + $0x210] sm:$0xff] %v805
                %v807 = vld [vmem:[%s759 + $0xb8] sm:$0xff]
                %808 = vst [vmem:[%s760 + $0x218] sm:$0xff] %v807
                %v809 = vld [vmem:[%s759 + $0xc0] sm:$0xff]
                %810 = vst [vmem:[%s760 + $0x240] sm:$0xff] %v809
                %v811 = vld [vmem:[%s759 + $0xc8] sm:$0xff]
                %812 = vst [vmem:[%s760 + $0x248] sm:$0xff] %v811
                %v813 = vld [vmem:[%s759 + $0xd0] sm:$0xff]
                %814 = vst [vmem:[%s760 + $0x270] sm:$0xff] %v813
                %v815 = vld [vmem:[%s759 + $0xd8] sm:$0xff]
                %816 = vst [vmem:[%s760 + $0x278] sm:$0xff] %v815
                %v817 = vld [vmem:[%s759 + $0xe0] sm:$0xff]
                %818 = vst [vmem:[%s760 + $0x2a0] sm:$0xff] %v817
                %v819 = vld [vmem:[%s759 + $0xe8] sm:$0xff]
                %820 = vst [vmem:[%s760 + $0x2a8] sm:$0xff] %v819
                %v821 = vld [vmem:[%s759 + $0xf0] sm:$0xff]
                %822 = vst [vmem:[%s760 + $0x2d0] sm:$0xff] %v821
                %v823 = vld [vmem:[%s759 + $0xf8] sm:$0xff]
                %824 = vst [vmem:[%s760 + $0x2d8] sm:$0xff] %v823
                %v825 = vld [vmem:[%s759 + $0x100] sm:$0xff]
                %826 = vst [vmem:[%s760 + $0x300] sm:$0xff] %v825
                %v827 = vld [vmem:[%s759 + $0x108] sm:$0xff]
                %828 = vst [vmem:[%s760 + $0x308] sm:$0xff] %v827
                %v829 = vld [vmem:[%s759 + $0x110] sm:$0xff]
                %830 = vst [vmem:[%s760 + $0x330] sm:$0xff] %v829
                %v831 = vld [vmem:[%s759 + $0x118] sm:$0xff]
                %832 = vst [vmem:[%s760 + $0x338] sm:$0xff] %v831
                %v833 = vld [vmem:[%s759 + $0x120] sm:$0xff]
                %834 = vst [vmem:[%s760 + $0x360] sm:$0xff] %v833
                %v835 = vld [vmem:[%s759 + $0x128] sm:$0xff]
                %836 = vst [vmem:[%s760 + $0x368] sm:$0xff] %v835
                %v837 = vld [vmem:[%s759 + $0x130] sm:$0xff]
                %838 = vst [vmem:[%s760 + $0x390] sm:$0xff] %v837
                %v839 = vld [vmem:[%s759 + $0x138] sm:$0xff]
                %840 = vst [vmem:[%s760 + $0x398] sm:$0xff] %v839
                %v841 = vld [vmem:[%s759 + $0x140] sm:$0xff]
                %842 = vst [vmem:[%s760 + $0x3c0] sm:$0xff] %v841
                %v843 = vld [vmem:[%s759 + $0x148] sm:$0xff]
                %844 = vst [vmem:[%s760 + $0x3c8] sm:$0xff] %v843
                %v845 = vld [vmem:[%s759 + $0x150] sm:$0xff]
                %846 = vst [vmem:[%s760 + $0x3f0] sm:$0xff] %v845
                %v847 = vld [vmem:[%s759 + $0x158] sm:$0xff]
                %848 = vst [vmem:[%s760 + $0x3f8] sm:$0xff] %v847
                %v849 = vld [vmem:[%s759 + $0x160] sm:$0xff]
                %850 = vst [vmem:[%s760 + $0x420] sm:$0xff] %v849
                %v851 = vld [vmem:[%s759 + $0x168] sm:$0xff]
                %852 = vst [vmem:[%s760 + $0x428] sm:$0xff] %v851
                %v853 = vld [vmem:[%s759 + $0x170] sm:$0xff]
                %854 = vst [vmem:[%s760 + $0x450] sm:$0xff] %v853
                %v855 = vld [vmem:[%s759 + $0x178] sm:$0xff]
                %856 = vst [vmem:[%s760 + $0x458] sm:$0xff] %v855
                %v857 = vld [vmem:[%s759 + $0x180] sm:$0xff]
                %858 = vst [vmem:[%s760 + $0x480] sm:$0xff] %v857
                %v859 = vld [vmem:[%s759 + $0x188] sm:$0xff]
                %860 = vst [vmem:[%s760 + $0x488] sm:$0xff] %v859
                %v861 = vld [vmem:[%s759 + $0x190] sm:$0xff]
                %862 = vst [vmem:[%s760 + $0x4b0] sm:$0xff] %v861
                %v863 = vld [vmem:[%s759 + $0x198] sm:$0xff]
                %864 = vst [vmem:[%s760 + $0x4b8] sm:$0xff] %v863
                %v865 = vld [vmem:[%s759 + $0x1a0] sm:$0xff]
                %866 = vst [vmem:[%s760 + $0x4e0] sm:$0xff] %v865
                %v867 = vld [vmem:[%s759 + $0x1a8] sm:$0xff]
                %868 = vst [vmem:[%s760 + $0x4e8] sm:$0xff] %v867
                %v869 = vld [vmem:[%s759 + $0x1b0] sm:$0xff]
                %870 = vst [vmem:[%s760 + $0x510] sm:$0xff] %v869
                %v871 = vld [vmem:[%s759 + $0x1b8] sm:$0xff]
                %872 = vst [vmem:[%s760 + $0x518] sm:$0xff] %v871
                %v873 = vld [vmem:[%s759 + $0x1c0] sm:$0xff]
                %874 = vst [vmem:[%s760 + $0x540] sm:$0xff] %v873
                %v875 = vld [vmem:[%s759 + $0x1c8] sm:$0xff]
                %876 = vst [vmem:[%s760 + $0x548] sm:$0xff] %v875
                %v877 = vld [vmem:[%s759 + $0x1d0] sm:$0xff]
                %878 = vst [vmem:[%s760 + $0x570] sm:$0xff] %v877
                %v879 = vld [vmem:[%s759 + $0x1d8] sm:$0xff]
                %880 = vst [vmem:[%s760 + $0x578] sm:$0xff] %v879
                %v881 = vld [vmem:[%s759 + $0x1e0] sm:$0xff]
                %882 = vst [vmem:[%s760 + $0x5a0] sm:$0xff] %v881
                %v883 = vld [vmem:[%s759 + $0x1e8] sm:$0xff]
                %884 = vst [vmem:[%s760 + $0x5a8] sm:$0xff] %v883
                %v885 = vld [vmem:[%s759 + $0x1f0] sm:$0xff]
                %886 = vst [vmem:[%s760 + $0x5d0] sm:$0xff] %v885
                %v887 = vld [vmem:[%s759 + $0x1f8] sm:$0xff]
                %888 = vst [vmem:[%s760 + $0x5d8] sm:$0xff] %v887
              $region45: #{cdrs_forward.7} parent=39 // loop_footer
                %s758 = sadd.s32 1, %s754
              $region46: #{cdrs_forward.7} parent=39 // loop_footer_branch
                %753 = sbr.rel target = $region42
              $region47: #{cdrs_forward.7} parent=39 // loop_exit
                _
            $region40: #{cdrs_forward.7} parent=35 // pred_fallthru
              _
            // Predicated region
            $region48: #{cdrs_forward.7} parent=35 // pred_check
              _
            $region49: #{cdrs_forward.7} parent=35 // pred_check_branch
              %890 = sbr.rel target = $region51
            $region50: #{cdrs_forward.7} parent=35 // pred_region
              _
            $region51: #{cdrs_forward.7} parent=35 // pred_fallthru
              _
          $region36: #{cdrs_forward.7} parent=31 // pred_fallthru
            _
          %891 = vnop
        $region32: #{cdrs_forward.7} parent=27 // pred_fallthru
          _
      $region28: #{cdrs_forward.7} parent=5 // pred_fallthru
        _
      %p892 = scmp.le.s32.totalorder 2, %s8
      // Predicated region
      $region52: #{cdrs_forward.7} parent=5 // pred_check
        %p893 = pneg %p892
      $region53: #{cdrs_forward.7} parent=5 // pred_check_branch
        %895 = sbr.rel (%p893) target = $region55
      $region54: #{cdrs_forward.7} parent=5 // pred_region
        %s896 = ssub.s32 %s8, 2
        // Predicated region
        $region56: #{cdrs_forward.7} parent=54 // pred_check
          %p897 = pneg %p98
        $region57: #{cdrs_forward.7} parent=54 // pred_check_branch
          %899 = sbr.rel (%p897) target = $region59
        $region58: #{cdrs_forward.7} parent=54 // pred_region
          %s900 = sand.u32 %s83, 1
          %s901 = sand.u32 %s83, 1
          %s902 = smul.addr %s901, 512
          %s903 = scalar_lea.vmem [#allocation2], %s902
        $region59: #{cdrs_forward.7} parent=54 // pred_fallthru
          _
      $region55: #{cdrs_forward.7} parent=5 // pred_fallthru
        _
    $region6: #{cdrs_forward.7} parent=1 // loop_footer
      %s12 = sadd.s32 1, %s8
    $region7: #{cdrs_forward.7} parent=1 // loop_footer_branch
      %7 = sbr.rel target = $region3
    $region8: #{cdrs_forward.7} parent=1 // loop_exit
      _

</llo_original>
